<compile_context>
chip_gen: v6e
topology: v6e:2x2x1
jax: 0.10.0
libtpu: 0.0.40
codegen_flags: <defaults>
</compile_context>

<pallas_src>
import math

import jax
import jax.numpy as jnp
from jax import lax
from jax.experimental import pallas as pl
from jax.experimental.pallas import tpu as pltpu  # noqa: F401  (TPU-specific knobs for scaling)


# ----------------------------- glue (plain JAX) -----------------------------

def positional_encoding_table(max_length, hidden_dim):
    position = jnp.arange(max_length, dtype=jnp.float32)[:, None]
    div_term = jnp.exp(
        jnp.arange(0, hidden_dim, 2, dtype=jnp.float32)
        * (-math.log(10000.0) / hidden_dim)
    )
    pe = jnp.zeros((max_length, hidden_dim), jnp.float32)
    pe = pe.at[:, 0::2].set(jnp.sin(position * div_term))
    pe = pe.at[:, 1::2].set(jnp.cos(position * div_term))
    return pe


def _layer_norm(x, gamma, beta, eps=1e-5):
    m = jnp.mean(x, axis=-1, keepdims=True)
    v = jnp.mean((x - m) ** 2, axis=-1, keepdims=True)
    return (x - m) * lax.rsqrt(v + eps) * gamma + beta


def init_params(key, input_dim, hidden_dim, num_layers):
    """Deterministic synthetic parameters with the same shapes as the nn.Module."""
    H, Din, nl = hidden_dim, input_dim, num_layers
    ks = jax.random.split(key, 16)
    s = 0.1
    p = {}
    p["We"] = s * jax.random.normal(ks[0], (H, Din), jnp.float32)          # embedding.weight
    p["be"] = s * jax.random.normal(ks[1], (H,), jnp.float32)              # embedding.bias
    p["Wqkv"] = s * jax.random.normal(ks[2], (nl, 3 * H, H), jnp.float32)  # in_proj_weight
    p["bqkv"] = s * jax.random.normal(ks[3], (nl, 3 * H), jnp.float32)     # in_proj_bias
    p["Wo"] = s * jax.random.normal(ks[4], (nl, H, H), jnp.float32)        # out_proj.weight
    p["bo"] = s * jax.random.normal(ks[5], (nl, H), jnp.float32)           # out_proj.bias
    p["g1"] = 1.0 + s * jax.random.normal(ks[6], (nl, H), jnp.float32)     # norm1.weight
    p["bt1"] = s * jax.random.normal(ks[7], (nl, H), jnp.float32)          # norm1.bias
    p["W1"] = s * jax.random.normal(ks[8], (nl, 4 * H, H), jnp.float32)    # ff Linear1
    p["bf1"] = s * jax.random.normal(ks[9], (nl, 4 * H), jnp.float32)
    p["W2"] = s * jax.random.normal(ks[10], (nl, H, 4 * H), jnp.float32)   # ff Linear2
    p["bf2"] = s * jax.random.normal(ks[11], (nl, H), jnp.float32)
    p["g2"] = 1.0 + s * jax.random.normal(ks[12], (nl, H), jnp.float32)    # norm2.weight
    p["bt2"] = s * jax.random.normal(ks[13], (nl, H), jnp.float32)         # norm2.bias
    p["Wout"] = s * jax.random.normal(ks[14], (1, H), jnp.float32)         # output.weight
    p["bout"] = s * jax.random.normal(ks[15], (1,), jnp.float32)           # output.bias
    return p


# ------------------------------ Pallas kernel -------------------------------

def transformer_forward(x, params, *, num_heads, compute_dtype=jnp.float32):
    L, N, D_in = x.shape
    H = params["We"].shape[0]
    num_layers = params["Wqkv"].shape[0]
    hd = H // num_heads
    scaling = 1.0 / math.sqrt(hd)
    NL = N * L

    # -------- wrapper-side parameter / layout prep (no input-dependent compute) --------
    # token-major activation: row n*L + l  <->  (batch n, position l)
    x_flat = jnp.transpose(x, (1, 0, 2)).reshape(NL, D_in).astype(jnp.float32)

    # module quirk: pe indexed by x.size(1) (= batch dim), broadcast over L.
    pe = positional_encoding_table(1000, H)[:N]                      # (N, H)
    pe_rep = jnp.repeat(pe, L, axis=0)                               # (NL, H): row n*L+l -> pe[n]
    emb_bias = params["be"][None, :] + pe_rep                        # fold embedding bias + pe

    We_t = params["We"].T.astype(compute_dtype)                      # (D_in, H)

    # PyTorch in_proj layout already produces contiguous [Q_all | K_all | V_all] output
    # columns with heads contiguous inside each slab; fold 1/sqrt(hd) into the Q columns
    # (weight AND bias) so the kernel never scales Q.
    qscale = jnp.concatenate(
        [jnp.full((H,), scaling, jnp.float32), jnp.ones((2 * H,), jnp.float32)])
    Wqkv_t = (jnp.transpose(params["Wqkv"], (0, 2, 1)) * qscale).astype(compute_dtype)  # (nl,H,3H)
    bqkv = params["bqkv"] * qscale                                   # (nl, 3H) f32

    Wo_t = jnp.transpose(params["Wo"], (0, 2, 1)).astype(compute_dtype)   # (nl, H, H)
    W1_t = jnp.transpose(params["W1"], (0, 2, 1)).astype(compute_dtype)   # (nl, H, 4H)
    W2_t = jnp.transpose(params["W2"], (0, 2, 1)).astype(compute_dtype)   # (nl, 4H, H)
    Wout = params["Wout"]                                            # (1, H) f32
    bout = params["bout"][None, :]                                   # (1, 1) f32

    # block-diagonal batch mask: token r = n*L + l may only attend within batch n.
    batch_id = jnp.arange(NL, dtype=jnp.int32) // L
    mask_bias = jnp.where(batch_id[:, None] == batch_id[None, :],
                          0.0, -1e30).astype(jnp.float32)            # (NL, NL)

    def kernel(x_ref, embb_ref, mask_ref, We_ref,
               Wqkv_ref, bqkv_ref, Wo_ref, bo_ref,
               g1_ref, bt1_ref, W1_ref, bf1_ref, W2_ref, bf2_ref,
               g2_ref, bt2_ref, Wout_ref, bout_ref, o_ref):
        cdt = We_ref.dtype  # matmul operand dtype (f32 or bf16); accumulation stays f32

        # embedding + (bias + positional encoding), batched over all N*L tokens
        h = (jnp.dot(x_ref[...].astype(cdt), We_ref[...],
                     preferred_element_type=jnp.float32)
             + embb_ref[...])                                        # (NL, H) f32
        mask = mask_ref[...]                                         # (NL, NL) f32

        for l in range(num_layers):
            # ---- multi-head self-attention (block-diagonal masked, one matmul per head) ----
            qkv = (jnp.dot(h.astype(cdt), Wqkv_ref[l],
                           preferred_element_type=jnp.float32)
                   + bqkv_ref[l:l + 1, :])                           # (NL, 3H); Q pre-scaled
            head_outs = []
            for a in range(num_heads):
                q_a = qkv[:, a * hd:(a + 1) * hd]                    # (NL, hd)
                k_a = qkv[:, H + a * hd:H + (a + 1) * hd]            # (NL, hd)
                v_a = qkv[:, 2 * H + a * hd:2 * H + (a + 1) * hd]    # (NL, hd)
                # Q_h @ K_h^T over ALL tokens, cross-batch entries masked to -1e30
                s = lax.dot_general(q_a.astype(cdt), k_a.astype(cdt),
                                    (((1,), (1,)), ((), ())),
                                    preferred_element_type=jnp.float32) + mask  # (NL, NL)
                s = s - jnp.max(s, axis=-1, keepdims=True)
                p = jnp.exp(s)                                       # masked entries underflow to 0
                p = p * pl.reciprocal(jnp.sum(p, axis=-1, keepdims=True), approx=True)
                head_outs.append(jnp.dot(p.astype(cdt), v_a.astype(cdt),
                                         preferred_element_type=jnp.float32))   # (NL, hd)
            attn = jnp.concatenate(head_outs, axis=-1)               # (NL, H), token order
            attn = (jnp.dot(attn.astype(cdt), Wo_ref[l],
                            preferred_element_type=jnp.float32)
                    + bo_ref[l:l + 1, :])
            h = _layer_norm(h + attn, g1_ref[l:l + 1, :], bt1_ref[l:l + 1, :])

            # ---- feed-forward ----
            ff = (jnp.dot(h.astype(cdt), W1_ref[l],
                          preferred_element_type=jnp.float32)
                  + bf1_ref[l:l + 1, :])
            ff = jnp.maximum(ff, 0.0)
            ff = (jnp.dot(ff.astype(cdt), W2_ref[l],
                          preferred_element_type=jnp.float32)
                  + bf2_ref[l:l + 1, :])
            h = _layer_norm(h + ff, g2_ref[l:l + 1, :], bt2_ref[l:l + 1, :])

        # ---- output head Linear(H, 1): reduce on (NL, H) first, then reshape the column ----
        out_col = jnp.sum(h * Wout_ref[...], axis=-1, keepdims=True) + bout_ref[...]  # (NL, 1)
        o_ref[...] = out_col.reshape(N, L)                           # lane-dense (N, L) store

    out_nl = pl.pallas_call(
        kernel,
        out_shape=jax.ShapeDtypeStruct((N, L), jnp.float32),
        # gridless single invocation: at these shapes every operand is a small full-array
        # VMEM block well under the default scoped-VMEM limit.  See scaling notes at the
        # top for the v7x two-TensorCore grid and per-layer weight streaming strategy.
    )(x_flat, emb_bias, mask_bias, We_t,
      Wqkv_t, bqkv, Wo_t, params["bo"],
      params["g1"], params["bt1"], W1_t, params["bf1"], W2_t, params["bf2"],
      params["g2"], params["bt2"], Wout, bout)

    return jnp.transpose(out_nl)[:, :, None]                         # (L, N, 1)


# ----------------------- pure-JAX reference (for check) ----------------------

def reference_forward(x, params, *, num_heads):
    L, N, _ = x.shape
    H = params["We"].shape[0]
    num_layers = params["Wqkv"].shape[0]
    hd = H // num_heads
    h = jnp.einsum("lnd,hd->lnh", x, params["We"]) + params["be"]
    pe = positional_encoding_table(1000, H)
    h = h + pe[None, :N, :]                      # x + pe[:, :x.size(1)] quirk
    for l in range(num_layers):
        qkv = jnp.einsum("lnh,kh->lnk", h, params["Wqkv"][l]) + params["bqkv"][l]
        q, k, v = jnp.split(qkv, 3, axis=-1)
        q = q * (hd ** -0.5)

        def heads(t):
            return t.reshape(L, N, num_heads, hd).transpose(1, 2, 0, 3)

        qh, kh, vh = heads(q), heads(k), heads(v)
        s = jnp.einsum("nhld,nhmd->nhlm", qh, kh)
        p = jax.nn.softmax(s, axis=-1)
        o = jnp.einsum("nhlm,nhmd->nhld", p, vh)
        o = o.transpose(2, 0, 1, 3).reshape(L, N, H)
        ao = jnp.einsum("lnh,oh->lno", o, params["Wo"][l]) + params["bo"][l]
        h = _layer_norm(h + ao, params["g1"][l], params["bt1"][l])
        ff = jnp.einsum("lnh,fh->lnf", h, params["W1"][l]) + params["bf1"][l]
        ff = jax.nn.relu(ff)
        ff = jnp.einsum("lnf,hf->lnh", ff, params["W2"][l]) + params["bf2"][l]
        h = _layer_norm(h + ff, params["g2"][l], params["bt2"][l])
    return jnp.einsum("lnh,oh->lno", h, params["Wout"]) + params["bout"]


# ----------------------------------- main ------------------------------------

if __name__ == "__main__":
    L, N = 8, 2                 # sequence length, batch
    D_in, H = 16, 32            # input_dim, hidden_dim
    num_layers, num_heads = 2, 4

    key = jax.random.PRNGKey(0)
    kx, kp = jax.random.split(key)
    x = jax.random.normal(kx, (L, N, D_in), jnp.float32)
    params = init_params(kp, D_in, H, num_layers)

    # f32 matmul-operand path (default): tight check against the pure-JAX reference.
    out = transformer_forward(x, params, num_heads=num_heads)
    out = jax.block_until_ready(out)
    ref = reference_forward(x, params, num_heads=num_heads)
    assert out.shape == (L, N, 1), out.shape
    err = float(jnp.max(jnp.abs(out - ref)))
    # tolerance allows for the approximate (EUP) reciprocal in the softmax normalization
    assert err < 1e-2, f"max abs error {err}"

    # bf16 matmul-operand path (the v6e/v7x scaling lever); validated separately with a
    # loose tolerance per the review (LayerNorm/softmax/residuals stay f32).
    out_bf16 = transformer_forward(x, params, num_heads=num_heads,
                                   compute_dtype=jnp.bfloat16)
    out_bf16 = jax.block_until_ready(out_bf16)
    err_bf16 = float(jnp.max(jnp.abs(out_bf16 - ref)))
    assert out_bf16.shape == (L, N, 1), out_bf16.shape
    assert err_bf16 < 0.25, f"bf16 max abs error {err_bf16}"

    print("KERNEL_OK")
</pallas_src>

<mosaic_0001>
module attributes {stable_mosaic.version = 11 : i64} {
  func.func @kernel(%arg0: memref<16x16xf32, #tpu.memory_space<vmem>>, %arg1: memref<16x32xf32, #tpu.memory_space<vmem>>, %arg2: memref<16x16xf32, #tpu.memory_space<vmem>>, %arg3: memref<16x32xf32, #tpu.memory_space<vmem>>, %arg4: memref<2x32x96xf32, #tpu.memory_space<vmem>>, %arg5: memref<2x96xf32, #tpu.memory_space<vmem>>, %arg6: memref<2x32x32xf32, #tpu.memory_space<vmem>>, %arg7: memref<2x32xf32, #tpu.memory_space<vmem>>, %arg8: memref<2x32xf32, #tpu.memory_space<vmem>>, %arg9: memref<2x32xf32, #tpu.memory_space<vmem>>, %arg10: memref<2x32x128xf32, #tpu.memory_space<vmem>>, %arg11: memref<2x128xf32, #tpu.memory_space<vmem>>, %arg12: memref<2x128x32xf32, #tpu.memory_space<vmem>>, %arg13: memref<2x32xf32, #tpu.memory_space<vmem>>, %arg14: memref<2x32xf32, #tpu.memory_space<vmem>>, %arg15: memref<2x32xf32, #tpu.memory_space<vmem>>, %arg16: memref<1x32xf32, #tpu.memory_space<vmem>>, %arg17: memref<1x1xf32, #tpu.memory_space<vmem>>, %arg18: memref<2x8xf32, #tpu.memory_space<vmem>>) attributes {dimension_semantics = [], scalar_prefetch = 0 : i64, scratch_operands = 0 : i64, tpu.core_type = #tpu.core_type<tc>} {
    %c0 = arith.constant 0 : index
    %c0_0 = arith.constant 0 : index
    %0 = vector.load %arg0[%c0, %c0_0] : memref<16x16xf32, #tpu.memory_space<vmem>>, vector<16x16xf32>
    %c0_1 = arith.constant 0 : index
    %c0_2 = arith.constant 0 : index
    %1 = vector.load %arg3[%c0_1, %c0_2] : memref<16x32xf32, #tpu.memory_space<vmem>>, vector<16x32xf32>
    %cst = arith.constant dense<0.000000e+00> : vector<16x32xf32>
    %2 = tpu.matmul %0, %1, %cst {dimension_numbers = #tpu.dot_dimension_numbers<[1], [0], [0], [1], [0, 0, 1, 1], [], []>} : vector<16x16xf32>, vector<16x32xf32>, vector<16x32xf32> -> vector<16x32xf32>
    %c0_3 = arith.constant 0 : index
    %c0_4 = arith.constant 0 : index
    %3 = vector.load %arg1[%c0_3, %c0_4] : memref<16x32xf32, #tpu.memory_space<vmem>>, vector<16x32xf32>
    %4 = arith.addf %2, %3 : vector<16x32xf32>
    %c0_5 = arith.constant 0 : index
    %c0_6 = arith.constant 0 : index
    %5 = vector.load %arg2[%c0_5, %c0_6] : memref<16x16xf32, #tpu.memory_space<vmem>>, vector<16x16xf32>
    %c0_7 = arith.constant 0 : index
    %c0_8 = arith.constant 0 : index
    %c0_9 = arith.constant 0 : index
    %6 = vector.load %arg4[%c0_7, %c0_8, %c0_9] : memref<2x32x96xf32, #tpu.memory_space<vmem>>, vector<1x32x96xf32>
    %7 = vector.shape_cast %6 : vector<1x32x96xf32> to vector<32x96xf32>
    %cst_10 = arith.constant dense<0.000000e+00> : vector<16x96xf32>
    %8 = tpu.matmul %4, %7, %cst_10 {dimension_numbers = #tpu.dot_dimension_numbers<[1], [0], [0], [1], [0, 0, 1, 1], [], []>} : vector<16x32xf32>, vector<32x96xf32>, vector<16x96xf32> -> vector<16x96xf32>
    %c0_11 = arith.constant 0 : index
    %c0_12 = arith.constant 0 : index
    %9 = vector.load %arg5[%c0_11, %c0_12] : memref<2x96xf32, #tpu.memory_space<vmem>>, vector<1x96xf32>
    %10 = vector.broadcast %9 : vector<1x96xf32> to vector<16x96xf32>
    %11 = arith.addf %8, %10 : vector<16x96xf32>
    %12 = vector.extract_strided_slice %11 {offsets = [0, 0], sizes = [16, 8], strides = [1, 1]} : vector<16x96xf32> to vector<16x8xf32>
    %13 = vector.extract_strided_slice %11 {offsets = [0, 32], sizes = [16, 8], strides = [1, 1]} : vector<16x96xf32> to vector<16x8xf32>
    %14 = vector.extract_strided_slice %11 {offsets = [0, 64], sizes = [16, 8], strides = [1, 1]} : vector<16x96xf32> to vector<16x8xf32>
    %cst_13 = arith.constant dense<0.000000e+00> : vector<16x16xf32>
    %15 = tpu.matmul %12, %13, %cst_13 {dimension_numbers = #tpu.dot_dimension_numbers<[1], [1], [0], [0], [0, 0, 1, 0], [], []>} : vector<16x8xf32>, vector<16x8xf32>, vector<16x16xf32> -> vector<16x16xf32>
    %16 = arith.addf %15, %5 : vector<16x16xf32>
    %cst_14 = arith.constant dense<0xFF800000> : vector<16xf32>
    %17 = vector.multi_reduction <maximumf>, %16, %cst_14 [1] : vector<16x16xf32> to vector<16xf32>
    %18 = vector.shape_cast %17 : vector<16xf32> to vector<16x1xf32>
    %19 = vector.broadcast %18 : vector<16x1xf32> to vector<16x16xf32>
    %20 = arith.subf %16, %19 : vector<16x16xf32>
    %21 = math.exp %20 : vector<16x16xf32>
    %cst_15 = arith.constant dense<0.000000e+00> : vector<16xf32>
    %22 = vector.multi_reduction <add>, %21, %cst_15 [1] : vector<16x16xf32> to vector<16xf32>
    %23 = vector.shape_cast %22 : vector<16xf32> to vector<16x1xf32>
    %24 = tpu.reciprocal %23 {approx = true} : vector<16x1xf32> -> vector<16x1xf32>
    %25 = vector.broadcast %24 : vector<16x1xf32> to vector<16x16xf32>
    %26 = arith.mulf %21, %25 : vector<16x16xf32>
    %cst_16 = arith.constant dense<0.000000e+00> : vector<16x8xf32>
    %27 = tpu.matmul %26, %14, %cst_16 {dimension_numbers = #tpu.dot_dimension_numbers<[1], [0], [0], [1], [0, 0, 1, 1], [], []>} : vector<16x16xf32>, vector<16x8xf32>, vector<16x8xf32> -> vector<16x8xf32>
    %28 = vector.extract_strided_slice %11 {offsets = [0, 8], sizes = [16, 8], strides = [1, 1]} : vector<16x96xf32> to vector<16x8xf32>
    %29 = vector.extract_strided_slice %11 {offsets = [0, 40], sizes = [16, 8], strides = [1, 1]} : vector<16x96xf32> to vector<16x8xf32>
    %30 = vector.extract_strided_slice %11 {offsets = [0, 72], sizes = [16, 8], strides = [1, 1]} : vector<16x96xf32> to vector<16x8xf32>
    %cst_17 = arith.constant dense<0.000000e+00> : vector<16x16xf32>
    %31 = tpu.matmul %28, %29, %cst_17 {dimension_numbers = #tpu.dot_dimension_numbers<[1], [1], [0], [0], [0, 0, 1, 0], [], []>} : vector<16x8xf32>, vector<16x8xf32>, vector<16x16xf32> -> vector<16x16xf32>
    %32 = arith.addf %31, %5 : vector<16x16xf32>
    %cst_18 = arith.constant dense<0xFF800000> : vector<16xf32>
    %33 = vector.multi_reduction <maximumf>, %32, %cst_18 [1] : vector<16x16xf32> to vector<16xf32>
    %34 = vector.shape_cast %33 : vector<16xf32> to vector<16x1xf32>
    %35 = vector.broadcast %34 : vector<16x1xf32> to vector<16x16xf32>
    %36 = arith.subf %32, %35 : vector<16x16xf32>
    %37 = math.exp %36 : vector<16x16xf32>
    %cst_19 = arith.constant dense<0.000000e+00> : vector<16xf32>
    %38 = vector.multi_reduction <add>, %37, %cst_19 [1] : vector<16x16xf32> to vector<16xf32>
    %39 = vector.shape_cast %38 : vector<16xf32> to vector<16x1xf32>
    %40 = tpu.reciprocal %39 {approx = true} : vector<16x1xf32> -> vector<16x1xf32>
    %41 = vector.broadcast %40 : vector<16x1xf32> to vector<16x16xf32>
    %42 = arith.mulf %37, %41 : vector<16x16xf32>
    %cst_20 = arith.constant dense<0.000000e+00> : vector<16x8xf32>
    %43 = tpu.matmul %42, %30, %cst_20 {dimension_numbers = #tpu.dot_dimension_numbers<[1], [0], [0], [1], [0, 0, 1, 1], [], []>} : vector<16x16xf32>, vector<16x8xf32>, vector<16x8xf32> -> vector<16x8xf32>
    %44 = vector.extract_strided_slice %11 {offsets = [0, 16], sizes = [16, 8], strides = [1, 1]} : vector<16x96xf32> to vector<16x8xf32>
    %45 = vector.extract_strided_slice %11 {offsets = [0, 48], sizes = [16, 8], strides = [1, 1]} : vector<16x96xf32> to vector<16x8xf32>
    %46 = vector.extract_strided_slice %11 {offsets = [0, 80], sizes = [16, 8], strides = [1, 1]} : vector<16x96xf32> to vector<16x8xf32>
    %cst_21 = arith.constant dense<0.000000e+00> : vector<16x16xf32>
    %47 = tpu.matmul %44, %45, %cst_21 {dimension_numbers = #tpu.dot_dimension_numbers<[1], [1], [0], [0], [0, 0, 1, 0], [], []>} : vector<16x8xf32>, vector<16x8xf32>, vector<16x16xf32> -> vector<16x16xf32>
    %48 = arith.addf %47, %5 : vector<16x16xf32>
    %cst_22 = arith.constant dense<0xFF800000> : vector<16xf32>
    %49 = vector.multi_reduction <maximumf>, %48, %cst_22 [1] : vector<16x16xf32> to vector<16xf32>
    %50 = vector.shape_cast %49 : vector<16xf32> to vector<16x1xf32>
    %51 = vector.broadcast %50 : vector<16x1xf32> to vector<16x16xf32>
    %52 = arith.subf %48, %51 : vector<16x16xf32>
    %53 = math.exp %52 : vector<16x16xf32>
    %cst_23 = arith.constant dense<0.000000e+00> : vector<16xf32>
    %54 = vector.multi_reduction <add>, %53, %cst_23 [1] : vector<16x16xf32> to vector<16xf32>
    %55 = vector.shape_cast %54 : vector<16xf32> to vector<16x1xf32>
    %56 = tpu.reciprocal %55 {approx = true} : vector<16x1xf32> -> vector<16x1xf32>
    %57 = vector.broadcast %56 : vector<16x1xf32> to vector<16x16xf32>
    %58 = arith.mulf %53, %57 : vector<16x16xf32>
    %cst_24 = arith.constant dense<0.000000e+00> : vector<16x8xf32>
    %59 = tpu.matmul %58, %46, %cst_24 {dimension_numbers = #tpu.dot_dimension_numbers<[1], [0], [0], [1], [0, 0, 1, 1], [], []>} : vector<16x16xf32>, vector<16x8xf32>, vector<16x8xf32> -> vector<16x8xf32>
    %60 = vector.extract_strided_slice %11 {offsets = [0, 24], sizes = [16, 8], strides = [1, 1]} : vector<16x96xf32> to vector<16x8xf32>
    %61 = vector.extract_strided_slice %11 {offsets = [0, 56], sizes = [16, 8], strides = [1, 1]} : vector<16x96xf32> to vector<16x8xf32>
    %62 = vector.extract_strided_slice %11 {offsets = [0, 88], sizes = [16, 8], strides = [1, 1]} : vector<16x96xf32> to vector<16x8xf32>
    %cst_25 = arith.constant dense<0.000000e+00> : vector<16x16xf32>
    %63 = tpu.matmul %60, %61, %cst_25 {dimension_numbers = #tpu.dot_dimension_numbers<[1], [1], [0], [0], [0, 0, 1, 0], [], []>} : vector<16x8xf32>, vector<16x8xf32>, vector<16x16xf32> -> vector<16x16xf32>
    %64 = arith.addf %63, %5 : vector<16x16xf32>
    %cst_26 = arith.constant dense<0xFF800000> : vector<16xf32>
    %65 = vector.multi_reduction <maximumf>, %64, %cst_26 [1] : vector<16x16xf32> to vector<16xf32>
    %66 = vector.shape_cast %65 : vector<16xf32> to vector<16x1xf32>
    %67 = vector.broadcast %66 : vector<16x1xf32> to vector<16x16xf32>
    %68 = arith.subf %64, %67 : vector<16x16xf32>
    %69 = math.exp %68 : vector<16x16xf32>
    %cst_27 = arith.constant dense<0.000000e+00> : vector<16xf32>
    %70 = vector.multi_reduction <add>, %69, %cst_27 [1] : vector<16x16xf32> to vector<16xf32>
    %71 = vector.shape_cast %70 : vector<16xf32> to vector<16x1xf32>
    %72 = tpu.reciprocal %71 {approx = true} : vector<16x1xf32> -> vector<16x1xf32>
    %73 = vector.broadcast %72 : vector<16x1xf32> to vector<16x16xf32>
    %74 = arith.mulf %69, %73 : vector<16x16xf32>
    %cst_28 = arith.constant dense<0.000000e+00> : vector<16x8xf32>
    %75 = tpu.matmul %74, %62, %cst_28 {dimension_numbers = #tpu.dot_dimension_numbers<[1], [0], [0], [1], [0, 0, 1, 1], [], []>} : vector<16x16xf32>, vector<16x8xf32>, vector<16x8xf32> -> vector<16x8xf32>
    %76 = tpu.concatenate %27, %43, %59, %75 in 1 : vector<16x8xf32>, vector<16x8xf32>, vector<16x8xf32>, vector<16x8xf32> -> vector<16x32xf32>
    %c0_29 = arith.constant 0 : index
    %c0_30 = arith.constant 0 : index
    %c0_31 = arith.constant 0 : index
    %77 = vector.load %arg6[%c0_29, %c0_30, %c0_31] : memref<2x32x32xf32, #tpu.memory_space<vmem>>, vector<1x32x32xf32>
    %78 = vector.shape_cast %77 : vector<1x32x32xf32> to vector<32x32xf32>
    %cst_32 = arith.constant dense<0.000000e+00> : vector<16x32xf32>
    %79 = tpu.matmul %76, %78, %cst_32 {dimension_numbers = #tpu.dot_dimension_numbers<[1], [0], [0], [1], [0, 0, 1, 1], [], []>} : vector<16x32xf32>, vector<32x32xf32>, vector<16x32xf32> -> vector<16x32xf32>
    %c0_33 = arith.constant 0 : index
    %c0_34 = arith.constant 0 : index
    %80 = vector.load %arg7[%c0_33, %c0_34] : memref<2x32xf32, #tpu.memory_space<vmem>>, vector<1x32xf32>
    %81 = vector.broadcast %80 : vector<1x32xf32> to vector<16x32xf32>
    %82 = arith.addf %79, %81 : vector<16x32xf32>
    %83 = arith.addf %4, %82 : vector<16x32xf32>
    %c0_35 = arith.constant 0 : index
    %c0_36 = arith.constant 0 : index
    %84 = vector.load %arg8[%c0_35, %c0_36] : memref<2x32xf32, #tpu.memory_space<vmem>>, vector<1x32xf32>
    %c0_37 = arith.constant 0 : index
    %c0_38 = arith.constant 0 : index
    %85 = vector.load %arg9[%c0_37, %c0_38] : memref<2x32xf32, #tpu.memory_space<vmem>>, vector<1x32xf32>
    %cst_39 = arith.constant dense<0.000000e+00> : vector<16xf32>
    %86 = vector.multi_reduction <add>, %83, %cst_39 [1] : vector<16x32xf32> to vector<16xf32>
    %87 = vector.shape_cast %86 : vector<16xf32> to vector<16x1xf32>
    %cst_40 = arith.constant 3.200000e+01 : f32
    %88 = vector.broadcast %cst_40 : f32 to vector<16x1xf32>
    %89 = arith.divf %87, %88 : vector<16x1xf32>
    %90 = vector.broadcast %89 : vector<16x1xf32> to vector<16x32xf32>
    %91 = arith.subf %83, %90 : vector<16x32xf32>
    %92 = arith.mulf %91, %91 : vector<16x32xf32>
    %cst_41 = arith.constant dense<0.000000e+00> : vector<16xf32>
    %93 = vector.multi_reduction <add>, %92, %cst_41 [1] : vector<16x32xf32> to vector<16xf32>
    %94 = vector.shape_cast %93 : vector<16xf32> to vector<16x1xf32>
    %cst_42 = arith.constant 3.200000e+01 : f32
    %95 = vector.broadcast %cst_42 : f32 to vector<16x1xf32>
    %96 = arith.divf %94, %95 : vector<16x1xf32>
    %97 = vector.broadcast %89 : vector<16x1xf32> to vector<16x32xf32>
    %98 = arith.subf %83, %97 : vector<16x32xf32>
    %cst_43 = arith.constant 9.99999974E-6 : f32
    %99 = vector.broadcast %cst_43 : f32 to vector<16x1xf32>
    %100 = arith.addf %96, %99 : vector<16x1xf32>
    %101 = math.rsqrt %100 : vector<16x1xf32>
    %102 = vector.broadcast %101 : vector<16x1xf32> to vector<16x32xf32>
    %103 = arith.mulf %98, %102 : vector<16x32xf32>
    %104 = vector.broadcast %84 : vector<1x32xf32> to vector<16x32xf32>
    %105 = arith.mulf %103, %104 : vector<16x32xf32>
    %106 = vector.broadcast %85 : vector<1x32xf32> to vector<16x32xf32>
    %107 = arith.addf %105, %106 : vector<16x32xf32>
    %c0_44 = arith.constant 0 : index
    %c0_45 = arith.constant 0 : index
    %c0_46 = arith.constant 0 : index
    %108 = vector.load %arg10[%c0_44, %c0_45, %c0_46] : memref<2x32x128xf32, #tpu.memory_space<vmem>>, vector<1x32x128xf32>
    %109 = vector.shape_cast %108 : vector<1x32x128xf32> to vector<32x128xf32>
    %cst_47 = arith.constant dense<0.000000e+00> : vector<16x128xf32>
    %110 = tpu.matmul %107, %109, %cst_47 {dimension_numbers = #tpu.dot_dimension_numbers<[1], [0], [0], [1], [0, 0, 1, 1], [], []>} : vector<16x32xf32>, vector<32x128xf32>, vector<16x128xf32> -> vector<16x128xf32>
    %c0_48 = arith.constant 0 : index
    %c0_49 = arith.constant 0 : index
    %111 = vector.load %arg11[%c0_48, %c0_49] : memref<2x128xf32, #tpu.memory_space<vmem>>, vector<1x128xf32>
    %112 = vector.broadcast %111 : vector<1x128xf32> to vector<16x128xf32>
    %113 = arith.addf %110, %112 : vector<16x128xf32>
    %cst_50 = arith.constant 0.000000e+00 : f32
    %114 = vector.broadcast %cst_50 : f32 to vector<16x128xf32>
    %115 = arith.maximumf %113, %114 : vector<16x128xf32>
    %c0_51 = arith.constant 0 : index
    %c0_52 = arith.constant 0 : index
    %c0_53 = arith.constant 0 : index
    %116 = vector.load %arg12[%c0_51, %c0_52, %c0_53] : memref<2x128x32xf32, #tpu.memory_space<vmem>>, vector<1x128x32xf32>
    %117 = vector.shape_cast %116 : vector<1x128x32xf32> to vector<128x32xf32>
    %cst_54 = arith.constant dense<0.000000e+00> : vector<16x32xf32>
    %118 = tpu.matmul %115, %117, %cst_54 {dimension_numbers = #tpu.dot_dimension_numbers<[1], [0], [0], [1], [0, 0, 1, 1], [], []>} : vector<16x128xf32>, vector<128x32xf32>, vector<16x32xf32> -> vector<16x32xf32>
    %c0_55 = arith.constant 0 : index
    %c0_56 = arith.constant 0 : index
    %119 = vector.load %arg13[%c0_55, %c0_56] : memref<2x32xf32, #tpu.memory_space<vmem>>, vector<1x32xf32>
    %120 = vector.broadcast %119 : vector<1x32xf32> to vector<16x32xf32>
    %121 = arith.addf %118, %120 : vector<16x32xf32>
    %122 = arith.addf %107, %121 : vector<16x32xf32>
    %c0_57 = arith.constant 0 : index
    %c0_58 = arith.constant 0 : index
    %123 = vector.load %arg14[%c0_57, %c0_58] : memref<2x32xf32, #tpu.memory_space<vmem>>, vector<1x32xf32>
    %c0_59 = arith.constant 0 : index
    %c0_60 = arith.constant 0 : index
    %124 = vector.load %arg15[%c0_59, %c0_60] : memref<2x32xf32, #tpu.memory_space<vmem>>, vector<1x32xf32>
    %cst_61 = arith.constant dense<0.000000e+00> : vector<16xf32>
    %125 = vector.multi_reduction <add>, %122, %cst_61 [1] : vector<16x32xf32> to vector<16xf32>
    %126 = vector.shape_cast %125 : vector<16xf32> to vector<16x1xf32>
    %cst_62 = arith.constant 3.200000e+01 : f32
    %127 = vector.broadcast %cst_62 : f32 to vector<16x1xf32>
    %128 = arith.divf %126, %127 : vector<16x1xf32>
    %129 = vector.broadcast %128 : vector<16x1xf32> to vector<16x32xf32>
    %130 = arith.subf %122, %129 : vector<16x32xf32>
    %131 = arith.mulf %130, %130 : vector<16x32xf32>
    %cst_63 = arith.constant dense<0.000000e+00> : vector<16xf32>
    %132 = vector.multi_reduction <add>, %131, %cst_63 [1] : vector<16x32xf32> to vector<16xf32>
    %133 = vector.shape_cast %132 : vector<16xf32> to vector<16x1xf32>
    %cst_64 = arith.constant 3.200000e+01 : f32
    %134 = vector.broadcast %cst_64 : f32 to vector<16x1xf32>
    %135 = arith.divf %133, %134 : vector<16x1xf32>
    %136 = vector.broadcast %128 : vector<16x1xf32> to vector<16x32xf32>
    %137 = arith.subf %122, %136 : vector<16x32xf32>
    %cst_65 = arith.constant 9.99999974E-6 : f32
    %138 = vector.broadcast %cst_65 : f32 to vector<16x1xf32>
    %139 = arith.addf %135, %138 : vector<16x1xf32>
    %140 = math.rsqrt %139 : vector<16x1xf32>
    %141 = vector.broadcast %140 : vector<16x1xf32> to vector<16x32xf32>
    %142 = arith.mulf %137, %141 : vector<16x32xf32>
    %143 = vector.broadcast %123 : vector<1x32xf32> to vector<16x32xf32>
    %144 = arith.mulf %142, %143 : vector<16x32xf32>
    %145 = vector.broadcast %124 : vector<1x32xf32> to vector<16x32xf32>
    %146 = arith.addf %144, %145 : vector<16x32xf32>
    %c1 = arith.constant 1 : index
    %c0_66 = arith.constant 0 : index
    %c0_67 = arith.constant 0 : index
    %147 = vector.load %arg4[%c1, %c0_66, %c0_67] : memref<2x32x96xf32, #tpu.memory_space<vmem>>, vector<1x32x96xf32>
    %148 = vector.shape_cast %147 : vector<1x32x96xf32> to vector<32x96xf32>
    %cst_68 = arith.constant dense<0.000000e+00> : vector<16x96xf32>
    %149 = tpu.matmul %146, %148, %cst_68 {dimension_numbers = #tpu.dot_dimension_numbers<[1], [0], [0], [1], [0, 0, 1, 1], [], []>} : vector<16x32xf32>, vector<32x96xf32>, vector<16x96xf32> -> vector<16x96xf32>
    %c1_69 = arith.constant 1 : index
    %c0_70 = arith.constant 0 : index
    %150 = vector.load %arg5[%c1_69, %c0_70] : memref<2x96xf32, #tpu.memory_space<vmem>>, vector<1x96xf32>
    %151 = vector.broadcast %150 : vector<1x96xf32> to vector<16x96xf32>
    %152 = arith.addf %149, %151 : vector<16x96xf32>
    %153 = vector.extract_strided_slice %152 {offsets = [0, 0], sizes = [16, 8], strides = [1, 1]} : vector<16x96xf32> to vector<16x8xf32>
    %154 = vector.extract_strided_slice %152 {offsets = [0, 32], sizes = [16, 8], strides = [1, 1]} : vector<16x96xf32> to vector<16x8xf32>
    %155 = vector.extract_strided_slice %152 {offsets = [0, 64], sizes = [16, 8], strides = [1, 1]} : vector<16x96xf32> to vector<16x8xf32>
    %cst_71 = arith.constant dense<0.000000e+00> : vector<16x16xf32>
    %156 = tpu.matmul %153, %154, %cst_71 {dimension_numbers = #tpu.dot_dimension_numbers<[1], [1], [0], [0], [0, 0, 1, 0], [], []>} : vector<16x8xf32>, vector<16x8xf32>, vector<16x16xf32> -> vector<16x16xf32>
    %157 = arith.addf %156, %5 : vector<16x16xf32>
    %cst_72 = arith.constant dense<0xFF800000> : vector<16xf32>
    %158 = vector.multi_reduction <maximumf>, %157, %cst_72 [1] : vector<16x16xf32> to vector<16xf32>
    %159 = vector.shape_cast %158 : vector<16xf32> to vector<16x1xf32>
    %160 = vector.broadcast %159 : vector<16x1xf32> to vector<16x16xf32>
    %161 = arith.subf %157, %160 : vector<16x16xf32>
    %162 = math.exp %161 : vector<16x16xf32>
    %cst_73 = arith.constant dense<0.000000e+00> : vector<16xf32>
    %163 = vector.multi_reduction <add>, %162, %cst_73 [1] : vector<16x16xf32> to vector<16xf32>
    %164 = vector.shape_cast %163 : vector<16xf32> to vector<16x1xf32>
    %165 = tpu.reciprocal %164 {approx = true} : vector<16x1xf32> -> vector<16x1xf32>
    %166 = vector.broadcast %165 : vector<16x1xf32> to vector<16x16xf32>
    %167 = arith.mulf %162, %166 : vector<16x16xf32>
    %cst_74 = arith.constant dense<0.000000e+00> : vector<16x8xf32>
    %168 = tpu.matmul %167, %155, %cst_74 {dimension_numbers = #tpu.dot_dimension_numbers<[1], [0], [0], [1], [0, 0, 1, 1], [], []>} : vector<16x16xf32>, vector<16x8xf32>, vector<16x8xf32> -> vector<16x8xf32>
    %169 = vector.extract_strided_slice %152 {offsets = [0, 8], sizes = [16, 8], strides = [1, 1]} : vector<16x96xf32> to vector<16x8xf32>
    %170 = vector.extract_strided_slice %152 {offsets = [0, 40], sizes = [16, 8], strides = [1, 1]} : vector<16x96xf32> to vector<16x8xf32>
    %171 = vector.extract_strided_slice %152 {offsets = [0, 72], sizes = [16, 8], strides = [1, 1]} : vector<16x96xf32> to vector<16x8xf32>
    %cst_75 = arith.constant dense<0.000000e+00> : vector<16x16xf32>
    %172 = tpu.matmul %169, %170, %cst_75 {dimension_numbers = #tpu.dot_dimension_numbers<[1], [1], [0], [0], [0, 0, 1, 0], [], []>} : vector<16x8xf32>, vector<16x8xf32>, vector<16x16xf32> -> vector<16x16xf32>
    %173 = arith.addf %172, %5 : vector<16x16xf32>
    %cst_76 = arith.constant dense<0xFF800000> : vector<16xf32>
    %174 = vector.multi_reduction <maximumf>, %173, %cst_76 [1] : vector<16x16xf32> to vector<16xf32>
    %175 = vector.shape_cast %174 : vector<16xf32> to vector<16x1xf32>
    %176 = vector.broadcast %175 : vector<16x1xf32> to vector<16x16xf32>
    %177 = arith.subf %173, %176 : vector<16x16xf32>
    %178 = math.exp %177 : vector<16x16xf32>
    %cst_77 = arith.constant dense<0.000000e+00> : vector<16xf32>
    %179 = vector.multi_reduction <add>, %178, %cst_77 [1] : vector<16x16xf32> to vector<16xf32>
    %180 = vector.shape_cast %179 : vector<16xf32> to vector<16x1xf32>
    %181 = tpu.reciprocal %180 {approx = true} : vector<16x1xf32> -> vector<16x1xf32>
    %182 = vector.broadcast %181 : vector<16x1xf32> to vector<16x16xf32>
    %183 = arith.mulf %178, %182 : vector<16x16xf32>
    %cst_78 = arith.constant dense<0.000000e+00> : vector<16x8xf32>
    %184 = tpu.matmul %183, %171, %cst_78 {dimension_numbers = #tpu.dot_dimension_numbers<[1], [0], [0], [1], [0, 0, 1, 1], [], []>} : vector<16x16xf32>, vector<16x8xf32>, vector<16x8xf32> -> vector<16x8xf32>
    %185 = vector.extract_strided_slice %152 {offsets = [0, 16], sizes = [16, 8], strides = [1, 1]} : vector<16x96xf32> to vector<16x8xf32>
    %186 = vector.extract_strided_slice %152 {offsets = [0, 48], sizes = [16, 8], strides = [1, 1]} : vector<16x96xf32> to vector<16x8xf32>
    %187 = vector.extract_strided_slice %152 {offsets = [0, 80], sizes = [16, 8], strides = [1, 1]} : vector<16x96xf32> to vector<16x8xf32>
    %cst_79 = arith.constant dense<0.000000e+00> : vector<16x16xf32>
    %188 = tpu.matmul %185, %186, %cst_79 {dimension_numbers = #tpu.dot_dimension_numbers<[1], [1], [0], [0], [0, 0, 1, 0], [], []>} : vector<16x8xf32>, vector<16x8xf32>, vector<16x16xf32> -> vector<16x16xf32>
    %189 = arith.addf %188, %5 : vector<16x16xf32>
    %cst_80 = arith.constant dense<0xFF800000> : vector<16xf32>
    %190 = vector.multi_reduction <maximumf>, %189, %cst_80 [1] : vector<16x16xf32> to vector<16xf32>
    %191 = vector.shape_cast %190 : vector<16xf32> to vector<16x1xf32>
    %192 = vector.broadcast %191 : vector<16x1xf32> to vector<16x16xf32>
    %193 = arith.subf %189, %192 : vector<16x16xf32>
    %194 = math.exp %193 : vector<16x16xf32>
    %cst_81 = arith.constant dense<0.000000e+00> : vector<16xf32>
    %195 = vector.multi_reduction <add>, %194, %cst_81 [1] : vector<16x16xf32> to vector<16xf32>
    %196 = vector.shape_cast %195 : vector<16xf32> to vector<16x1xf32>
    %197 = tpu.reciprocal %196 {approx = true} : vector<16x1xf32> -> vector<16x1xf32>
    %198 = vector.broadcast %197 : vector<16x1xf32> to vector<16x16xf32>
    %199 = arith.mulf %194, %198 : vector<16x16xf32>
    %cst_82 = arith.constant dense<0.000000e+00> : vector<16x8xf32>
    %200 = tpu.matmul %199, %187, %cst_82 {dimension_numbers = #tpu.dot_dimension_numbers<[1], [0], [0], [1], [0, 0, 1, 1], [], []>} : vector<16x16xf32>, vector<16x8xf32>, vector<16x8xf32> -> vector<16x8xf32>
    %201 = vector.extract_strided_slice %152 {offsets = [0, 24], sizes = [16, 8], strides = [1, 1]} : vector<16x96xf32> to vector<16x8xf32>
    %202 = vector.extract_strided_slice %152 {offsets = [0, 56], sizes = [16, 8], strides = [1, 1]} : vector<16x96xf32> to vector<16x8xf32>
    %203 = vector.extract_strided_slice %152 {offsets = [0, 88], sizes = [16, 8], strides = [1, 1]} : vector<16x96xf32> to vector<16x8xf32>
    %cst_83 = arith.constant dense<0.000000e+00> : vector<16x16xf32>
    %204 = tpu.matmul %201, %202, %cst_83 {dimension_numbers = #tpu.dot_dimension_numbers<[1], [1], [0], [0], [0, 0, 1, 0], [], []>} : vector<16x8xf32>, vector<16x8xf32>, vector<16x16xf32> -> vector<16x16xf32>
    %205 = arith.addf %204, %5 : vector<16x16xf32>
    %cst_84 = arith.constant dense<0xFF800000> : vector<16xf32>
    %206 = vector.multi_reduction <maximumf>, %205, %cst_84 [1] : vector<16x16xf32> to vector<16xf32>
    %207 = vector.shape_cast %206 : vector<16xf32> to vector<16x1xf32>
    %208 = vector.broadcast %207 : vector<16x1xf32> to vector<16x16xf32>
    %209 = arith.subf %205, %208 : vector<16x16xf32>
    %210 = math.exp %209 : vector<16x16xf32>
    %cst_85 = arith.constant dense<0.000000e+00> : vector<16xf32>
    %211 = vector.multi_reduction <add>, %210, %cst_85 [1] : vector<16x16xf32> to vector<16xf32>
    %212 = vector.shape_cast %211 : vector<16xf32> to vector<16x1xf32>
    %213 = tpu.reciprocal %212 {approx = true} : vector<16x1xf32> -> vector<16x1xf32>
    %214 = vector.broadcast %213 : vector<16x1xf32> to vector<16x16xf32>
    %215 = arith.mulf %210, %214 : vector<16x16xf32>
    %cst_86 = arith.constant dense<0.000000e+00> : vector<16x8xf32>
    %216 = tpu.matmul %215, %203, %cst_86 {dimension_numbers = #tpu.dot_dimension_numbers<[1], [0], [0], [1], [0, 0, 1, 1], [], []>} : vector<16x16xf32>, vector<16x8xf32>, vector<16x8xf32> -> vector<16x8xf32>
    %217 = tpu.concatenate %168, %184, %200, %216 in 1 : vector<16x8xf32>, vector<16x8xf32>, vector<16x8xf32>, vector<16x8xf32> -> vector<16x32xf32>
    %c1_87 = arith.constant 1 : index
    %c0_88 = arith.constant 0 : index
    %c0_89 = arith.constant 0 : index
    %218 = vector.load %arg6[%c1_87, %c0_88, %c0_89] : memref<2x32x32xf32, #tpu.memory_space<vmem>>, vector<1x32x32xf32>
    %219 = vector.shape_cast %218 : vector<1x32x32xf32> to vector<32x32xf32>
    %cst_90 = arith.constant dense<0.000000e+00> : vector<16x32xf32>
    %220 = tpu.matmul %217, %219, %cst_90 {dimension_numbers = #tpu.dot_dimension_numbers<[1], [0], [0], [1], [0, 0, 1, 1], [], []>} : vector<16x32xf32>, vector<32x32xf32>, vector<16x32xf32> -> vector<16x32xf32>
    %c1_91 = arith.constant 1 : index
    %c0_92 = arith.constant 0 : index
    %221 = vector.load %arg7[%c1_91, %c0_92] : memref<2x32xf32, #tpu.memory_space<vmem>>, vector<1x32xf32>
    %222 = vector.broadcast %221 : vector<1x32xf32> to vector<16x32xf32>
    %223 = arith.addf %220, %222 : vector<16x32xf32>
    %224 = arith.addf %146, %223 : vector<16x32xf32>
    %c1_93 = arith.constant 1 : index
    %c0_94 = arith.constant 0 : index
    %225 = vector.load %arg8[%c1_93, %c0_94] : memref<2x32xf32, #tpu.memory_space<vmem>>, vector<1x32xf32>
    %c1_95 = arith.constant 1 : index
    %c0_96 = arith.constant 0 : index
    %226 = vector.load %arg9[%c1_95, %c0_96] : memref<2x32xf32, #tpu.memory_space<vmem>>, vector<1x32xf32>
    %cst_97 = arith.constant dense<0.000000e+00> : vector<16xf32>
    %227 = vector.multi_reduction <add>, %224, %cst_97 [1] : vector<16x32xf32> to vector<16xf32>
    %228 = vector.shape_cast %227 : vector<16xf32> to vector<16x1xf32>
    %cst_98 = arith.constant 3.200000e+01 : f32
    %229 = vector.broadcast %cst_98 : f32 to vector<16x1xf32>
    %230 = arith.divf %228, %229 : vector<16x1xf32>
    %231 = vector.broadcast %230 : vector<16x1xf32> to vector<16x32xf32>
    %232 = arith.subf %224, %231 : vector<16x32xf32>
    %233 = arith.mulf %232, %232 : vector<16x32xf32>
    %cst_99 = arith.constant dense<0.000000e+00> : vector<16xf32>
    %234 = vector.multi_reduction <add>, %233, %cst_99 [1] : vector<16x32xf32> to vector<16xf32>
    %235 = vector.shape_cast %234 : vector<16xf32> to vector<16x1xf32>
    %cst_100 = arith.constant 3.200000e+01 : f32
    %236 = vector.broadcast %cst_100 : f32 to vector<16x1xf32>
    %237 = arith.divf %235, %236 : vector<16x1xf32>
    %238 = vector.broadcast %230 : vector<16x1xf32> to vector<16x32xf32>
    %239 = arith.subf %224, %238 : vector<16x32xf32>
    %cst_101 = arith.constant 9.99999974E-6 : f32
    %240 = vector.broadcast %cst_101 : f32 to vector<16x1xf32>
    %241 = arith.addf %237, %240 : vector<16x1xf32>
    %242 = math.rsqrt %241 : vector<16x1xf32>
    %243 = vector.broadcast %242 : vector<16x1xf32> to vector<16x32xf32>
    %244 = arith.mulf %239, %243 : vector<16x32xf32>
    %245 = vector.broadcast %225 : vector<1x32xf32> to vector<16x32xf32>
    %246 = arith.mulf %244, %245 : vector<16x32xf32>
    %247 = vector.broadcast %226 : vector<1x32xf32> to vector<16x32xf32>
    %248 = arith.addf %246, %247 : vector<16x32xf32>
    %c1_102 = arith.constant 1 : index
    %c0_103 = arith.constant 0 : index
    %c0_104 = arith.constant 0 : index
    %249 = vector.load %arg10[%c1_102, %c0_103, %c0_104] : memref<2x32x128xf32, #tpu.memory_space<vmem>>, vector<1x32x128xf32>
    %250 = vector.shape_cast %249 : vector<1x32x128xf32> to vector<32x128xf32>
    %cst_105 = arith.constant dense<0.000000e+00> : vector<16x128xf32>
    %251 = tpu.matmul %248, %250, %cst_105 {dimension_numbers = #tpu.dot_dimension_numbers<[1], [0], [0], [1], [0, 0, 1, 1], [], []>} : vector<16x32xf32>, vector<32x128xf32>, vector<16x128xf32> -> vector<16x128xf32>
    %c1_106 = arith.constant 1 : index
    %c0_107 = arith.constant 0 : index
    %252 = vector.load %arg11[%c1_106, %c0_107] : memref<2x128xf32, #tpu.memory_space<vmem>>, vector<1x128xf32>
    %253 = vector.broadcast %252 : vector<1x128xf32> to vector<16x128xf32>
    %254 = arith.addf %251, %253 : vector<16x128xf32>
    %cst_108 = arith.constant 0.000000e+00 : f32
    %255 = vector.broadcast %cst_108 : f32 to vector<16x128xf32>
    %256 = arith.maximumf %254, %255 : vector<16x128xf32>
    %c1_109 = arith.constant 1 : index
    %c0_110 = arith.constant 0 : index
    %c0_111 = arith.constant 0 : index
    %257 = vector.load %arg12[%c1_109, %c0_110, %c0_111] : memref<2x128x32xf32, #tpu.memory_space<vmem>>, vector<1x128x32xf32>
    %258 = vector.shape_cast %257 : vector<1x128x32xf32> to vector<128x32xf32>
    %cst_112 = arith.constant dense<0.000000e+00> : vector<16x32xf32>
    %259 = tpu.matmul %256, %258, %cst_112 {dimension_numbers = #tpu.dot_dimension_numbers<[1], [0], [0], [1], [0, 0, 1, 1], [], []>} : vector<16x128xf32>, vector<128x32xf32>, vector<16x32xf32> -> vector<16x32xf32>
    %c1_113 = arith.constant 1 : index
    %c0_114 = arith.constant 0 : index
    %260 = vector.load %arg13[%c1_113, %c0_114] : memref<2x32xf32, #tpu.memory_space<vmem>>, vector<1x32xf32>
    %261 = vector.broadcast %260 : vector<1x32xf32> to vector<16x32xf32>
    %262 = arith.addf %259, %261 : vector<16x32xf32>
    %263 = arith.addf %248, %262 : vector<16x32xf32>
    %c1_115 = arith.constant 1 : index
    %c0_116 = arith.constant 0 : index
    %264 = vector.load %arg14[%c1_115, %c0_116] : memref<2x32xf32, #tpu.memory_space<vmem>>, vector<1x32xf32>
    %c1_117 = arith.constant 1 : index
    %c0_118 = arith.constant 0 : index
    %265 = vector.load %arg15[%c1_117, %c0_118] : memref<2x32xf32, #tpu.memory_space<vmem>>, vector<1x32xf32>
    %cst_119 = arith.constant dense<0.000000e+00> : vector<16xf32>
    %266 = vector.multi_reduction <add>, %263, %cst_119 [1] : vector<16x32xf32> to vector<16xf32>
    %267 = vector.shape_cast %266 : vector<16xf32> to vector<16x1xf32>
    %cst_120 = arith.constant 3.200000e+01 : f32
    %268 = vector.broadcast %cst_120 : f32 to vector<16x1xf32>
    %269 = arith.divf %267, %268 : vector<16x1xf32>
    %270 = vector.broadcast %269 : vector<16x1xf32> to vector<16x32xf32>
    %271 = arith.subf %263, %270 : vector<16x32xf32>
    %272 = arith.mulf %271, %271 : vector<16x32xf32>
    %cst_121 = arith.constant dense<0.000000e+00> : vector<16xf32>
    %273 = vector.multi_reduction <add>, %272, %cst_121 [1] : vector<16x32xf32> to vector<16xf32>
    %274 = vector.shape_cast %273 : vector<16xf32> to vector<16x1xf32>
    %cst_122 = arith.constant 3.200000e+01 : f32
    %275 = vector.broadcast %cst_122 : f32 to vector<16x1xf32>
    %276 = arith.divf %274, %275 : vector<16x1xf32>
    %277 = vector.broadcast %269 : vector<16x1xf32> to vector<16x32xf32>
    %278 = arith.subf %263, %277 : vector<16x32xf32>
    %cst_123 = arith.constant 9.99999974E-6 : f32
    %279 = vector.broadcast %cst_123 : f32 to vector<16x1xf32>
    %280 = arith.addf %276, %279 : vector<16x1xf32>
    %281 = math.rsqrt %280 : vector<16x1xf32>
    %282 = vector.broadcast %281 : vector<16x1xf32> to vector<16x32xf32>
    %283 = arith.mulf %278, %282 : vector<16x32xf32>
    %284 = vector.broadcast %264 : vector<1x32xf32> to vector<16x32xf32>
    %285 = arith.mulf %283, %284 : vector<16x32xf32>
    %286 = vector.broadcast %265 : vector<1x32xf32> to vector<16x32xf32>
    %287 = arith.addf %285, %286 : vector<16x32xf32>
    %c0_124 = arith.constant 0 : index
    %c0_125 = arith.constant 0 : index
    %288 = vector.load %arg16[%c0_124, %c0_125] : memref<1x32xf32, #tpu.memory_space<vmem>>, vector<1x32xf32>
    %289 = vector.broadcast %288 : vector<1x32xf32> to vector<16x32xf32>
    %290 = arith.mulf %287, %289 : vector<16x32xf32>
    %cst_126 = arith.constant dense<0.000000e+00> : vector<16xf32>
    %291 = vector.multi_reduction <add>, %290, %cst_126 [1] : vector<16x32xf32> to vector<16xf32>
    %292 = vector.shape_cast %291 : vector<16xf32> to vector<16x1xf32>
    %c0_127 = arith.constant 0 : index
    %c0_128 = arith.constant 0 : index
    %293 = vector.load %arg17[%c0_127, %c0_128] : memref<1x1xf32, #tpu.memory_space<vmem>>, vector<1x1xf32>
    %294 = vector.broadcast %293 : vector<1x1xf32> to vector<16x1xf32>
    %295 = arith.addf %292, %294 : vector<16x1xf32>
    %296 = vector.shape_cast %295 : vector<16x1xf32> to vector<2x8xf32>
    %c0_129 = arith.constant 0 : index
    %c0_130 = arith.constant 0 : index
    %297 = vector.load %arg18[%c0_129, %c0_130] : memref<2x8xf32, #tpu.memory_space<vmem>>, vector<2x8xf32>
    tpu.vector_store %arg18[%c0_129, %c0_130], %296 {strides = array<i32>} : memref<2x8xf32, #tpu.memory_space<vmem>>, vector<2x8xf32>,
    return
  }
}

</mosaic_0001>

<llo_original>
// kernel: tpu_custom_call.1
$region0: #{tpu_custom_call.1}
  #allocation0 [shape = 'u32[]', space=smem, size = 0x4, offset = 0x4, fixed_abs, tag = 'smem constant byte address 0x4 - core index']
  #allocation1 [shape = 'u32[144,128]{1,0:T(1,128)}', space=vmem, size = 0x12000, scoped, tag = 'internal scratch']
  #allocation2 [shape = 'f32[1,1]{1,0:T(1,128)S(1)}', space=vmem, size = 0x200, scoped, tag = 'scoped memory for tpu_custom_call.1']
  %s0 = inlined_call_operand.vmem [shape: f32[16,16], index: 0, kind: input, shape index: {}]
  %s1 = inlined_call_operand.vmem [shape: f32[16,32], index: 1, kind: input, shape index: {}]
  %s2 = inlined_call_operand.vmem [shape: f32[16,16], index: 2, kind: input, shape index: {}]
  %s3 = inlined_call_operand.vmem [shape: f32[16,32], index: 3, kind: input, shape index: {}]
  %s4 = inlined_call_operand.vmem [shape: f32[2,32,96], index: 4, kind: input, shape index: {}]
  %s5 = inlined_call_operand.vmem [shape: f32[2,96], index: 5, kind: input, shape index: {}]
  %s6 = inlined_call_operand.vmem [shape: f32[2,32,32], index: 6, kind: input, shape index: {}]
  %s7 = inlined_call_operand.vmem [shape: f32[2,32], index: 7, kind: input, shape index: {}]
  %s8 = inlined_call_operand.vmem [shape: f32[2,32], index: 8, kind: input, shape index: {}]
  %s9 = inlined_call_operand.vmem [shape: f32[2,32], index: 9, kind: input, shape index: {}]
  %s10 = inlined_call_operand.vmem [shape: f32[2,32,128], index: 10, kind: input, shape index: {}]
  %s11 = inlined_call_operand.vmem [shape: f32[2,128], index: 11, kind: input, shape index: {}]
  %s12 = inlined_call_operand.vmem [shape: f32[2,128,32], index: 12, kind: input, shape index: {}]
  %s13 = inlined_call_operand.vmem [shape: f32[2,32], index: 13, kind: input, shape index: {}]
  %s14 = inlined_call_operand.vmem [shape: f32[2,32], index: 14, kind: input, shape index: {}]
  %s15 = inlined_call_operand.vmem [shape: f32[2,32], index: 15, kind: input, shape index: {}]
  %s16 = inlined_call_operand.vmem [shape: f32[1,32], index: 16, kind: input, shape index: {}]
  %s17 = inlined_call_operand.<no memory space> [shape: f32[1,1], index: 17, kind: input, shape index: {}]
  %s18 = inlined_call_operand.hbm [shape: f32[2,8], index: 18, kind: output, shape index: {}]
  %s19 = sld [smem:[#allocation0]]
  $region82: #{tpu_custom_call.1} parent=0
    _
  %s21 = ssub.s32 1, %s19
  %s22 = scalar_select 0, %s21, %s19
  %v23 = vstv %s17
  %24 = vst [vmem:[#allocation2] sm:$0x1] %v23
  $region1: #{tpu_custom_call.1} parent=0
    #allocation3 [shape = 'u8[1024]{0}', space=vmem, size = 0x400, scoped, tag = 'output window, operand 0, single buffered']
    #allocation4 [shape = 's32[1]{0}', space=sflag, size = 0x4, scoped, tag = 'scoped memory for tpu_custom_call.1']
    %25 = vsyncpa [#allocation4], 0
    // Predicated region
    $region2: #{tpu_custom_call.1} parent=1 // pred_check
      _
    $region3: #{tpu_custom_call.1} parent=1 // pred_check_branch
      %27 = sbr.rel (0) target = $region5
    $region4: #{tpu_custom_call.1} parent=1 // pred_region
      _
    $region5: #{tpu_custom_call.1} parent=1 // pred_fallthru
      _
    // Predicated region
    $region6: #{tpu_custom_call.1} parent=1 // pred_check
      _
    $region7: #{tpu_custom_call.1} parent=1 // pred_check_branch
      %29 = sbr.rel (0) target = $region9
    $region8: #{tpu_custom_call.1} parent=1 // pred_region
      _
    $region9: #{tpu_custom_call.1} parent=1 // pred_fallthru
      _
    // Predicated region
    $region10: #{tpu_custom_call.1} parent=1 // pred_check
      _
    $region11: #{tpu_custom_call.1} parent=1 // pred_check_branch
      %31 = sbr.rel (0) target = $region13
    $region12: #{tpu_custom_call.1} parent=1 // pred_region
      _
    $region13: #{tpu_custom_call.1} parent=1 // pred_fallthru
      _
    // Predicated region
    $region14: #{tpu_custom_call.1} parent=1 // pred_check
      _
    $region15: #{tpu_custom_call.1} parent=1 // pred_check_branch
      %33 = sbr.rel (0) target = $region17
    $region16: #{tpu_custom_call.1} parent=1 // pred_region
      _
    $region17: #{tpu_custom_call.1} parent=1 // pred_fallthru
      _
    // Predicated region
    $region18: #{tpu_custom_call.1} parent=1 // pred_check
      _
    $region19: #{tpu_custom_call.1} parent=1 // pred_check_branch
      %35 = sbr.rel (0) target = $region21
    $region20: #{tpu_custom_call.1} parent=1 // pred_region
      _
    $region21: #{tpu_custom_call.1} parent=1 // pred_fallthru
      _
    // Predicated region
    $region22: #{tpu_custom_call.1} parent=1 // pred_check
      _
    $region23: #{tpu_custom_call.1} parent=1 // pred_check_branch
      %37 = sbr.rel (0) target = $region25
    $region24: #{tpu_custom_call.1} parent=1 // pred_region
      _
    $region25: #{tpu_custom_call.1} parent=1 // pred_fallthru
      _
    // Predicated region
    $region26: #{tpu_custom_call.1} parent=1 // pred_check
      _
    $region27: #{tpu_custom_call.1} parent=1 // pred_check_branch
      %39 = sbr.rel (0) target = $region29
    $region28: #{tpu_custom_call.1} parent=1 // pred_region
      _
    $region29: #{tpu_custom_call.1} parent=1 // pred_fallthru
      _
    // Predicated region
    $region30: #{tpu_custom_call.1} parent=1 // pred_check
      _
    $region31: #{tpu_custom_call.1} parent=1 // pred_check_branch
      %41 = sbr.rel (0) target = $region33
    $region32: #{tpu_custom_call.1} parent=1 // pred_region
      _
    $region33: #{tpu_custom_call.1} parent=1 // pred_fallthru
      _
    // Predicated region
    $region34: #{tpu_custom_call.1} parent=1 // pred_check
      _
    $region35: #{tpu_custom_call.1} parent=1 // pred_check_branch
      %43 = sbr.rel (0) target = $region37
    $region36: #{tpu_custom_call.1} parent=1 // pred_region
      _
    $region37: #{tpu_custom_call.1} parent=1 // pred_fallthru
      _
    // Predicated region
    $region38: #{tpu_custom_call.1} parent=1 // pred_check
      _
    $region39: #{tpu_custom_call.1} parent=1 // pred_check_branch
      %45 = sbr.rel (0) target = $region41
    $region40: #{tpu_custom_call.1} parent=1 // pred_region
      _
    $region41: #{tpu_custom_call.1} parent=1 // pred_fallthru
      _
    // Predicated region
    $region42: #{tpu_custom_call.1} parent=1 // pred_check
      _
    $region43: #{tpu_custom_call.1} parent=1 // pred_check_branch
      %47 = sbr.rel (0) target = $region45
    $region44: #{tpu_custom_call.1} parent=1 // pred_region
      _
    $region45: #{tpu_custom_call.1} parent=1 // pred_fallthru
      _
    // Predicated region
    $region46: #{tpu_custom_call.1} parent=1 // pred_check
      _
    $region47: #{tpu_custom_call.1} parent=1 // pred_check_branch
      %49 = sbr.rel (0) target = $region49
    $region48: #{tpu_custom_call.1} parent=1 // pred_region
      _
    $region49: #{tpu_custom_call.1} parent=1 // pred_fallthru
      _
    // Predicated region
    $region50: #{tpu_custom_call.1} parent=1 // pred_check
      _
    $region51: #{tpu_custom_call.1} parent=1 // pred_check_branch
      %51 = sbr.rel (0) target = $region53
    $region52: #{tpu_custom_call.1} parent=1 // pred_region
      _
    $region53: #{tpu_custom_call.1} parent=1 // pred_fallthru
      _
    // Predicated region
    $region54: #{tpu_custom_call.1} parent=1 // pred_check
      _
    $region55: #{tpu_custom_call.1} parent=1 // pred_check_branch
      %53 = sbr.rel (0) target = $region57
    $region56: #{tpu_custom_call.1} parent=1 // pred_region
      _
    $region57: #{tpu_custom_call.1} parent=1 // pred_fallthru
      _
    // Predicated region
    $region58: #{tpu_custom_call.1} parent=1 // pred_check
      _
    $region59: #{tpu_custom_call.1} parent=1 // pred_check_branch
      %55 = sbr.rel (0) target = $region61
    $region60: #{tpu_custom_call.1} parent=1 // pred_region
      _
    $region61: #{tpu_custom_call.1} parent=1 // pred_fallthru
      _
    // Predicated region
    $region62: #{tpu_custom_call.1} parent=1 // pred_check
      _
    $region63: #{tpu_custom_call.1} parent=1 // pred_check_branch
      %57 = sbr.rel (0) target = $region65
    $region64: #{tpu_custom_call.1} parent=1 // pred_region
      _
    $region65: #{tpu_custom_call.1} parent=1 // pred_fallthru
      _
    // Predicated region
    $region66: #{tpu_custom_call.1} parent=1 // pred_check
      _
    $region67: #{tpu_custom_call.1} parent=1 // pred_check_branch
      %59 = sbr.rel (0) target = $region69
    $region68: #{tpu_custom_call.1} parent=1 // pred_region
      _
    $region69: #{tpu_custom_call.1} parent=1 // pred_fallthru
      _
    // Predicated region
    $region70: #{tpu_custom_call.1} parent=1 // pred_check
      _
    $region71: #{tpu_custom_call.1} parent=1 // pred_check_branch
      %61 = sbr.rel (0) target = $region73
    $region72: #{tpu_custom_call.1} parent=1 // pred_region
      _
    $region73: #{tpu_custom_call.1} parent=1 // pred_fallthru
      _
    %v62 = vld [vmem:[%s0] sm:$0xff]
    %v63 = vld [vmem:[%s0 + $0x8] sm:$0xff]
    %v64 = vld [vmem:[%s3] sm:$0xff]
    %v65 = vld [vmem:[%s3 + $0x8] sm:$0xff]
    %v66 = vld [vmem:[%s1] sm:$0xff]
    %v67 = vld [vmem:[%s1 + $0x8] sm:$0xff]
    %vm68 = vcmask 130048
    %v70 = vsel %vm68, %v62, 0
    %v73 = vsel %vm68, %v63, 0
    %75 = vmatprep.subr.mxu0 0.0
    %76 = vmatpush1.msra.mxu0 0.0
    %77 = vmatprep.subr.mxu0 0.0
    %78 = vmatpush1.msra.mxu0 0.0
    %79 = vmatprep.subr.mxu0 0.0
    %80 = vmatpush1.msra.mxu0 0.0
    %81 = vmatprep.subr.mxu0 0.0
    %82 = vmatpush1.msra.mxu0 0.0
    %83 = vmatprep.subr.mxu0 0.0
    %84 = vmatpush1.msra.mxu0 0.0
    %85 = vmatprep.subr.mxu0 0.0
    %86 = vmatpush1.msra.mxu0 0.0
    %87 = vmatprep.subr.mxu0 0.0
    %88 = vmatpush1.msra.mxu0 0.0
    %89 = vmatprep.subr.mxu0 0.0
    %90 = vmatpush1.msra.mxu0 0.0
    %91 = vmatprep.subr.mxu0 0.0
    %92 = vmatpush1.msra.mxu0 0.0
    %93 = vmatprep.subr.mxu0 0.0
    %94 = vmatpush1.msra.mxu0 0.0
    %95 = vmatprep.subr.mxu0 0.0
    %96 = vmatpush1.msra.mxu0 0.0
    %97 = vmatprep.subr.mxu0 0.0
    %98 = vmatpush1.msra.mxu0 0.0
    %99 = vmatprep.subr.mxu0 0.0
    %100 = vmatpush1.msra.mxu0 0.0
    %101 = vmatprep.subr.mxu0 0.0
    %102 = vmatpush1.msra.mxu0 0.0
    %103 = vmatprep.subr.mxu0 0.0
    %104 = vmatpush1.msra.mxu0 %v65
    %105 = vmatprep.subr.mxu0 0.0
    %106 = vmatpush1.msra.mxu0 %v64
    %107 = vmatprep.subr.mxu0 0.0
    %108 = vmatpush2.msra.mxu0 0.0
    %109 = vmatprep.subr.mxu0 0.0
    %110 = vmatpush2.msra.mxu0 0.0
    %111 = vmatprep.subr.mxu0 0.0
    %112 = vmatpush2.msra.mxu0 0.0
    %113 = vmatprep.subr.mxu0 0.0
    %114 = vmatpush2.msra.mxu0 0.0
    %115 = vmatprep.subr.mxu0 0.0
    %116 = vmatpush2.msra.mxu0 0.0
    %117 = vmatprep.subr.mxu0 0.0
    %118 = vmatpush2.msra.mxu0 0.0
    %119 = vmatprep.subr.mxu0 0.0
    %120 = vmatpush2.msra.mxu0 0.0
    %121 = vmatprep.subr.mxu0 0.0
    %122 = vmatpush2.msra.mxu0 0.0
    %123 = vmatprep.subr.mxu0 0.0
    %124 = vmatpush2.msra.mxu0 0.0
    %125 = vmatprep.subr.mxu0 0.0
    %126 = vmatpush2.msra.mxu0 0.0
    %127 = vmatprep.subr.mxu0 0.0
    %128 = vmatpush2.msra.mxu0 0.0
    %129 = vmatprep.subr.mxu0 0.0
    %130 = vmatpush2.msra.mxu0 0.0
    %131 = vmatprep.subr.mxu0 0.0
    %132 = vmatpush2.msra.mxu0 0.0
    %133 = vmatprep.subr.mxu0 0.0
    %134 = vmatpush2.msra.mxu0 0.0
    %135 = vmatprep.subr.mxu0 0.0
    %136 = vmatpush2.msra.mxu0 0.0
    %137 = vmatprep.subr.mxu0 0.0
    %138 = vmatpush2.msra.mxu0 0.0
    %139 = vmatprep.mubr.f32.mxu0 0.0
    %140 = vmatmul.mubr.f32.gmra.mxu0 %v70
    %v141 = vpop.f32.mrf.mxu0
    %v142 = vadd.f32 %v66, %v141
    %v143 = vpop.f32.mrf.mxu0
    %144 = vmatprep.mubr.f32.mxu0 0.0
    %145 = vmatmul.mubr.f32.gmra.mxu0 %v73
    %v146 = vpop.f32.mrf.mxu0
    %v147 = vadd.f32 %v67, %v146
    %v148 = vpop.f32.mrf.mxu0
    %149 = vdwg.mxu0
    %v150 = vld [vmem:[%s2] sm:$0xff]
    %v151 = vld [vmem:[%s2 + $0x8] sm:$0xff]
    %v152 = vld [vmem:[%s4] sm:$0xff]
    %v153 = vld [vmem:[%s4 + $0x8] sm:$0xff]
    %v154 = vld [vmem:[%s4 + $0x10] sm:$0xff]
    %v155 = vld [vmem:[%s4 + $0x18] sm:$0xff]
    %v156 = vld [vmem:[%s5] sm:$0x1]
    %v157 = vlaneseq
    %v158 = vshrl.u32 %v157, 7
    %v159 = vsub.s32 0, %v158
    %v160 = vrot.slane %v156, %v159
    %vm161 = vcmask 261120
    %v163 = vsel %vm161, %v142, 0
    %v166 = vsel %vm161, %v147, 0
    %168 = vmatprep.subr.mxu0 0.0
    %169 = vmatpush1.msra.mxu0 0.0
    %170 = vmatprep.subr.mxu0 0.0
    %171 = vmatpush1.msra.mxu0 0.0
    %172 = vmatprep.subr.mxu0 0.0
    %173 = vmatpush1.msra.mxu0 0.0
    %174 = vmatprep.subr.mxu0 0.0
    %175 = vmatpush1.msra.mxu0 0.0
    %176 = vmatprep.subr.mxu0 0.0
    %177 = vmatpush1.msra.mxu0 0.0
    %178 = vmatprep.subr.mxu0 0.0
    %179 = vmatpush1.msra.mxu0 0.0
    %180 = vmatprep.subr.mxu0 0.0
    %181 = vmatpush1.msra.mxu0 0.0
    %182 = vmatprep.subr.mxu0 0.0
    %183 = vmatpush1.msra.mxu0 0.0
    %184 = vmatprep.subr.mxu0 0.0
    %185 = vmatpush1.msra.mxu0 0.0
    %186 = vmatprep.subr.mxu0 0.0
    %187 = vmatpush1.msra.mxu0 0.0
    %188 = vmatprep.subr.mxu0 0.0
    %189 = vmatpush1.msra.mxu0 0.0
    %190 = vmatprep.subr.mxu0 0.0
    %191 = vmatpush1.msra.mxu0 0.0
    %192 = vmatprep.subr.mxu0 0.0
    %193 = vmatpush1.msra.mxu0 %v155
    %194 = vmatprep.subr.mxu0 0.0
    %195 = vmatpush1.msra.mxu0 %v154
    %196 = vmatprep.subr.mxu0 0.0
    %197 = vmatpush1.msra.mxu0 %v153
    %198 = vmatprep.subr.mxu0 0.0
    %199 = vmatpush1.msra.mxu0 %v152
    %200 = vmatprep.subr.mxu0 0.0
    %201 = vmatpush2.msra.mxu0 0.0
    %202 = vmatprep.subr.mxu0 0.0
    %203 = vmatpush2.msra.mxu0 0.0
    %204 = vmatprep.subr.mxu0 0.0
    %205 = vmatpush2.msra.mxu0 0.0
    %206 = vmatprep.subr.mxu0 0.0
    %207 = vmatpush2.msra.mxu0 0.0
    %208 = vmatprep.subr.mxu0 0.0
    %209 = vmatpush2.msra.mxu0 0.0
    %210 = vmatprep.subr.mxu0 0.0
    %211 = vmatpush2.msra.mxu0 0.0
    %212 = vmatprep.subr.mxu0 0.0
    %213 = vmatpush2.msra.mxu0 0.0
    %214 = vmatprep.subr.mxu0 0.0
    %215 = vmatpush2.msra.mxu0 0.0
    %216 = vmatprep.subr.mxu0 0.0
    %217 = vmatpush2.msra.mxu0 0.0
    %218 = vmatprep.subr.mxu0 0.0
    %219 = vmatpush2.msra.mxu0 0.0
    %220 = vmatprep.subr.mxu0 0.0
    %221 = vmatpush2.msra.mxu0 0.0
    %222 = vmatprep.subr.mxu0 0.0
    %223 = vmatpush2.msra.mxu0 0.0
    %224 = vmatprep.subr.mxu0 0.0
    %225 = vmatpush2.msra.mxu0 0.0
    %226 = vmatprep.subr.mxu0 0.0
    %227 = vmatpush2.msra.mxu0 0.0
    %228 = vmatprep.subr.mxu0 0.0
    %229 = vmatpush2.msra.mxu0 0.0
    %230 = vmatprep.subr.mxu0 0.0
    %231 = vmatpush2.msra.mxu0 0.0
    %232 = vmatprep.mubr.f32.mxu0 0.0
    %233 = vmatmul.mubr.f32.gmra.mxu0 %v163
    %v234 = vpop.f32.mrf.mxu0
    %v235 = vadd.f32 %v160, %v234
    %v236 = vpop.f32.mrf.mxu0
    %237 = vmatprep.mubr.f32.mxu0 0.0
    %238 = vmatmul.mubr.f32.gmra.mxu0 %v166
    %v239 = vpop.f32.mrf.mxu0
    %v240 = vadd.f32 %v160, %v239
    %v241 = vpop.f32.mrf.mxu0
    %242 = vdwg.mxu0
    %245 = vrot.lane.b32.xlu0 %v235, 96
    %v246 = vpop.permute.xlu0 %245
    %247 = vrot.lane.b32.xlu0 %v240, 96
    %v248 = vpop.permute.xlu0 %247
    %vm249 = vcmask 64512
    %v250 = vsel %vm249, %v235, 0
    %v252 = vsel %vm249, %v240, 0
    %v254 = vsel %vm249, %v246, 0
    %v256 = vsel %vm249, %v248, 0
    %258 = vmatprep.subr.mxu0 0.0
    %259 = vmatpush1.xpose.msra.mxu0 0.0
    %260 = vmatprep.subr.mxu0 0.0
    %261 = vmatpush1.xpose.msra.mxu0 0.0
    %262 = vmatprep.subr.mxu0 0.0
    %263 = vmatpush1.xpose.msra.mxu0 0.0
    %264 = vmatprep.subr.mxu0 0.0
    %265 = vmatpush1.xpose.msra.mxu0 0.0
    %266 = vmatprep.subr.mxu0 0.0
    %267 = vmatpush1.xpose.msra.mxu0 0.0
    %268 = vmatprep.subr.mxu0 0.0
    %269 = vmatpush1.xpose.msra.mxu0 0.0
    %270 = vmatprep.subr.mxu0 0.0
    %271 = vmatpush1.xpose.msra.mxu0 0.0
    %272 = vmatprep.subr.mxu0 0.0
    %273 = vmatpush1.xpose.msra.mxu0 0.0
    %274 = vmatprep.subr.mxu0 0.0
    %275 = vmatpush1.xpose.msra.mxu0 0.0
    %276 = vmatprep.subr.mxu0 0.0
    %277 = vmatpush1.xpose.msra.mxu0 0.0
    %278 = vmatprep.subr.mxu0 0.0
    %279 = vmatpush1.xpose.msra.mxu0 0.0
    %280 = vmatprep.subr.mxu0 0.0
    %281 = vmatpush1.xpose.msra.mxu0 0.0
    %282 = vmatprep.subr.mxu0 0.0
    %283 = vmatpush1.xpose.msra.mxu0 0.0
    %284 = vmatprep.subr.mxu0 0.0
    %285 = vmatpush1.xpose.msra.mxu0 0.0
    %286 = vmatprep.subr.mxu0 0.0
    %287 = vmatpush1.xpose.msra.mxu0 %v256
    %288 = vmatprep.subr.mxu0 0.0
    %289 = vmatpush1.xpose.msra.mxu0 %v254
    %290 = vmatprep.subr.mxu0 0.0
    %291 = vmatpush2.xpose.msra.mxu0 0.0
    %292 = vmatprep.subr.mxu0 0.0
    %293 = vmatpush2.xpose.msra.mxu0 0.0
    %294 = vmatprep.subr.mxu0 0.0
    %295 = vmatpush2.xpose.msra.mxu0 0.0
    %296 = vmatprep.subr.mxu0 0.0
    %297 = vmatpush2.xpose.msra.mxu0 0.0
    %298 = vmatprep.subr.mxu0 0.0
    %299 = vmatpush2.xpose.msra.mxu0 0.0
    %300 = vmatprep.subr.mxu0 0.0
    %301 = vmatpush2.xpose.msra.mxu0 0.0
    %302 = vmatprep.subr.mxu0 0.0
    %303 = vmatpush2.xpose.msra.mxu0 0.0
    %304 = vmatprep.subr.mxu0 0.0
    %305 = vmatpush2.xpose.msra.mxu0 0.0
    %306 = vmatprep.subr.mxu0 0.0
    %307 = vmatpush2.xpose.msra.mxu0 0.0
    %308 = vmatprep.subr.mxu0 0.0
    %309 = vmatpush2.xpose.msra.mxu0 0.0
    %310 = vmatprep.subr.mxu0 0.0
    %311 = vmatpush2.xpose.msra.mxu0 0.0
    %312 = vmatprep.subr.mxu0 0.0
    %313 = vmatpush2.xpose.msra.mxu0 0.0
    %314 = vmatprep.subr.mxu0 0.0
    %315 = vmatpush2.xpose.msra.mxu0 0.0
    %316 = vmatprep.subr.mxu0 0.0
    %317 = vmatpush2.xpose.msra.mxu0 0.0
    %318 = vmatprep.subr.mxu0 0.0
    %319 = vmatpush2.xpose.msra.mxu0 0.0
    %320 = vmatprep.subr.mxu0 0.0
    %321 = vmatpush2.xpose.msra.mxu0 0.0
    %322 = vmatprep.mubr.f32.mxu0 0.0
    %323 = vmatmul.mubr.f32.gmra.mxu0 %v250
    %v324 = vpop.f32.mrf.mxu0
    %v325 = vadd.f32 %v150, %v324
    %v326 = vpop.f32.mrf.mxu0
    %327 = vmatprep.mubr.f32.mxu0 0.0
    %328 = vmatmul.mubr.f32.gmra.mxu0 %v252
    %v329 = vpop.f32.mrf.mxu0
    %v330 = vadd.f32 %v151, %v329
    %v331 = vpop.f32.mrf.mxu0
    %332 = vdwg.mxu0
    %v333 = vsel %vm68, %v325, -inf
    %334 = vmax.xlane.f32.xlu0 %v333
    %v335 = vpop.xlane.xlu0 %334
    %v336 = vsel %vm68, %v330, -inf
    %337 = vmax.xlane.f32.xlu0 %v336
    %v338 = vpop.xlane.xlu0 %337
    %v339 = vsub.f32 %v325, %v335
    %v340 = vsub.f32 %v330, %v338
    %v341 = vmul.f32 %v339, 1.442695
    %v342 = vpow.pop %v341
    %v343 = vmul.f32 %v340, 1.442695
    %v344 = vpow.pop %v343
    %v345 = vsel %vm68, %v342, 0.0
    %346 = vadd.xlane.f32.xlu0 %v345
    %v347 = vpop.xlane.xlu0 %346
    %v348 = vsel %vm68, %v344, 0.0
    %349 = vadd.xlane.f32.xlu0 %v348
    %v350 = vpop.xlane.xlu0 %349
    %v351 = vrcp.pop %v347
    %v352 = vrcp.pop %v350
    %v353 = vmul.f32 %v342, %v351
    %v354 = vmul.f32 %v344, %v352
    %355 = vrot.lane.b32.xlu0 %v235, 64
    %v356 = vpop.permute.xlu0 %355
    %357 = vrot.lane.b32.xlu0 %v240, 64
    %v358 = vpop.permute.xlu0 %357
    %v362 = vsel %vm68, %v353, 0
    %v365 = vsel %vm68, %v354, 0
    %367 = vmatprep.subr.mxu0 0.0
    %368 = vmatpush1.msra.mxu0 0.0
    %369 = vmatprep.subr.mxu0 0.0
    %370 = vmatpush1.msra.mxu0 0.0
    %371 = vmatprep.subr.mxu0 0.0
    %372 = vmatpush1.msra.mxu0 0.0
    %373 = vmatprep.subr.mxu0 0.0
    %374 = vmatpush1.msra.mxu0 0.0
    %375 = vmatprep.subr.mxu0 0.0
    %376 = vmatpush1.msra.mxu0 0.0
    %377 = vmatprep.subr.mxu0 0.0
    %378 = vmatpush1.msra.mxu0 0.0
    %379 = vmatprep.subr.mxu0 0.0
    %380 = vmatpush1.msra.mxu0 0.0
    %381 = vmatprep.subr.mxu0 0.0
    %382 = vmatpush1.msra.mxu0 0.0
    %383 = vmatprep.subr.mxu0 0.0
    %384 = vmatpush1.msra.mxu0 0.0
    %385 = vmatprep.subr.mxu0 0.0
    %386 = vmatpush1.msra.mxu0 0.0
    %387 = vmatprep.subr.mxu0 0.0
    %388 = vmatpush1.msra.mxu0 0.0
    %389 = vmatprep.subr.mxu0 0.0
    %390 = vmatpush1.msra.mxu0 0.0
    %391 = vmatprep.subr.mxu0 0.0
    %392 = vmatpush1.msra.mxu0 0.0
    %393 = vmatprep.subr.mxu0 0.0
    %394 = vmatpush1.msra.mxu0 0.0
    %395 = vmatprep.subr.mxu0 0.0
    %396 = vmatpush1.msra.mxu0 %v358
    %397 = vmatprep.subr.mxu0 0.0
    %398 = vmatpush1.msra.mxu0 %v356
    %399 = vmatprep.subr.mxu0 0.0
    %400 = vmatpush2.msra.mxu0 0.0
    %401 = vmatprep.subr.mxu0 0.0
    %402 = vmatpush2.msra.mxu0 0.0
    %403 = vmatprep.subr.mxu0 0.0
    %404 = vmatpush2.msra.mxu0 0.0
    %405 = vmatprep.subr.mxu0 0.0
    %406 = vmatpush2.msra.mxu0 0.0
    %407 = vmatprep.subr.mxu0 0.0
    %408 = vmatpush2.msra.mxu0 0.0
    %409 = vmatprep.subr.mxu0 0.0
    %410 = vmatpush2.msra.mxu0 0.0
    %411 = vmatprep.subr.mxu0 0.0
    %412 = vmatpush2.msra.mxu0 0.0
    %413 = vmatprep.subr.mxu0 0.0
    %414 = vmatpush2.msra.mxu0 0.0
    %415 = vmatprep.subr.mxu0 0.0
    %416 = vmatpush2.msra.mxu0 0.0
    %417 = vmatprep.subr.mxu0 0.0
    %418 = vmatpush2.msra.mxu0 0.0
    %419 = vmatprep.subr.mxu0 0.0
    %420 = vmatpush2.msra.mxu0 0.0
    %421 = vmatprep.subr.mxu0 0.0
    %422 = vmatpush2.msra.mxu0 0.0
    %423 = vmatprep.subr.mxu0 0.0
    %424 = vmatpush2.msra.mxu0 0.0
    %425 = vmatprep.subr.mxu0 0.0
    %426 = vmatpush2.msra.mxu0 0.0
    %427 = vmatprep.subr.mxu0 0.0
    %428 = vmatpush2.msra.mxu0 0.0
    %429 = vmatprep.subr.mxu0 0.0
    %430 = vmatpush2.msra.mxu0 0.0
    %431 = vmatprep.mubr.f32.mxu0 0.0
    %432 = vmatmul.mubr.f32.gmra.mxu0 %v362
    %v433 = vpop.f32.mrf.mxu0
    %v434 = vadd.f32 0.0, %v433
    %v435 = vpop.f32.mrf.mxu0
    %436 = vmatprep.mubr.f32.mxu0 0.0
    %437 = vmatmul.mubr.f32.gmra.mxu0 %v365
    %v438 = vpop.f32.mrf.mxu0
    %v439 = vadd.f32 0.0, %v438
    %v440 = vpop.f32.mrf.mxu0
    %441 = vdwg.mxu0
    %442 = vrot.lane.b32.xlu0 %v235, 120
    %v443 = vpop.permute.xlu0 %442
    %444 = vrot.lane.b32.xlu0 %v240, 120
    %v445 = vpop.permute.xlu0 %444
    %446 = vrot.lane.b32.xlu0 %v235, 88
    %v447 = vpop.permute.xlu0 %446
    %448 = vrot.lane.b32.xlu0 %v240, 88
    %v449 = vpop.permute.xlu0 %448
    %v450 = vsel %vm249, %v443, 0
    %v452 = vsel %vm249, %v445, 0
    %v454 = vsel %vm249, %v447, 0
    %v456 = vsel %vm249, %v449, 0
    %458 = vmatprep.subr.mxu0 0.0
    %459 = vmatpush1.xpose.msra.mxu0 0.0
    %460 = vmatprep.subr.mxu0 0.0
    %461 = vmatpush1.xpose.msra.mxu0 0.0
    %462 = vmatprep.subr.mxu0 0.0
    %463 = vmatpush1.xpose.msra.mxu0 0.0
    %464 = vmatprep.subr.mxu0 0.0
    %465 = vmatpush1.xpose.msra.mxu0 0.0
    %466 = vmatprep.subr.mxu0 0.0
    %467 = vmatpush1.xpose.msra.mxu0 0.0
    %468 = vmatprep.subr.mxu0 0.0
    %469 = vmatpush1.xpose.msra.mxu0 0.0
    %470 = vmatprep.subr.mxu0 0.0
    %471 = vmatpush1.xpose.msra.mxu0 0.0
    %472 = vmatprep.subr.mxu0 0.0
    %473 = vmatpush1.xpose.msra.mxu0 0.0
    %474 = vmatprep.subr.mxu0 0.0
    %475 = vmatpush1.xpose.msra.mxu0 0.0
    %476 = vmatprep.subr.mxu0 0.0
    %477 = vmatpush1.xpose.msra.mxu0 0.0
    %478 = vmatprep.subr.mxu0 0.0
    %479 = vmatpush1.xpose.msra.mxu0 0.0
    %480 = vmatprep.subr.mxu0 0.0
    %481 = vmatpush1.xpose.msra.mxu0 0.0
    %482 = vmatprep.subr.mxu0 0.0
    %483 = vmatpush1.xpose.msra.mxu0 0.0
    %484 = vmatprep.subr.mxu0 0.0
    %485 = vmatpush1.xpose.msra.mxu0 0.0
    %486 = vmatprep.subr.mxu0 0.0
    %487 = vmatpush1.xpose.msra.mxu0 %v456
    %488 = vmatprep.subr.mxu0 0.0
    %489 = vmatpush1.xpose.msra.mxu0 %v454
    %490 = vmatprep.subr.mxu0 0.0
    %491 = vmatpush2.xpose.msra.mxu0 0.0
    %492 = vmatprep.subr.mxu0 0.0
    %493 = vmatpush2.xpose.msra.mxu0 0.0
    %494 = vmatprep.subr.mxu0 0.0
    %495 = vmatpush2.xpose.msra.mxu0 0.0
    %496 = vmatprep.subr.mxu0 0.0
    %497 = vmatpush2.xpose.msra.mxu0 0.0
    %498 = vmatprep.subr.mxu0 0.0
    %499 = vmatpush2.xpose.msra.mxu0 0.0
    %500 = vmatprep.subr.mxu0 0.0
    %501 = vmatpush2.xpose.msra.mxu0 0.0
    %502 = vmatprep.subr.mxu0 0.0
    %503 = vmatpush2.xpose.msra.mxu0 0.0
    %504 = vmatprep.subr.mxu0 0.0
    %505 = vmatpush2.xpose.msra.mxu0 0.0
    %506 = vmatprep.subr.mxu0 0.0
    %507 = vmatpush2.xpose.msra.mxu0 0.0
    %508 = vmatprep.subr.mxu0 0.0
    %509 = vmatpush2.xpose.msra.mxu0 0.0
    %510 = vmatprep.subr.mxu0 0.0
    %511 = vmatpush2.xpose.msra.mxu0 0.0
    %512 = vmatprep.subr.mxu0 0.0
    %513 = vmatpush2.xpose.msra.mxu0 0.0
    %514 = vmatprep.subr.mxu0 0.0
    %515 = vmatpush2.xpose.msra.mxu0 0.0
    %516 = vmatprep.subr.mxu0 0.0
    %517 = vmatpush2.xpose.msra.mxu0 0.0
    %518 = vmatprep.subr.mxu0 0.0
    %519 = vmatpush2.xpose.msra.mxu0 0.0
    %520 = vmatprep.subr.mxu0 0.0
    %521 = vmatpush2.xpose.msra.mxu0 0.0
    %522 = vmatprep.mubr.f32.mxu0 0.0
    %523 = vmatmul.mubr.f32.gmra.mxu0 %v450
    %v524 = vpop.f32.mrf.mxu0
    %v525 = vadd.f32 %v150, %v524
    %v526 = vpop.f32.mrf.mxu0
    %527 = vmatprep.mubr.f32.mxu0 0.0
    %528 = vmatmul.mubr.f32.gmra.mxu0 %v452
    %v529 = vpop.f32.mrf.mxu0
    %v530 = vadd.f32 %v151, %v529
    %v531 = vpop.f32.mrf.mxu0
    %532 = vdwg.mxu0
    %v533 = vsel %vm68, %v525, -inf
    %534 = vmax.xlane.f32.xlu0 %v533
    %v535 = vpop.xlane.xlu0 %534
    %v536 = vsel %vm68, %v530, -inf
    %537 = vmax.xlane.f32.xlu0 %v536
    %v538 = vpop.xlane.xlu0 %537
    %v539 = vsub.f32 %v525, %v535
    %v540 = vsub.f32 %v530, %v538
    %v541 = vmul.f32 %v539, 1.442695
    %v542 = vpow.pop %v541
    %v543 = vmul.f32 %v540, 1.442695
    %v544 = vpow.pop %v543
    %v545 = vsel %vm68, %v542, 0.0
    %546 = vadd.xlane.f32.xlu0 %v545
    %v547 = vpop.xlane.xlu0 %546
    %v548 = vsel %vm68, %v544, 0.0
    %549 = vadd.xlane.f32.xlu0 %v548
    %v550 = vpop.xlane.xlu0 %549
    %v551 = vrcp.pop %v547
    %v552 = vrcp.pop %v550
    %v553 = vmul.f32 %v542, %v551
    %v554 = vmul.f32 %v544, %v552
    %555 = vrot.lane.b32.xlu0 %v235, 56
    %v556 = vpop.permute.xlu0 %555
    %557 = vrot.lane.b32.xlu0 %v240, 56
    %v558 = vpop.permute.xlu0 %557
    %v562 = vsel %vm68, %v553, 0
    %v565 = vsel %vm68, %v554, 0
    %567 = vmatprep.subr.mxu0 0.0
    %568 = vmatpush1.msra.mxu0 0.0
    %569 = vmatprep.subr.mxu0 0.0
    %570 = vmatpush1.msra.mxu0 0.0
    %571 = vmatprep.subr.mxu0 0.0
    %572 = vmatpush1.msra.mxu0 0.0
    %573 = vmatprep.subr.mxu0 0.0
    %574 = vmatpush1.msra.mxu0 0.0
    %575 = vmatprep.subr.mxu0 0.0
    %576 = vmatpush1.msra.mxu0 0.0
    %577 = vmatprep.subr.mxu0 0.0
    %578 = vmatpush1.msra.mxu0 0.0
    %579 = vmatprep.subr.mxu0 0.0
    %580 = vmatpush1.msra.mxu0 0.0
    %581 = vmatprep.subr.mxu0 0.0
    %582 = vmatpush1.msra.mxu0 0.0
    %583 = vmatprep.subr.mxu0 0.0
    %584 = vmatpush1.msra.mxu0 0.0
    %585 = vmatprep.subr.mxu0 0.0
    %586 = vmatpush1.msra.mxu0 0.0
    %587 = vmatprep.subr.mxu0 0.0
    %588 = vmatpush1.msra.mxu0 0.0
    %589 = vmatprep.subr.mxu0 0.0
    %590 = vmatpush1.msra.mxu0 0.0
    %591 = vmatprep.subr.mxu0 0.0
    %592 = vmatpush1.msra.mxu0 0.0
    %593 = vmatprep.subr.mxu0 0.0
    %594 = vmatpush1.msra.mxu0 0.0
    %595 = vmatprep.subr.mxu0 0.0
    %596 = vmatpush1.msra.mxu0 %v558
    %597 = vmatprep.subr.mxu0 0.0
    %598 = vmatpush1.msra.mxu0 %v556
    %599 = vmatprep.subr.mxu0 0.0
    %600 = vmatpush2.msra.mxu0 0.0
    %601 = vmatprep.subr.mxu0 0.0
    %602 = vmatpush2.msra.mxu0 0.0
    %603 = vmatprep.subr.mxu0 0.0
    %604 = vmatpush2.msra.mxu0 0.0
    %605 = vmatprep.subr.mxu0 0.0
    %606 = vmatpush2.msra.mxu0 0.0
    %607 = vmatprep.subr.mxu0 0.0
    %608 = vmatpush2.msra.mxu0 0.0
    %609 = vmatprep.subr.mxu0 0.0
    %610 = vmatpush2.msra.mxu0 0.0
    %611 = vmatprep.subr.mxu0 0.0
    %612 = vmatpush2.msra.mxu0 0.0
    %613 = vmatprep.subr.mxu0 0.0
    %614 = vmatpush2.msra.mxu0 0.0
    %615 = vmatprep.subr.mxu0 0.0
    %616 = vmatpush2.msra.mxu0 0.0
    %617 = vmatprep.subr.mxu0 0.0
    %618 = vmatpush2.msra.mxu0 0.0
    %619 = vmatprep.subr.mxu0 0.0
    %620 = vmatpush2.msra.mxu0 0.0
    %621 = vmatprep.subr.mxu0 0.0
    %622 = vmatpush2.msra.mxu0 0.0
    %623 = vmatprep.subr.mxu0 0.0
    %624 = vmatpush2.msra.mxu0 0.0
    %625 = vmatprep.subr.mxu0 0.0
    %626 = vmatpush2.msra.mxu0 0.0
    %627 = vmatprep.subr.mxu0 0.0
    %628 = vmatpush2.msra.mxu0 0.0
    %629 = vmatprep.subr.mxu0 0.0
    %630 = vmatpush2.msra.mxu0 0.0
    %631 = vmatprep.mubr.f32.mxu0 0.0
    %632 = vmatmul.mubr.f32.gmra.mxu0 %v562
    %v633 = vpop.f32.mrf.mxu0
    %v634 = vadd.f32 0.0, %v633
    %v635 = vpop.f32.mrf.mxu0
    %636 = vmatprep.mubr.f32.mxu0 0.0
    %637 = vmatmul.mubr.f32.gmra.mxu0 %v565
    %v638 = vpop.f32.mrf.mxu0
    %v639 = vadd.f32 0.0, %v638
    %v640 = vpop.f32.mrf.mxu0
    %641 = vdwg.mxu0
    %642 = vrot.lane.b32.xlu0 %v235, 112
    %v643 = vpop.permute.xlu0 %642
    %644 = vrot.lane.b32.xlu0 %v240, 112
    %v645 = vpop.permute.xlu0 %644
    %646 = vrot.lane.b32.xlu0 %v235, 80
    %v647 = vpop.permute.xlu0 %646
    %648 = vrot.lane.b32.xlu0 %v240, 80
    %v649 = vpop.permute.xlu0 %648
    %v650 = vsel %vm249, %v643, 0
    %v652 = vsel %vm249, %v645, 0
    %v654 = vsel %vm249, %v647, 0
    %v656 = vsel %vm249, %v649, 0
    %658 = vmatprep.subr.mxu0 0.0
    %659 = vmatpush1.xpose.msra.mxu0 0.0
    %660 = vmatprep.subr.mxu0 0.0
    %661 = vmatpush1.xpose.msra.mxu0 0.0
    %662 = vmatprep.subr.mxu0 0.0
    %663 = vmatpush1.xpose.msra.mxu0 0.0
    %664 = vmatprep.subr.mxu0 0.0
    %665 = vmatpush1.xpose.msra.mxu0 0.0
    %666 = vmatprep.subr.mxu0 0.0
    %667 = vmatpush1.xpose.msra.mxu0 0.0
    %668 = vmatprep.subr.mxu0 0.0
    %669 = vmatpush1.xpose.msra.mxu0 0.0
    %670 = vmatprep.subr.mxu0 0.0
    %671 = vmatpush1.xpose.msra.mxu0 0.0
    %672 = vmatprep.subr.mxu0 0.0
    %673 = vmatpush1.xpose.msra.mxu0 0.0
    %674 = vmatprep.subr.mxu0 0.0
    %675 = vmatpush1.xpose.msra.mxu0 0.0
    %676 = vmatprep.subr.mxu0 0.0
    %677 = vmatpush1.xpose.msra.mxu0 0.0
    %678 = vmatprep.subr.mxu0 0.0
    %679 = vmatpush1.xpose.msra.mxu0 0.0
    %680 = vmatprep.subr.mxu0 0.0
    %681 = vmatpush1.xpose.msra.mxu0 0.0
    %682 = vmatprep.subr.mxu0 0.0
    %683 = vmatpush1.xpose.msra.mxu0 0.0
    %684 = vmatprep.subr.mxu0 0.0
    %685 = vmatpush1.xpose.msra.mxu0 0.0
    %686 = vmatprep.subr.mxu0 0.0
    %687 = vmatpush1.xpose.msra.mxu0 %v656
    %688 = vmatprep.subr.mxu0 0.0
    %689 = vmatpush1.xpose.msra.mxu0 %v654
    %690 = vmatprep.subr.mxu0 0.0
    %691 = vmatpush2.xpose.msra.mxu0 0.0
    %692 = vmatprep.subr.mxu0 0.0
    %693 = vmatpush2.xpose.msra.mxu0 0.0
    %694 = vmatprep.subr.mxu0 0.0
    %695 = vmatpush2.xpose.msra.mxu0 0.0
    %696 = vmatprep.subr.mxu0 0.0
    %697 = vmatpush2.xpose.msra.mxu0 0.0
    %698 = vmatprep.subr.mxu0 0.0
    %699 = vmatpush2.xpose.msra.mxu0 0.0
    %700 = vmatprep.subr.mxu0 0.0
    %701 = vmatpush2.xpose.msra.mxu0 0.0
    %702 = vmatprep.subr.mxu0 0.0
    %703 = vmatpush2.xpose.msra.mxu0 0.0
    %704 = vmatprep.subr.mxu0 0.0
    %705 = vmatpush2.xpose.msra.mxu0 0.0
    %706 = vmatprep.subr.mxu0 0.0
    %707 = vmatpush2.xpose.msra.mxu0 0.0
    %708 = vmatprep.subr.mxu0 0.0
    %709 = vmatpush2.xpose.msra.mxu0 0.0
    %710 = vmatprep.subr.mxu0 0.0
    %711 = vmatpush2.xpose.msra.mxu0 0.0
    %712 = vmatprep.subr.mxu0 0.0
    %713 = vmatpush2.xpose.msra.mxu0 0.0
    %714 = vmatprep.subr.mxu0 0.0
    %715 = vmatpush2.xpose.msra.mxu0 0.0
    %716 = vmatprep.subr.mxu0 0.0
    %717 = vmatpush2.xpose.msra.mxu0 0.0
    %718 = vmatprep.subr.mxu0 0.0
    %719 = vmatpush2.xpose.msra.mxu0 0.0
    %720 = vmatprep.subr.mxu0 0.0
    %721 = vmatpush2.xpose.msra.mxu0 0.0
    %722 = vmatprep.mubr.f32.mxu0 0.0
    %723 = vmatmul.mubr.f32.gmra.mxu0 %v650
    %v724 = vpop.f32.mrf.mxu0
    %v725 = vadd.f32 %v150, %v724
    %v726 = vpop.f32.mrf.mxu0
    %727 = vmatprep.mubr.f32.mxu0 0.0
    %728 = vmatmul.mubr.f32.gmra.mxu0 %v652
    %v729 = vpop.f32.mrf.mxu0
    %v730 = vadd.f32 %v151, %v729
    %v731 = vpop.f32.mrf.mxu0
    %732 = vdwg.mxu0
    %v733 = vsel %vm68, %v725, -inf
    %734 = vmax.xlane.f32.xlu0 %v733
    %v735 = vpop.xlane.xlu0 %734
    %v736 = vsel %vm68, %v730, -inf
    %737 = vmax.xlane.f32.xlu0 %v736
    %v738 = vpop.xlane.xlu0 %737
    %v739 = vsub.f32 %v725, %v735
    %v740 = vsub.f32 %v730, %v738
    %v741 = vmul.f32 %v739, 1.442695
    %v742 = vpow.pop %v741
    %v743 = vmul.f32 %v740, 1.442695
    %v744 = vpow.pop %v743
    %v745 = vsel %vm68, %v742, 0.0
    %746 = vadd.xlane.f32.xlu0 %v745
    %v747 = vpop.xlane.xlu0 %746
    %v748 = vsel %vm68, %v744, 0.0
    %749 = vadd.xlane.f32.xlu0 %v748
    %v750 = vpop.xlane.xlu0 %749
    %v751 = vrcp.pop %v747
    %v752 = vrcp.pop %v750
    %v753 = vmul.f32 %v742, %v751
    %v754 = vmul.f32 %v744, %v752
    %755 = vrot.lane.b32.xlu0 %v235, 48
    %v756 = vpop.permute.xlu0 %755
    %757 = vrot.lane.b32.xlu0 %v240, 48
    %v758 = vpop.permute.xlu0 %757
    %v762 = vsel %vm68, %v753, 0
    %v765 = vsel %vm68, %v754, 0
    %767 = vmatprep.subr.mxu0 0.0
    %768 = vmatpush1.msra.mxu0 0.0
    %769 = vmatprep.subr.mxu0 0.0
    %770 = vmatpush1.msra.mxu0 0.0
    %771 = vmatprep.subr.mxu0 0.0
    %772 = vmatpush1.msra.mxu0 0.0
    %773 = vmatprep.subr.mxu0 0.0
    %774 = vmatpush1.msra.mxu0 0.0
    %775 = vmatprep.subr.mxu0 0.0
    %776 = vmatpush1.msra.mxu0 0.0
    %777 = vmatprep.subr.mxu0 0.0
    %778 = vmatpush1.msra.mxu0 0.0
    %779 = vmatprep.subr.mxu0 0.0
    %780 = vmatpush1.msra.mxu0 0.0
    %781 = vmatprep.subr.mxu0 0.0
    %782 = vmatpush1.msra.mxu0 0.0
    %783 = vmatprep.subr.mxu0 0.0
    %784 = vmatpush1.msra.mxu0 0.0
    %785 = vmatprep.subr.mxu0 0.0
    %786 = vmatpush1.msra.mxu0 0.0
    %787 = vmatprep.subr.mxu0 0.0
    %788 = vmatpush1.msra.mxu0 0.0
    %789 = vmatprep.subr.mxu0 0.0
    %790 = vmatpush1.msra.mxu0 0.0
    %791 = vmatprep.subr.mxu0 0.0
    %792 = vmatpush1.msra.mxu0 0.0
    %793 = vmatprep.subr.mxu0 0.0
    %794 = vmatpush1.msra.mxu0 0.0
    %795 = vmatprep.subr.mxu0 0.0
    %796 = vmatpush1.msra.mxu0 %v758
    %797 = vmatprep.subr.mxu0 0.0
    %798 = vmatpush1.msra.mxu0 %v756
    %799 = vmatprep.subr.mxu0 0.0
    %800 = vmatpush2.msra.mxu0 0.0
    %801 = vmatprep.subr.mxu0 0.0
    %802 = vmatpush2.msra.mxu0 0.0
    %803 = vmatprep.subr.mxu0 0.0
    %804 = vmatpush2.msra.mxu0 0.0
    %805 = vmatprep.subr.mxu0 0.0
    %806 = vmatpush2.msra.mxu0 0.0
    %807 = vmatprep.subr.mxu0 0.0
    %808 = vmatpush2.msra.mxu0 0.0
    %809 = vmatprep.subr.mxu0 0.0
    %810 = vmatpush2.msra.mxu0 0.0
    %811 = vmatprep.subr.mxu0 0.0
    %812 = vmatpush2.msra.mxu0 0.0
    %813 = vmatprep.subr.mxu0 0.0
    %814 = vmatpush2.msra.mxu0 0.0
    %815 = vmatprep.subr.mxu0 0.0
    %816 = vmatpush2.msra.mxu0 0.0
    %817 = vmatprep.subr.mxu0 0.0
    %818 = vmatpush2.msra.mxu0 0.0
    %819 = vmatprep.subr.mxu0 0.0
    %820 = vmatpush2.msra.mxu0 0.0
    %821 = vmatprep.subr.mxu0 0.0
    %822 = vmatpush2.msra.mxu0 0.0
    %823 = vmatprep.subr.mxu0 0.0
    %824 = vmatpush2.msra.mxu0 0.0
    %825 = vmatprep.subr.mxu0 0.0
    %826 = vmatpush2.msra.mxu0 0.0
    %827 = vmatprep.subr.mxu0 0.0
    %828 = vmatpush2.msra.mxu0 0.0
    %829 = vmatprep.subr.mxu0 0.0
    %830 = vmatpush2.msra.mxu0 0.0
    %831 = vmatprep.mubr.f32.mxu0 0.0
    %832 = vmatmul.mubr.f32.gmra.mxu0 %v762
    %v833 = vpop.f32.mrf.mxu0
    %v834 = vadd.f32 0.0, %v833
    %v835 = vpop.f32.mrf.mxu0
    %836 = vmatprep.mubr.f32.mxu0 0.0
    %837 = vmatmul.mubr.f32.gmra.mxu0 %v765
    %v838 = vpop.f32.mrf.mxu0
    %v839 = vadd.f32 0.0, %v838
    %v840 = vpop.f32.mrf.mxu0
    %841 = vdwg.mxu0
    %842 = vrot.lane.b32.xlu0 %v235, 104
    %v843 = vpop.permute.xlu0 %842
    %844 = vrot.lane.b32.xlu0 %v240, 104
    %v845 = vpop.permute.xlu0 %844
    %846 = vrot.lane.b32.xlu0 %v235, 72
    %v847 = vpop.permute.xlu0 %846
    %848 = vrot.lane.b32.xlu0 %v240, 72
    %v849 = vpop.permute.xlu0 %848
    %v850 = vsel %vm249, %v843, 0
    %v852 = vsel %vm249, %v845, 0
    %v854 = vsel %vm249, %v847, 0
    %v856 = vsel %vm249, %v849, 0
    %858 = vmatprep.subr.mxu0 0.0
    %859 = vmatpush1.xpose.msra.mxu0 0.0
    %860 = vmatprep.subr.mxu0 0.0
    %861 = vmatpush1.xpose.msra.mxu0 0.0
    %862 = vmatprep.subr.mxu0 0.0
    %863 = vmatpush1.xpose.msra.mxu0 0.0
    %864 = vmatprep.subr.mxu0 0.0
    %865 = vmatpush1.xpose.msra.mxu0 0.0
    %866 = vmatprep.subr.mxu0 0.0
    %867 = vmatpush1.xpose.msra.mxu0 0.0
    %868 = vmatprep.subr.mxu0 0.0
    %869 = vmatpush1.xpose.msra.mxu0 0.0
    %870 = vmatprep.subr.mxu0 0.0
    %871 = vmatpush1.xpose.msra.mxu0 0.0
    %872 = vmatprep.subr.mxu0 0.0
    %873 = vmatpush1.xpose.msra.mxu0 0.0
    %874 = vmatprep.subr.mxu0 0.0
    %875 = vmatpush1.xpose.msra.mxu0 0.0
    %876 = vmatprep.subr.mxu0 0.0
    %877 = vmatpush1.xpose.msra.mxu0 0.0
    %878 = vmatprep.subr.mxu0 0.0
    %879 = vmatpush1.xpose.msra.mxu0 0.0
    %880 = vmatprep.subr.mxu0 0.0
    %881 = vmatpush1.xpose.msra.mxu0 0.0
    %882 = vmatprep.subr.mxu0 0.0
    %883 = vmatpush1.xpose.msra.mxu0 0.0
    %884 = vmatprep.subr.mxu0 0.0
    %885 = vmatpush1.xpose.msra.mxu0 0.0
    %886 = vmatprep.subr.mxu0 0.0
    %887 = vmatpush1.xpose.msra.mxu0 %v856
    %888 = vmatprep.subr.mxu0 0.0
    %889 = vmatpush1.xpose.msra.mxu0 %v854
    %890 = vmatprep.subr.mxu0 0.0
    %891 = vmatpush2.xpose.msra.mxu0 0.0
    %892 = vmatprep.subr.mxu0 0.0
    %893 = vmatpush2.xpose.msra.mxu0 0.0
    %894 = vmatprep.subr.mxu0 0.0
    %895 = vmatpush2.xpose.msra.mxu0 0.0
    %896 = vmatprep.subr.mxu0 0.0
    %897 = vmatpush2.xpose.msra.mxu0 0.0
    %898 = vmatprep.subr.mxu0 0.0
    %899 = vmatpush2.xpose.msra.mxu0 0.0
    %900 = vmatprep.subr.mxu0 0.0
    %901 = vmatpush2.xpose.msra.mxu0 0.0
    %902 = vmatprep.subr.mxu0 0.0
    %903 = vmatpush2.xpose.msra.mxu0 0.0
    %904 = vmatprep.subr.mxu0 0.0
    %905 = vmatpush2.xpose.msra.mxu0 0.0
    %906 = vmatprep.subr.mxu0 0.0
    %907 = vmatpush2.xpose.msra.mxu0 0.0
    %908 = vmatprep.subr.mxu0 0.0
    %909 = vmatpush2.xpose.msra.mxu0 0.0
    %910 = vmatprep.subr.mxu0 0.0
    %911 = vmatpush2.xpose.msra.mxu0 0.0
    %912 = vmatprep.subr.mxu0 0.0
    %913 = vmatpush2.xpose.msra.mxu0 0.0
    %914 = vmatprep.subr.mxu0 0.0
    %915 = vmatpush2.xpose.msra.mxu0 0.0
    %916 = vmatprep.subr.mxu0 0.0
    %917 = vmatpush2.xpose.msra.mxu0 0.0
    %918 = vmatprep.subr.mxu0 0.0
    %919 = vmatpush2.xpose.msra.mxu0 0.0
    %920 = vmatprep.subr.mxu0 0.0
    %921 = vmatpush2.xpose.msra.mxu0 0.0
    %922 = vmatprep.mubr.f32.mxu0 0.0
    %923 = vmatmul.mubr.f32.gmra.mxu0 %v850
    %v924 = vpop.f32.mrf.mxu0
    %v925 = vadd.f32 %v150, %v924
    %v926 = vpop.f32.mrf.mxu0
    %927 = vmatprep.mubr.f32.mxu0 0.0
    %928 = vmatmul.mubr.f32.gmra.mxu0 %v852
    %v929 = vpop.f32.mrf.mxu0
    %v930 = vadd.f32 %v151, %v929
    %v931 = vpop.f32.mrf.mxu0
    %932 = vdwg.mxu0
    %v933 = vsel %vm68, %v925, -inf
    %934 = vmax.xlane.f32.xlu0 %v933
    %v935 = vpop.xlane.xlu0 %934
    %v936 = vsel %vm68, %v930, -inf
    %937 = vmax.xlane.f32.xlu0 %v936
    %v938 = vpop.xlane.xlu0 %937
    %v939 = vsub.f32 %v925, %v935
    %v940 = vsub.f32 %v930, %v938
    %v941 = vmul.f32 %v939, 1.442695
    %v942 = vpow.pop %v941
    %v943 = vmul.f32 %v940, 1.442695
    %v944 = vpow.pop %v943
    %v945 = vsel %vm68, %v942, 0.0
    %946 = vadd.xlane.f32.xlu0 %v945
    %v947 = vpop.xlane.xlu0 %946
    %v948 = vsel %vm68, %v944, 0.0
    %949 = vadd.xlane.f32.xlu0 %v948
    %v950 = vpop.xlane.xlu0 %949
    %v951 = vrcp.pop %v947
    %v952 = vrcp.pop %v950
    %v953 = vmul.f32 %v942, %v951
    %v954 = vmul.f32 %v944, %v952
    %955 = vrot.lane.b32.xlu0 %v235, 40
    %v956 = vpop.permute.xlu0 %955
    %957 = vrot.lane.b32.xlu0 %v240, 40
    %v958 = vpop.permute.xlu0 %957
    %v962 = vsel %vm68, %v953, 0
    %v965 = vsel %vm68, %v954, 0
    %967 = vmatprep.subr.mxu0 0.0
    %968 = vmatpush1.msra.mxu0 0.0
    %969 = vmatprep.subr.mxu0 0.0
    %970 = vmatpush1.msra.mxu0 0.0
    %971 = vmatprep.subr.mxu0 0.0
    %972 = vmatpush1.msra.mxu0 0.0
    %973 = vmatprep.subr.mxu0 0.0
    %974 = vmatpush1.msra.mxu0 0.0
    %975 = vmatprep.subr.mxu0 0.0
    %976 = vmatpush1.msra.mxu0 0.0
    %977 = vmatprep.subr.mxu0 0.0
    %978 = vmatpush1.msra.mxu0 0.0
    %979 = vmatprep.subr.mxu0 0.0
    %980 = vmatpush1.msra.mxu0 0.0
    %981 = vmatprep.subr.mxu0 0.0
    %982 = vmatpush1.msra.mxu0 0.0
    %983 = vmatprep.subr.mxu0 0.0
    %984 = vmatpush1.msra.mxu0 0.0
    %985 = vmatprep.subr.mxu0 0.0
    %986 = vmatpush1.msra.mxu0 0.0
    %987 = vmatprep.subr.mxu0 0.0
    %988 = vmatpush1.msra.mxu0 0.0
    %989 = vmatprep.subr.mxu0 0.0
    %990 = vmatpush1.msra.mxu0 0.0
    %991 = vmatprep.subr.mxu0 0.0
    %992 = vmatpush1.msra.mxu0 0.0
    %993 = vmatprep.subr.mxu0 0.0
    %994 = vmatpush1.msra.mxu0 0.0
    %995 = vmatprep.subr.mxu0 0.0
    %996 = vmatpush1.msra.mxu0 %v958
    %997 = vmatprep.subr.mxu0 0.0
    %998 = vmatpush1.msra.mxu0 %v956
    %999 = vmatprep.subr.mxu0 0.0
    %1000 = vmatpush2.msra.mxu0 0.0
    %1001 = vmatprep.subr.mxu0 0.0
    %1002 = vmatpush2.msra.mxu0 0.0
    %1003 = vmatprep.subr.mxu0 0.0
    %1004 = vmatpush2.msra.mxu0 0.0
    %1005 = vmatprep.subr.mxu0 0.0
    %1006 = vmatpush2.msra.mxu0 0.0
    %1007 = vmatprep.subr.mxu0 0.0
    %1008 = vmatpush2.msra.mxu0 0.0
    %1009 = vmatprep.subr.mxu0 0.0
    %1010 = vmatpush2.msra.mxu0 0.0
    %1011 = vmatprep.subr.mxu0 0.0
    %1012 = vmatpush2.msra.mxu0 0.0
    %1013 = vmatprep.subr.mxu0 0.0
    %1014 = vmatpush2.msra.mxu0 0.0
    %1015 = vmatprep.subr.mxu0 0.0
    %1016 = vmatpush2.msra.mxu0 0.0
    %1017 = vmatprep.subr.mxu0 0.0
    %1018 = vmatpush2.msra.mxu0 0.0
    %1019 = vmatprep.subr.mxu0 0.0
    %1020 = vmatpush2.msra.mxu0 0.0
    %1021 = vmatprep.subr.mxu0 0.0
    %1022 = vmatpush2.msra.mxu0 0.0
    %1023 = vmatprep.subr.mxu0 0.0
    %1024 = vmatpush2.msra.mxu0 0.0
    %1025 = vmatprep.subr.mxu0 0.0
    %1026 = vmatpush2.msra.mxu0 0.0
    %1027 = vmatprep.subr.mxu0 0.0
    %1028 = vmatpush2.msra.mxu0 0.0
    %1029 = vmatprep.subr.mxu0 0.0
    %1030 = vmatpush2.msra.mxu0 0.0
    %1031 = vmatprep.mubr.f32.mxu0 0.0
    %1032 = vmatmul.mubr.f32.gmra.mxu0 %v962
    %v1033 = vpop.f32.mrf.mxu0
    %v1034 = vadd.f32 0.0, %v1033
    %v1035 = vpop.f32.mrf.mxu0
    %1036 = vmatprep.mubr.f32.mxu0 0.0
    %1037 = vmatmul.mubr.f32.gmra.mxu0 %v965
    %v1038 = vpop.f32.mrf.mxu0
    %v1039 = vadd.f32 0.0, %v1038
    %v1040 = vpop.f32.mrf.mxu0
    %1041 = vdwg.mxu0
    %1044 = vrot.lane.b32.xlu0 %v634, 8
    %v1045 = vpop.permute.xlu0 %1044
    %1046 = vrot.lane.b32.xlu0 %v639, 8
    %v1047 = vpop.permute.xlu0 %1046
    %1052 = vrot.lane.b32.xlu0 %v834, 16
    %v1053 = vpop.permute.xlu0 %1052
    %1054 = vrot.lane.b32.xlu0 %v839, 16
    %v1055 = vpop.permute.xlu0 %1054
    %1060 = vrot.lane.b32.xlu0 %v1034, 24
    %v1061 = vpop.permute.xlu0 %1060
    %1062 = vrot.lane.b32.xlu0 %v1039, 24
    %v1063 = vpop.permute.xlu0 %1062
    %v1066 = vsel %vm249, %v434, %v1045
    %v1067 = vsel %vm249, %v439, %v1047
    %v1068 = vsel %vm68, %v1066, %v1053
    %v1069 = vsel %vm68, %v1067, %v1055
    %vm1070 = vcmask 195584
    %v1071 = vsel %vm1070, %v1068, %v1061
    %v1072 = vsel %vm1070, %v1069, %v1063
    %v1073 = vld [vmem:[%s6] sm:$0xff]
    %v1074 = vld [vmem:[%s6 + $0x8] sm:$0xff]
    %v1075 = vld [vmem:[%s6 + $0x10] sm:$0xff]
    %v1076 = vld [vmem:[%s6 + $0x18] sm:$0xff]
    %v1077 = vld [vmem:[%s7] sm:$0x1]
    %v1078 = vlaneseq
    %v1079 = vshrl.u32 %v1078, 7
    %v1080 = vsub.s32 0, %v1079
    %v1081 = vrot.slane %v1077, %v1080
    %v1083 = vsel %vm161, %v1071, 0
    %v1086 = vsel %vm161, %v1072, 0
    %1088 = vmatprep.subr.mxu0 0.0
    %1089 = vmatpush1.msra.mxu0 0.0
    %1090 = vmatprep.subr.mxu0 0.0
    %1091 = vmatpush1.msra.mxu0 0.0
    %1092 = vmatprep.subr.mxu0 0.0
    %1093 = vmatpush1.msra.mxu0 0.0
    %1094 = vmatprep.subr.mxu0 0.0
    %1095 = vmatpush1.msra.mxu0 0.0
    %1096 = vmatprep.subr.mxu0 0.0
    %1097 = vmatpush1.msra.mxu0 0.0
    %1098 = vmatprep.subr.mxu0 0.0
    %1099 = vmatpush1.msra.mxu0 0.0
    %1100 = vmatprep.subr.mxu0 0.0
    %1101 = vmatpush1.msra.mxu0 0.0
    %1102 = vmatprep.subr.mxu0 0.0
    %1103 = vmatpush1.msra.mxu0 0.0
    %1104 = vmatprep.subr.mxu0 0.0
    %1105 = vmatpush1.msra.mxu0 0.0
    %1106 = vmatprep.subr.mxu0 0.0
    %1107 = vmatpush1.msra.mxu0 0.0
    %1108 = vmatprep.subr.mxu0 0.0
    %1109 = vmatpush1.msra.mxu0 0.0
    %1110 = vmatprep.subr.mxu0 0.0
    %1111 = vmatpush1.msra.mxu0 0.0
    %1112 = vmatprep.subr.mxu0 0.0
    %1113 = vmatpush1.msra.mxu0 %v1076
    %1114 = vmatprep.subr.mxu0 0.0
    %1115 = vmatpush1.msra.mxu0 %v1075
    %1116 = vmatprep.subr.mxu0 0.0
    %1117 = vmatpush1.msra.mxu0 %v1074
    %1118 = vmatprep.subr.mxu0 0.0
    %1119 = vmatpush1.msra.mxu0 %v1073
    %1120 = vmatprep.subr.mxu0 0.0
    %1121 = vmatpush2.msra.mxu0 0.0
    %1122 = vmatprep.subr.mxu0 0.0
    %1123 = vmatpush2.msra.mxu0 0.0
    %1124 = vmatprep.subr.mxu0 0.0
    %1125 = vmatpush2.msra.mxu0 0.0
    %1126 = vmatprep.subr.mxu0 0.0
    %1127 = vmatpush2.msra.mxu0 0.0
    %1128 = vmatprep.subr.mxu0 0.0
    %1129 = vmatpush2.msra.mxu0 0.0
    %1130 = vmatprep.subr.mxu0 0.0
    %1131 = vmatpush2.msra.mxu0 0.0
    %1132 = vmatprep.subr.mxu0 0.0
    %1133 = vmatpush2.msra.mxu0 0.0
    %1134 = vmatprep.subr.mxu0 0.0
    %1135 = vmatpush2.msra.mxu0 0.0
    %1136 = vmatprep.subr.mxu0 0.0
    %1137 = vmatpush2.msra.mxu0 0.0
    %1138 = vmatprep.subr.mxu0 0.0
    %1139 = vmatpush2.msra.mxu0 0.0
    %1140 = vmatprep.subr.mxu0 0.0
    %1141 = vmatpush2.msra.mxu0 0.0
    %1142 = vmatprep.subr.mxu0 0.0
    %1143 = vmatpush2.msra.mxu0 0.0
    %1144 = vmatprep.subr.mxu0 0.0
    %1145 = vmatpush2.msra.mxu0 0.0
    %1146 = vmatprep.subr.mxu0 0.0
    %1147 = vmatpush2.msra.mxu0 0.0
    %1148 = vmatprep.subr.mxu0 0.0
    %1149 = vmatpush2.msra.mxu0 0.0
    %1150 = vmatprep.subr.mxu0 0.0
    %1151 = vmatpush2.msra.mxu0 0.0
    %1152 = vmatprep.mubr.f32.mxu0 0.0
    %1153 = vmatmul.mubr.f32.gmra.mxu0 %v1083
    %v1154 = vpop.f32.mrf.mxu0
    %v1155 = vadd.f32 %v1081, %v1154
    %v1156 = vpop.f32.mrf.mxu0
    %1157 = vmatprep.mubr.f32.mxu0 0.0
    %1158 = vmatmul.mubr.f32.gmra.mxu0 %v1086
    %v1159 = vpop.f32.mrf.mxu0
    %v1160 = vadd.f32 %v1081, %v1159
    %v1161 = vpop.f32.mrf.mxu0
    %1162 = vdwg.mxu0
    %v1163 = vadd.f32 %v142, %v1155
    %v1164 = vadd.f32 %v147, %v1160
    %v1165 = vld [vmem:[%s8] sm:$0x1]
    %v1166 = vld [vmem:[%s9] sm:$0x1]
    %v1167 = vsel %vm161, %v1163, 0.0
    %1168 = vadd.xlane.f32.xlu0 %v1167
    %v1169 = vpop.xlane.xlu0 %1168
    %v1170 = vsel %vm161, %v1164, 0.0
    %1171 = vadd.xlane.f32.xlu0 %v1170
    %v1172 = vpop.xlane.xlu0 %1171
    %v1173 = vrcp.pop 32.0
    %v1174 = vmul.f32 %v1169, %v1173
    %v1175 = vmul.f32 %v1172, %v1173
    %v1176 = vsub.f32 %v1163, %v1174
    %v1177 = vsub.f32 %v1164, %v1175
    %v1178 = vmul.f32 %v1176, %v1176
    %v1179 = vmul.f32 %v1177, %v1177
    %v1180 = vsel %vm161, %v1178, 0.0
    %1181 = vadd.xlane.f32.xlu0 %v1180
    %v1182 = vpop.xlane.xlu0 %1181
    %v1183 = vsel %vm161, %v1179, 0.0
    %1184 = vadd.xlane.f32.xlu0 %v1183
    %v1185 = vpop.xlane.xlu0 %1184
    %v1186 = vmul.f32 %v1182, %v1173
    %v1187 = vmul.f32 %v1185, %v1173
    %v1188 = vadd.f32 %v1186, 1e-05
    %v1189 = vadd.f32 %v1187, 1e-05
    %v1190 = vrsqrt.pop %v1188
    %v1191 = vrsqrt.pop %v1189
    %v1192 = vmul.f32 %v1176, %v1190
    %v1193 = vmul.f32 %v1177, %v1191
    %v1194 = vlaneseq
    %v1195 = vshrl.u32 %v1194, 7
    %v1196 = vsub.s32 0, %v1195
    %v1197 = vrot.slane %v1165, %v1196
    %v1198 = vmul.f32 %v1192, %v1197
    %v1199 = vmul.f32 %v1193, %v1197
    %v1200 = vlaneseq
    %v1201 = vshrl.u32 %v1200, 7
    %v1202 = vsub.s32 0, %v1201
    %v1203 = vrot.slane %v1166, %v1202
    %v1204 = vadd.f32 %v1198, %v1203
    %v1205 = vadd.f32 %v1199, %v1203
    %v1206 = vld [vmem:[%s10] sm:$0xff]
    %v1207 = vld [vmem:[%s10 + $0x8] sm:$0xff]
    %v1208 = vld [vmem:[%s10 + $0x10] sm:$0xff]
    %v1209 = vld [vmem:[%s10 + $0x18] sm:$0xff]
    %v1210 = vld [vmem:[%s11] sm:$0x1]
    %v1211 = vlaneseq
    %v1212 = vshrl.u32 %v1211, 7
    %v1213 = vsub.s32 0, %v1212
    %v1214 = vrot.slane %v1210, %v1213
    %v1216 = vsel %vm161, %v1204, 0
    %v1219 = vsel %vm161, %v1205, 0
    %1221 = vmatprep.subr.mxu0 0.0
    %1222 = vmatpush1.msra.mxu0 0.0
    %1223 = vmatprep.subr.mxu0 0.0
    %1224 = vmatpush1.msra.mxu0 0.0
    %1225 = vmatprep.subr.mxu0 0.0
    %1226 = vmatpush1.msra.mxu0 0.0
    %1227 = vmatprep.subr.mxu0 0.0
    %1228 = vmatpush1.msra.mxu0 0.0
    %1229 = vmatprep.subr.mxu0 0.0
    %1230 = vmatpush1.msra.mxu0 0.0
    %1231 = vmatprep.subr.mxu0 0.0
    %1232 = vmatpush1.msra.mxu0 0.0
    %1233 = vmatprep.subr.mxu0 0.0
    %1234 = vmatpush1.msra.mxu0 0.0
    %1235 = vmatprep.subr.mxu0 0.0
    %1236 = vmatpush1.msra.mxu0 0.0
    %1237 = vmatprep.subr.mxu0 0.0
    %1238 = vmatpush1.msra.mxu0 0.0
    %1239 = vmatprep.subr.mxu0 0.0
    %1240 = vmatpush1.msra.mxu0 0.0
    %1241 = vmatprep.subr.mxu0 0.0
    %1242 = vmatpush1.msra.mxu0 0.0
    %1243 = vmatprep.subr.mxu0 0.0
    %1244 = vmatpush1.msra.mxu0 0.0
    %1245 = vmatprep.subr.mxu0 0.0
    %1246 = vmatpush1.msra.mxu0 %v1209
    %1247 = vmatprep.subr.mxu0 0.0
    %1248 = vmatpush1.msra.mxu0 %v1208
    %1249 = vmatprep.subr.mxu0 0.0
    %1250 = vmatpush1.msra.mxu0 %v1207
    %1251 = vmatprep.subr.mxu0 0.0
    %1252 = vmatpush1.msra.mxu0 %v1206
    %1253 = vmatprep.subr.mxu0 0.0
    %1254 = vmatpush2.msra.mxu0 0.0
    %1255 = vmatprep.subr.mxu0 0.0
    %1256 = vmatpush2.msra.mxu0 0.0
    %1257 = vmatprep.subr.mxu0 0.0
    %1258 = vmatpush2.msra.mxu0 0.0
    %1259 = vmatprep.subr.mxu0 0.0
    %1260 = vmatpush2.msra.mxu0 0.0
    %1261 = vmatprep.subr.mxu0 0.0
    %1262 = vmatpush2.msra.mxu0 0.0
    %1263 = vmatprep.subr.mxu0 0.0
    %1264 = vmatpush2.msra.mxu0 0.0
    %1265 = vmatprep.subr.mxu0 0.0
    %1266 = vmatpush2.msra.mxu0 0.0
    %1267 = vmatprep.subr.mxu0 0.0
    %1268 = vmatpush2.msra.mxu0 0.0
    %1269 = vmatprep.subr.mxu0 0.0
    %1270 = vmatpush2.msra.mxu0 0.0
    %1271 = vmatprep.subr.mxu0 0.0
    %1272 = vmatpush2.msra.mxu0 0.0
    %1273 = vmatprep.subr.mxu0 0.0
    %1274 = vmatpush2.msra.mxu0 0.0
    %1275 = vmatprep.subr.mxu0 0.0
    %1276 = vmatpush2.msra.mxu0 0.0
    %1277 = vmatprep.subr.mxu0 0.0
    %1278 = vmatpush2.msra.mxu0 0.0
    %1279 = vmatprep.subr.mxu0 0.0
    %1280 = vmatpush2.msra.mxu0 0.0
    %1281 = vmatprep.subr.mxu0 0.0
    %1282 = vmatpush2.msra.mxu0 0.0
    %1283 = vmatprep.subr.mxu0 0.0
    %1284 = vmatpush2.msra.mxu0 0.0
    %1285 = vmatprep.mubr.f32.mxu0 0.0
    %1286 = vmatmul.mubr.f32.gmra.mxu0 %v1216
    %v1287 = vpop.f32.mrf.mxu0
    %v1288 = vadd.f32 %v1214, %v1287
    %v1289 = vpop.f32.mrf.mxu0
    %1290 = vmatprep.mubr.f32.mxu0 0.0
    %1291 = vmatmul.mubr.f32.gmra.mxu0 %v1219
    %v1292 = vpop.f32.mrf.mxu0
    %v1293 = vadd.f32 %v1214, %v1292
    %v1294 = vpop.f32.mrf.mxu0
    %1295 = vdwg.mxu0
    %v1296 = vmax.f32 %v1288, 0.0
    %v1297 = vmax.f32 %v1293, 0.0
    %v1298 = vld [vmem:[%s12] sm:$0xff]
    %v1299 = vld [vmem:[%s12 + $0x8] sm:$0xff]
    %v1300 = vld [vmem:[%s12 + $0x10] sm:$0xff]
    %v1301 = vld [vmem:[%s12 + $0x18] sm:$0xff]
    %v1302 = vld [vmem:[%s12 + $0x20] sm:$0xff]
    %v1303 = vld [vmem:[%s12 + $0x28] sm:$0xff]
    %v1304 = vld [vmem:[%s12 + $0x30] sm:$0xff]
    %v1305 = vld [vmem:[%s12 + $0x38] sm:$0xff]
    %v1306 = vld [vmem:[%s12 + $0x40] sm:$0xff]
    %v1307 = vld [vmem:[%s12 + $0x48] sm:$0xff]
    %v1308 = vld [vmem:[%s12 + $0x50] sm:$0xff]
    %v1309 = vld [vmem:[%s12 + $0x58] sm:$0xff]
    %v1310 = vld [vmem:[%s12 + $0x60] sm:$0xff]
    %v1311 = vld [vmem:[%s12 + $0x68] sm:$0xff]
    %v1312 = vld [vmem:[%s12 + $0x70] sm:$0xff]
    %v1313 = vld [vmem:[%s12 + $0x78] sm:$0xff]
    %v1314 = vld [vmem:[%s13] sm:$0x1]
    %v1315 = vlaneseq
    %v1316 = vshrl.u32 %v1315, 7
    %v1317 = vsub.s32 0, %v1316
    %v1318 = vrot.slane %v1314, %v1317
    %1319 = vmatprep.subr.mxu0 0.0
    %1320 = vmatpush1.msra.mxu0 %v1313
    %1321 = vmatprep.subr.mxu0 0.0
    %1322 = vmatpush1.msra.mxu0 %v1312
    %1323 = vmatprep.subr.mxu0 0.0
    %1324 = vmatpush1.msra.mxu0 %v1311
    %1325 = vmatprep.subr.mxu0 0.0
    %1326 = vmatpush1.msra.mxu0 %v1310
    %1327 = vmatprep.subr.mxu0 0.0
    %1328 = vmatpush1.msra.mxu0 %v1309
    %1329 = vmatprep.subr.mxu0 0.0
    %1330 = vmatpush1.msra.mxu0 %v1308
    %1331 = vmatprep.subr.mxu0 0.0
    %1332 = vmatpush1.msra.mxu0 %v1307
    %1333 = vmatprep.subr.mxu0 0.0
    %1334 = vmatpush1.msra.mxu0 %v1306
    %1335 = vmatprep.subr.mxu0 0.0
    %1336 = vmatpush1.msra.mxu0 %v1305
    %1337 = vmatprep.subr.mxu0 0.0
    %1338 = vmatpush1.msra.mxu0 %v1304
    %1339 = vmatprep.subr.mxu0 0.0
    %1340 = vmatpush1.msra.mxu0 %v1303
    %1341 = vmatprep.subr.mxu0 0.0
    %1342 = vmatpush1.msra.mxu0 %v1302
    %1343 = vmatprep.subr.mxu0 0.0
    %1344 = vmatpush1.msra.mxu0 %v1301
    %1345 = vmatprep.subr.mxu0 0.0
    %1346 = vmatpush1.msra.mxu0 %v1300
    %1347 = vmatprep.subr.mxu0 0.0
    %1348 = vmatpush1.msra.mxu0 %v1299
    %1349 = vmatprep.subr.mxu0 0.0
    %1350 = vmatpush1.msra.mxu0 %v1298
    %1351 = vmatprep.subr.mxu0 0.0
    %1352 = vmatpush2.msra.mxu0 0.0
    %1353 = vmatprep.subr.mxu0 0.0
    %1354 = vmatpush2.msra.mxu0 0.0
    %1355 = vmatprep.subr.mxu0 0.0
    %1356 = vmatpush2.msra.mxu0 0.0
    %1357 = vmatprep.subr.mxu0 0.0
    %1358 = vmatpush2.msra.mxu0 0.0
    %1359 = vmatprep.subr.mxu0 0.0
    %1360 = vmatpush2.msra.mxu0 0.0
    %1361 = vmatprep.subr.mxu0 0.0
    %1362 = vmatpush2.msra.mxu0 0.0
    %1363 = vmatprep.subr.mxu0 0.0
    %1364 = vmatpush2.msra.mxu0 0.0
    %1365 = vmatprep.subr.mxu0 0.0
    %1366 = vmatpush2.msra.mxu0 0.0
    %1367 = vmatprep.subr.mxu0 0.0
    %1368 = vmatpush2.msra.mxu0 0.0
    %1369 = vmatprep.subr.mxu0 0.0
    %1370 = vmatpush2.msra.mxu0 0.0
    %1371 = vmatprep.subr.mxu0 0.0
    %1372 = vmatpush2.msra.mxu0 0.0
    %1373 = vmatprep.subr.mxu0 0.0
    %1374 = vmatpush2.msra.mxu0 0.0
    %1375 = vmatprep.subr.mxu0 0.0
    %1376 = vmatpush2.msra.mxu0 0.0
    %1377 = vmatprep.subr.mxu0 0.0
    %1378 = vmatpush2.msra.mxu0 0.0
    %1379 = vmatprep.subr.mxu0 0.0
    %1380 = vmatpush2.msra.mxu0 0.0
    %1381 = vmatprep.subr.mxu0 0.0
    %1382 = vmatpush2.msra.mxu0 0.0
    %1383 = vmatprep.mubr.f32.mxu0 0.0
    %1384 = vmatmul.mubr.f32.gmra.mxu0 %v1296
    %v1385 = vpop.f32.mrf.mxu0
    %v1386 = vadd.f32 %v1318, %v1385
    %v1387 = vpop.f32.mrf.mxu0
    %1388 = vmatprep.mubr.f32.mxu0 0.0
    %1389 = vmatmul.mubr.f32.gmra.mxu0 %v1297
    %v1390 = vpop.f32.mrf.mxu0
    %v1391 = vadd.f32 %v1318, %v1390
    %v1392 = vpop.f32.mrf.mxu0
    %1393 = vdwg.mxu0
    %v1394 = vadd.f32 %v1204, %v1386
    %v1395 = vadd.f32 %v1205, %v1391
    %v1396 = vld [vmem:[%s14] sm:$0x1]
    %v1397 = vld [vmem:[%s15] sm:$0x1]
    %v1398 = vsel %vm161, %v1394, 0.0
    %1399 = vadd.xlane.f32.xlu0 %v1398
    %v1400 = vpop.xlane.xlu0 %1399
    %v1401 = vsel %vm161, %v1395, 0.0
    %1402 = vadd.xlane.f32.xlu0 %v1401
    %v1403 = vpop.xlane.xlu0 %1402
    %v1404 = vmul.f32 %v1400, %v1173
    %v1405 = vmul.f32 %v1403, %v1173
    %v1406 = vsub.f32 %v1394, %v1404
    %v1407 = vsub.f32 %v1395, %v1405
    %v1408 = vmul.f32 %v1406, %v1406
    %v1409 = vmul.f32 %v1407, %v1407
    %v1410 = vsel %vm161, %v1408, 0.0
    %1411 = vadd.xlane.f32.xlu0 %v1410
    %v1412 = vpop.xlane.xlu0 %1411
    %v1413 = vsel %vm161, %v1409, 0.0
    %1414 = vadd.xlane.f32.xlu0 %v1413
    %v1415 = vpop.xlane.xlu0 %1414
    %v1416 = vmul.f32 %v1412, %v1173
    %v1417 = vmul.f32 %v1415, %v1173
    %v1418 = vadd.f32 %v1416, 1e-05
    %v1419 = vadd.f32 %v1417, 1e-05
    %v1420 = vrsqrt.pop %v1418
    %v1421 = vrsqrt.pop %v1419
    %v1422 = vmul.f32 %v1406, %v1420
    %v1423 = vmul.f32 %v1407, %v1421
    %v1424 = vlaneseq
    %v1425 = vshrl.u32 %v1424, 7
    %v1426 = vsub.s32 0, %v1425
    %v1427 = vrot.slane %v1396, %v1426
    %v1428 = vmul.f32 %v1422, %v1427
    %v1429 = vmul.f32 %v1423, %v1427
    %v1430 = vlaneseq
    %v1431 = vshrl.u32 %v1430, 7
    %v1432 = vsub.s32 0, %v1431
    %v1433 = vrot.slane %v1397, %v1432
    %v1434 = vadd.f32 %v1428, %v1433
    %v1435 = vadd.f32 %v1429, %v1433
    %s1436 = scalar_lea.vmem %s4, 32
    %v1437 = vld [vmem:[%s1436] sm:$0xff]
    %v1438 = vld [vmem:[%s1436 + $0x8] sm:$0xff]
    %v1439 = vld [vmem:[%s1436 + $0x10] sm:$0xff]
    %v1440 = vld [vmem:[%s1436 + $0x18] sm:$0xff]
    %v1441 = vld [vmem:[%s5 + $0x1] sm:$0x1]
    %v1442 = vlaneseq
    %v1443 = vshrl.u32 %v1442, 7
    %v1444 = vsub.s32 0, %v1443
    %v1445 = vrot.slane %v1441, %v1444
    %v1447 = vsel %vm161, %v1434, 0
    %v1450 = vsel %vm161, %v1435, 0
    %1452 = vmatprep.subr.mxu0 0.0
    %1453 = vmatpush1.msra.mxu0 0.0
    %1454 = vmatprep.subr.mxu0 0.0
    %1455 = vmatpush1.msra.mxu0 0.0
    %1456 = vmatprep.subr.mxu0 0.0
    %1457 = vmatpush1.msra.mxu0 0.0
    %1458 = vmatprep.subr.mxu0 0.0
    %1459 = vmatpush1.msra.mxu0 0.0
    %1460 = vmatprep.subr.mxu0 0.0
    %1461 = vmatpush1.msra.mxu0 0.0
    %1462 = vmatprep.subr.mxu0 0.0
    %1463 = vmatpush1.msra.mxu0 0.0
    %1464 = vmatprep.subr.mxu0 0.0
    %1465 = vmatpush1.msra.mxu0 0.0
    %1466 = vmatprep.subr.mxu0 0.0
    %1467 = vmatpush1.msra.mxu0 0.0
    %1468 = vmatprep.subr.mxu0 0.0
    %1469 = vmatpush1.msra.mxu0 0.0
    %1470 = vmatprep.subr.mxu0 0.0
    %1471 = vmatpush1.msra.mxu0 0.0
    %1472 = vmatprep.subr.mxu0 0.0
    %1473 = vmatpush1.msra.mxu0 0.0
    %1474 = vmatprep.subr.mxu0 0.0
    %1475 = vmatpush1.msra.mxu0 0.0
    %1476 = vmatprep.subr.mxu0 0.0
    %1477 = vmatpush1.msra.mxu0 %v1440
    %1478 = vmatprep.subr.mxu0 0.0
    %1479 = vmatpush1.msra.mxu0 %v1439
    %1480 = vmatprep.subr.mxu0 0.0
    %1481 = vmatpush1.msra.mxu0 %v1438
    %1482 = vmatprep.subr.mxu0 0.0
    %1483 = vmatpush1.msra.mxu0 %v1437
    %1484 = vmatprep.subr.mxu0 0.0
    %1485 = vmatpush2.msra.mxu0 0.0
    %1486 = vmatprep.subr.mxu0 0.0
    %1487 = vmatpush2.msra.mxu0 0.0
    %1488 = vmatprep.subr.mxu0 0.0
    %1489 = vmatpush2.msra.mxu0 0.0
    %1490 = vmatprep.subr.mxu0 0.0
    %1491 = vmatpush2.msra.mxu0 0.0
    %1492 = vmatprep.subr.mxu0 0.0
    %1493 = vmatpush2.msra.mxu0 0.0
    %1494 = vmatprep.subr.mxu0 0.0
    %1495 = vmatpush2.msra.mxu0 0.0
    %1496 = vmatprep.subr.mxu0 0.0
    %1497 = vmatpush2.msra.mxu0 0.0
    %1498 = vmatprep.subr.mxu0 0.0
    %1499 = vmatpush2.msra.mxu0 0.0
    %1500 = vmatprep.subr.mxu0 0.0
    %1501 = vmatpush2.msra.mxu0 0.0
    %1502 = vmatprep.subr.mxu0 0.0
    %1503 = vmatpush2.msra.mxu0 0.0
    %1504 = vmatprep.subr.mxu0 0.0
    %1505 = vmatpush2.msra.mxu0 0.0
    %1506 = vmatprep.subr.mxu0 0.0
    %1507 = vmatpush2.msra.mxu0 0.0
    %1508 = vmatprep.subr.mxu0 0.0
    %1509 = vmatpush2.msra.mxu0 0.0
    %1510 = vmatprep.subr.mxu0 0.0
    %1511 = vmatpush2.msra.mxu0 0.0
    %1512 = vmatprep.subr.mxu0 0.0
    %1513 = vmatpush2.msra.mxu0 0.0
    %1514 = vmatprep.subr.mxu0 0.0
    %1515 = vmatpush2.msra.mxu0 0.0
    %1516 = vmatprep.mubr.f32.mxu0 0.0
    %1517 = vmatmul.mubr.f32.gmra.mxu0 %v1447
    %v1518 = vpop.f32.mrf.mxu0
    %v1519 = vadd.f32 %v1445, %v1518
    %v1520 = vpop.f32.mrf.mxu0
    %1521 = vmatprep.mubr.f32.mxu0 0.0
    %1522 = vmatmul.mubr.f32.gmra.mxu0 %v1450
    %v1523 = vpop.f32.mrf.mxu0
    %v1524 = vadd.f32 %v1445, %v1523
    %v1525 = vpop.f32.mrf.mxu0
    %1526 = vdwg.mxu0
    %1529 = vrot.lane.b32.xlu0 %v1519, 96
    %v1530 = vpop.permute.xlu0 %1529
    %1531 = vrot.lane.b32.xlu0 %v1524, 96
    %v1532 = vpop.permute.xlu0 %1531
    %v1533 = vsel %vm249, %v1519, 0
    %v1535 = vsel %vm249, %v1524, 0
    %v1537 = vsel %vm249, %v1530, 0
    %v1539 = vsel %vm249, %v1532, 0
    %1541 = vmatprep.subr.mxu0 0.0
    %1542 = vmatpush1.xpose.msra.mxu0 0.0
    %1543 = vmatprep.subr.mxu0 0.0
    %1544 = vmatpush1.xpose.msra.mxu0 0.0
    %1545 = vmatprep.subr.mxu0 0.0
    %1546 = vmatpush1.xpose.msra.mxu0 0.0
    %1547 = vmatprep.subr.mxu0 0.0
    %1548 = vmatpush1.xpose.msra.mxu0 0.0
    %1549 = vmatprep.subr.mxu0 0.0
    %1550 = vmatpush1.xpose.msra.mxu0 0.0
    %1551 = vmatprep.subr.mxu0 0.0
    %1552 = vmatpush1.xpose.msra.mxu0 0.0
    %1553 = vmatprep.subr.mxu0 0.0
    %1554 = vmatpush1.xpose.msra.mxu0 0.0
    %1555 = vmatprep.subr.mxu0 0.0
    %1556 = vmatpush1.xpose.msra.mxu0 0.0
    %1557 = vmatprep.subr.mxu0 0.0
    %1558 = vmatpush1.xpose.msra.mxu0 0.0
    %1559 = vmatprep.subr.mxu0 0.0
    %1560 = vmatpush1.xpose.msra.mxu0 0.0
    %1561 = vmatprep.subr.mxu0 0.0
    %1562 = vmatpush1.xpose.msra.mxu0 0.0
    %1563 = vmatprep.subr.mxu0 0.0
    %1564 = vmatpush1.xpose.msra.mxu0 0.0
    %1565 = vmatprep.subr.mxu0 0.0
    %1566 = vmatpush1.xpose.msra.mxu0 0.0
    %1567 = vmatprep.subr.mxu0 0.0
    %1568 = vmatpush1.xpose.msra.mxu0 0.0
    %1569 = vmatprep.subr.mxu0 0.0
    %1570 = vmatpush1.xpose.msra.mxu0 %v1539
    %1571 = vmatprep.subr.mxu0 0.0
    %1572 = vmatpush1.xpose.msra.mxu0 %v1537
    %1573 = vmatprep.subr.mxu0 0.0
    %1574 = vmatpush2.xpose.msra.mxu0 0.0
    %1575 = vmatprep.subr.mxu0 0.0
    %1576 = vmatpush2.xpose.msra.mxu0 0.0
    %1577 = vmatprep.subr.mxu0 0.0
    %1578 = vmatpush2.xpose.msra.mxu0 0.0
    %1579 = vmatprep.subr.mxu0 0.0
    %1580 = vmatpush2.xpose.msra.mxu0 0.0
    %1581 = vmatprep.subr.mxu0 0.0
    %1582 = vmatpush2.xpose.msra.mxu0 0.0
    %1583 = vmatprep.subr.mxu0 0.0
    %1584 = vmatpush2.xpose.msra.mxu0 0.0
    %1585 = vmatprep.subr.mxu0 0.0
    %1586 = vmatpush2.xpose.msra.mxu0 0.0
    %1587 = vmatprep.subr.mxu0 0.0
    %1588 = vmatpush2.xpose.msra.mxu0 0.0
    %1589 = vmatprep.subr.mxu0 0.0
    %1590 = vmatpush2.xpose.msra.mxu0 0.0
    %1591 = vmatprep.subr.mxu0 0.0
    %1592 = vmatpush2.xpose.msra.mxu0 0.0
    %1593 = vmatprep.subr.mxu0 0.0
    %1594 = vmatpush2.xpose.msra.mxu0 0.0
    %1595 = vmatprep.subr.mxu0 0.0
    %1596 = vmatpush2.xpose.msra.mxu0 0.0
    %1597 = vmatprep.subr.mxu0 0.0
    %1598 = vmatpush2.xpose.msra.mxu0 0.0
    %1599 = vmatprep.subr.mxu0 0.0
    %1600 = vmatpush2.xpose.msra.mxu0 0.0
    %1601 = vmatprep.subr.mxu0 0.0
    %1602 = vmatpush2.xpose.msra.mxu0 0.0
    %1603 = vmatprep.subr.mxu0 0.0
    %1604 = vmatpush2.xpose.msra.mxu0 0.0
    %1605 = vmatprep.mubr.f32.mxu0 0.0
    %1606 = vmatmul.mubr.f32.gmra.mxu0 %v1533
    %v1607 = vpop.f32.mrf.mxu0
    %v1608 = vadd.f32 %v150, %v1607
    %v1609 = vpop.f32.mrf.mxu0
    %1610 = vmatprep.mubr.f32.mxu0 0.0
    %1611 = vmatmul.mubr.f32.gmra.mxu0 %v1535
    %v1612 = vpop.f32.mrf.mxu0
    %v1613 = vadd.f32 %v151, %v1612
    %v1614 = vpop.f32.mrf.mxu0
    %1615 = vdwg.mxu0
    %v1616 = vsel %vm68, %v1608, -inf
    %1617 = vmax.xlane.f32.xlu0 %v1616
    %v1618 = vpop.xlane.xlu0 %1617
    %v1619 = vsel %vm68, %v1613, -inf
    %1620 = vmax.xlane.f32.xlu0 %v1619
    %v1621 = vpop.xlane.xlu0 %1620
    %v1622 = vsub.f32 %v1608, %v1618
    %v1623 = vsub.f32 %v1613, %v1621
    %v1624 = vmul.f32 %v1622, 1.442695
    %v1625 = vpow.pop %v1624
    %v1626 = vmul.f32 %v1623, 1.442695
    %v1627 = vpow.pop %v1626
    %v1628 = vsel %vm68, %v1625, 0.0
    %1629 = vadd.xlane.f32.xlu0 %v1628
    %v1630 = vpop.xlane.xlu0 %1629
    %v1631 = vsel %vm68, %v1627, 0.0
    %1632 = vadd.xlane.f32.xlu0 %v1631
    %v1633 = vpop.xlane.xlu0 %1632
    %v1634 = vrcp.pop %v1630
    %v1635 = vrcp.pop %v1633
    %v1636 = vmul.f32 %v1625, %v1634
    %v1637 = vmul.f32 %v1627, %v1635
    %1638 = vrot.lane.b32.xlu0 %v1519, 64
    %v1639 = vpop.permute.xlu0 %1638
    %1640 = vrot.lane.b32.xlu0 %v1524, 64
    %v1641 = vpop.permute.xlu0 %1640
    %v1645 = vsel %vm68, %v1636, 0
    %v1648 = vsel %vm68, %v1637, 0
    %1650 = vmatprep.subr.mxu0 0.0
    %1651 = vmatpush1.msra.mxu0 0.0
    %1652 = vmatprep.subr.mxu0 0.0
    %1653 = vmatpush1.msra.mxu0 0.0
    %1654 = vmatprep.subr.mxu0 0.0
    %1655 = vmatpush1.msra.mxu0 0.0
    %1656 = vmatprep.subr.mxu0 0.0
    %1657 = vmatpush1.msra.mxu0 0.0
    %1658 = vmatprep.subr.mxu0 0.0
    %1659 = vmatpush1.msra.mxu0 0.0
    %1660 = vmatprep.subr.mxu0 0.0
    %1661 = vmatpush1.msra.mxu0 0.0
    %1662 = vmatprep.subr.mxu0 0.0
    %1663 = vmatpush1.msra.mxu0 0.0
    %1664 = vmatprep.subr.mxu0 0.0
    %1665 = vmatpush1.msra.mxu0 0.0
    %1666 = vmatprep.subr.mxu0 0.0
    %1667 = vmatpush1.msra.mxu0 0.0
    %1668 = vmatprep.subr.mxu0 0.0
    %1669 = vmatpush1.msra.mxu0 0.0
    %1670 = vmatprep.subr.mxu0 0.0
    %1671 = vmatpush1.msra.mxu0 0.0
    %1672 = vmatprep.subr.mxu0 0.0
    %1673 = vmatpush1.msra.mxu0 0.0
    %1674 = vmatprep.subr.mxu0 0.0
    %1675 = vmatpush1.msra.mxu0 0.0
    %1676 = vmatprep.subr.mxu0 0.0
    %1677 = vmatpush1.msra.mxu0 0.0
    %1678 = vmatprep.subr.mxu0 0.0
    %1679 = vmatpush1.msra.mxu0 %v1641
    %1680 = vmatprep.subr.mxu0 0.0
    %1681 = vmatpush1.msra.mxu0 %v1639
    %1682 = vmatprep.subr.mxu0 0.0
    %1683 = vmatpush2.msra.mxu0 0.0
    %1684 = vmatprep.subr.mxu0 0.0
    %1685 = vmatpush2.msra.mxu0 0.0
    %1686 = vmatprep.subr.mxu0 0.0
    %1687 = vmatpush2.msra.mxu0 0.0
    %1688 = vmatprep.subr.mxu0 0.0
    %1689 = vmatpush2.msra.mxu0 0.0
    %1690 = vmatprep.subr.mxu0 0.0
    %1691 = vmatpush2.msra.mxu0 0.0
    %1692 = vmatprep.subr.mxu0 0.0
    %1693 = vmatpush2.msra.mxu0 0.0
    %1694 = vmatprep.subr.mxu0 0.0
    %1695 = vmatpush2.msra.mxu0 0.0
    %1696 = vmatprep.subr.mxu0 0.0
    %1697 = vmatpush2.msra.mxu0 0.0
    %1698 = vmatprep.subr.mxu0 0.0
    %1699 = vmatpush2.msra.mxu0 0.0
    %1700 = vmatprep.subr.mxu0 0.0
    %1701 = vmatpush2.msra.mxu0 0.0
    %1702 = vmatprep.subr.mxu0 0.0
    %1703 = vmatpush2.msra.mxu0 0.0
    %1704 = vmatprep.subr.mxu0 0.0
    %1705 = vmatpush2.msra.mxu0 0.0
    %1706 = vmatprep.subr.mxu0 0.0
    %1707 = vmatpush2.msra.mxu0 0.0
    %1708 = vmatprep.subr.mxu0 0.0
    %1709 = vmatpush2.msra.mxu0 0.0
    %1710 = vmatprep.subr.mxu0 0.0
    %1711 = vmatpush2.msra.mxu0 0.0
    %1712 = vmatprep.subr.mxu0 0.0
    %1713 = vmatpush2.msra.mxu0 0.0
    %1714 = vmatprep.mubr.f32.mxu0 0.0
    %1715 = vmatmul.mubr.f32.gmra.mxu0 %v1645
    %v1716 = vpop.f32.mrf.mxu0
    %v1717 = vadd.f32 0.0, %v1716
    %v1718 = vpop.f32.mrf.mxu0
    %1719 = vmatprep.mubr.f32.mxu0 0.0
    %1720 = vmatmul.mubr.f32.gmra.mxu0 %v1648
    %v1721 = vpop.f32.mrf.mxu0
    %v1722 = vadd.f32 0.0, %v1721
    %v1723 = vpop.f32.mrf.mxu0
    %1724 = vdwg.mxu0
    %1725 = vrot.lane.b32.xlu0 %v1519, 120
    %v1726 = vpop.permute.xlu0 %1725
    %1727 = vrot.lane.b32.xlu0 %v1524, 120
    %v1728 = vpop.permute.xlu0 %1727
    %1729 = vrot.lane.b32.xlu0 %v1519, 88
    %v1730 = vpop.permute.xlu0 %1729
    %1731 = vrot.lane.b32.xlu0 %v1524, 88
    %v1732 = vpop.permute.xlu0 %1731
    %v1733 = vsel %vm249, %v1726, 0
    %v1735 = vsel %vm249, %v1728, 0
    %v1737 = vsel %vm249, %v1730, 0
    %v1739 = vsel %vm249, %v1732, 0
    %1741 = vmatprep.subr.mxu0 0.0
    %1742 = vmatpush1.xpose.msra.mxu0 0.0
    %1743 = vmatprep.subr.mxu0 0.0
    %1744 = vmatpush1.xpose.msra.mxu0 0.0
    %1745 = vmatprep.subr.mxu0 0.0
    %1746 = vmatpush1.xpose.msra.mxu0 0.0
    %1747 = vmatprep.subr.mxu0 0.0
    %1748 = vmatpush1.xpose.msra.mxu0 0.0
    %1749 = vmatprep.subr.mxu0 0.0
    %1750 = vmatpush1.xpose.msra.mxu0 0.0
    %1751 = vmatprep.subr.mxu0 0.0
    %1752 = vmatpush1.xpose.msra.mxu0 0.0
    %1753 = vmatprep.subr.mxu0 0.0
    %1754 = vmatpush1.xpose.msra.mxu0 0.0
    %1755 = vmatprep.subr.mxu0 0.0
    %1756 = vmatpush1.xpose.msra.mxu0 0.0
    %1757 = vmatprep.subr.mxu0 0.0
    %1758 = vmatpush1.xpose.msra.mxu0 0.0
    %1759 = vmatprep.subr.mxu0 0.0
    %1760 = vmatpush1.xpose.msra.mxu0 0.0
    %1761 = vmatprep.subr.mxu0 0.0
    %1762 = vmatpush1.xpose.msra.mxu0 0.0
    %1763 = vmatprep.subr.mxu0 0.0
    %1764 = vmatpush1.xpose.msra.mxu0 0.0
    %1765 = vmatprep.subr.mxu0 0.0
    %1766 = vmatpush1.xpose.msra.mxu0 0.0
    %1767 = vmatprep.subr.mxu0 0.0
    %1768 = vmatpush1.xpose.msra.mxu0 0.0
    %1769 = vmatprep.subr.mxu0 0.0
    %1770 = vmatpush1.xpose.msra.mxu0 %v1739
    %1771 = vmatprep.subr.mxu0 0.0
    %1772 = vmatpush1.xpose.msra.mxu0 %v1737
    %1773 = vmatprep.subr.mxu0 0.0
    %1774 = vmatpush2.xpose.msra.mxu0 0.0
    %1775 = vmatprep.subr.mxu0 0.0
    %1776 = vmatpush2.xpose.msra.mxu0 0.0
    %1777 = vmatprep.subr.mxu0 0.0
    %1778 = vmatpush2.xpose.msra.mxu0 0.0
    %1779 = vmatprep.subr.mxu0 0.0
    %1780 = vmatpush2.xpose.msra.mxu0 0.0
    %1781 = vmatprep.subr.mxu0 0.0
    %1782 = vmatpush2.xpose.msra.mxu0 0.0
    %1783 = vmatprep.subr.mxu0 0.0
    %1784 = vmatpush2.xpose.msra.mxu0 0.0
    %1785 = vmatprep.subr.mxu0 0.0
    %1786 = vmatpush2.xpose.msra.mxu0 0.0
    %1787 = vmatprep.subr.mxu0 0.0
    %1788 = vmatpush2.xpose.msra.mxu0 0.0
    %1789 = vmatprep.subr.mxu0 0.0
    %1790 = vmatpush2.xpose.msra.mxu0 0.0
    %1791 = vmatprep.subr.mxu0 0.0
    %1792 = vmatpush2.xpose.msra.mxu0 0.0
    %1793 = vmatprep.subr.mxu0 0.0
    %1794 = vmatpush2.xpose.msra.mxu0 0.0
    %1795 = vmatprep.subr.mxu0 0.0
    %1796 = vmatpush2.xpose.msra.mxu0 0.0
    %1797 = vmatprep.subr.mxu0 0.0
    %1798 = vmatpush2.xpose.msra.mxu0 0.0
    %1799 = vmatprep.subr.mxu0 0.0
    %1800 = vmatpush2.xpose.msra.mxu0 0.0
    %1801 = vmatprep.subr.mxu0 0.0
    %1802 = vmatpush2.xpose.msra.mxu0 0.0
    %1803 = vmatprep.subr.mxu0 0.0
    %1804 = vmatpush2.xpose.msra.mxu0 0.0
    %1805 = vmatprep.mubr.f32.mxu0 0.0
    %1806 = vmatmul.mubr.f32.gmra.mxu0 %v1733
    %v1807 = vpop.f32.mrf.mxu0
    %v1808 = vadd.f32 %v150, %v1807
    %v1809 = vpop.f32.mrf.mxu0
    %1810 = vmatprep.mubr.f32.mxu0 0.0
    %1811 = vmatmul.mubr.f32.gmra.mxu0 %v1735
    %v1812 = vpop.f32.mrf.mxu0
    %v1813 = vadd.f32 %v151, %v1812
    %v1814 = vpop.f32.mrf.mxu0
    %1815 = vdwg.mxu0
    %v1816 = vsel %vm68, %v1808, -inf
    %1817 = vmax.xlane.f32.xlu0 %v1816
    %v1818 = vpop.xlane.xlu0 %1817
    %v1819 = vsel %vm68, %v1813, -inf
    %1820 = vmax.xlane.f32.xlu0 %v1819
    %v1821 = vpop.xlane.xlu0 %1820
    %v1822 = vsub.f32 %v1808, %v1818
    %v1823 = vsub.f32 %v1813, %v1821
    %v1824 = vmul.f32 %v1822, 1.442695
    %v1825 = vpow.pop %v1824
    %v1826 = vmul.f32 %v1823, 1.442695
    %v1827 = vpow.pop %v1826
    %v1828 = vsel %vm68, %v1825, 0.0
    %1829 = vadd.xlane.f32.xlu0 %v1828
    %v1830 = vpop.xlane.xlu0 %1829
    %v1831 = vsel %vm68, %v1827, 0.0
    %1832 = vadd.xlane.f32.xlu0 %v1831
    %v1833 = vpop.xlane.xlu0 %1832
    %v1834 = vrcp.pop %v1830
    %v1835 = vrcp.pop %v1833
    %v1836 = vmul.f32 %v1825, %v1834
    %v1837 = vmul.f32 %v1827, %v1835
    %1838 = vrot.lane.b32.xlu0 %v1519, 56
    %v1839 = vpop.permute.xlu0 %1838
    %1840 = vrot.lane.b32.xlu0 %v1524, 56
    %v1841 = vpop.permute.xlu0 %1840
    %v1845 = vsel %vm68, %v1836, 0
    %v1848 = vsel %vm68, %v1837, 0
    %1850 = vmatprep.subr.mxu0 0.0
    %1851 = vmatpush1.msra.mxu0 0.0
    %1852 = vmatprep.subr.mxu0 0.0
    %1853 = vmatpush1.msra.mxu0 0.0
    %1854 = vmatprep.subr.mxu0 0.0
    %1855 = vmatpush1.msra.mxu0 0.0
    %1856 = vmatprep.subr.mxu0 0.0
    %1857 = vmatpush1.msra.mxu0 0.0
    %1858 = vmatprep.subr.mxu0 0.0
    %1859 = vmatpush1.msra.mxu0 0.0
    %1860 = vmatprep.subr.mxu0 0.0
    %1861 = vmatpush1.msra.mxu0 0.0
    %1862 = vmatprep.subr.mxu0 0.0
    %1863 = vmatpush1.msra.mxu0 0.0
    %1864 = vmatprep.subr.mxu0 0.0
    %1865 = vmatpush1.msra.mxu0 0.0
    %1866 = vmatprep.subr.mxu0 0.0
    %1867 = vmatpush1.msra.mxu0 0.0
    %1868 = vmatprep.subr.mxu0 0.0
    %1869 = vmatpush1.msra.mxu0 0.0
    %1870 = vmatprep.subr.mxu0 0.0
    %1871 = vmatpush1.msra.mxu0 0.0
    %1872 = vmatprep.subr.mxu0 0.0
    %1873 = vmatpush1.msra.mxu0 0.0
    %1874 = vmatprep.subr.mxu0 0.0
    %1875 = vmatpush1.msra.mxu0 0.0
    %1876 = vmatprep.subr.mxu0 0.0
    %1877 = vmatpush1.msra.mxu0 0.0
    %1878 = vmatprep.subr.mxu0 0.0
    %1879 = vmatpush1.msra.mxu0 %v1841
    %1880 = vmatprep.subr.mxu0 0.0
    %1881 = vmatpush1.msra.mxu0 %v1839
    %1882 = vmatprep.subr.mxu0 0.0
    %1883 = vmatpush2.msra.mxu0 0.0
    %1884 = vmatprep.subr.mxu0 0.0
    %1885 = vmatpush2.msra.mxu0 0.0
    %1886 = vmatprep.subr.mxu0 0.0
    %1887 = vmatpush2.msra.mxu0 0.0
    %1888 = vmatprep.subr.mxu0 0.0
    %1889 = vmatpush2.msra.mxu0 0.0
    %1890 = vmatprep.subr.mxu0 0.0
    %1891 = vmatpush2.msra.mxu0 0.0
    %1892 = vmatprep.subr.mxu0 0.0
    %1893 = vmatpush2.msra.mxu0 0.0
    %1894 = vmatprep.subr.mxu0 0.0
    %1895 = vmatpush2.msra.mxu0 0.0
    %1896 = vmatprep.subr.mxu0 0.0
    %1897 = vmatpush2.msra.mxu0 0.0
    %1898 = vmatprep.subr.mxu0 0.0
    %1899 = vmatpush2.msra.mxu0 0.0
    %1900 = vmatprep.subr.mxu0 0.0
    %1901 = vmatpush2.msra.mxu0 0.0
    %1902 = vmatprep.subr.mxu0 0.0
    %1903 = vmatpush2.msra.mxu0 0.0
    %1904 = vmatprep.subr.mxu0 0.0
    %1905 = vmatpush2.msra.mxu0 0.0
    %1906 = vmatprep.subr.mxu0 0.0
    %1907 = vmatpush2.msra.mxu0 0.0
    %1908 = vmatprep.subr.mxu0 0.0
    %1909 = vmatpush2.msra.mxu0 0.0
    %1910 = vmatprep.subr.mxu0 0.0
    %1911 = vmatpush2.msra.mxu0 0.0
    %1912 = vmatprep.subr.mxu0 0.0
    %1913 = vmatpush2.msra.mxu0 0.0
    %1914 = vmatprep.mubr.f32.mxu0 0.0
    %1915 = vmatmul.mubr.f32.gmra.mxu0 %v1845
    %v1916 = vpop.f32.mrf.mxu0
    %v1917 = vadd.f32 0.0, %v1916
    %v1918 = vpop.f32.mrf.mxu0
    %1919 = vmatprep.mubr.f32.mxu0 0.0
    %1920 = vmatmul.mubr.f32.gmra.mxu0 %v1848
    %v1921 = vpop.f32.mrf.mxu0
    %v1922 = vadd.f32 0.0, %v1921
    %v1923 = vpop.f32.mrf.mxu0
    %1924 = vdwg.mxu0
    %1925 = vrot.lane.b32.xlu0 %v1519, 112
    %v1926 = vpop.permute.xlu0 %1925
    %1927 = vrot.lane.b32.xlu0 %v1524, 112
    %v1928 = vpop.permute.xlu0 %1927
    %1929 = vrot.lane.b32.xlu0 %v1519, 80
    %v1930 = vpop.permute.xlu0 %1929
    %1931 = vrot.lane.b32.xlu0 %v1524, 80
    %v1932 = vpop.permute.xlu0 %1931
    %v1933 = vsel %vm249, %v1926, 0
    %v1935 = vsel %vm249, %v1928, 0
    %v1937 = vsel %vm249, %v1930, 0
    %v1939 = vsel %vm249, %v1932, 0
    %1941 = vmatprep.subr.mxu0 0.0
    %1942 = vmatpush1.xpose.msra.mxu0 0.0
    %1943 = vmatprep.subr.mxu0 0.0
    %1944 = vmatpush1.xpose.msra.mxu0 0.0
    %1945 = vmatprep.subr.mxu0 0.0
    %1946 = vmatpush1.xpose.msra.mxu0 0.0
    %1947 = vmatprep.subr.mxu0 0.0
    %1948 = vmatpush1.xpose.msra.mxu0 0.0
    %1949 = vmatprep.subr.mxu0 0.0
    %1950 = vmatpush1.xpose.msra.mxu0 0.0
    %1951 = vmatprep.subr.mxu0 0.0
    %1952 = vmatpush1.xpose.msra.mxu0 0.0
    %1953 = vmatprep.subr.mxu0 0.0
    %1954 = vmatpush1.xpose.msra.mxu0 0.0
    %1955 = vmatprep.subr.mxu0 0.0
    %1956 = vmatpush1.xpose.msra.mxu0 0.0
    %1957 = vmatprep.subr.mxu0 0.0
    %1958 = vmatpush1.xpose.msra.mxu0 0.0
    %1959 = vmatprep.subr.mxu0 0.0
    %1960 = vmatpush1.xpose.msra.mxu0 0.0
    %1961 = vmatprep.subr.mxu0 0.0
    %1962 = vmatpush1.xpose.msra.mxu0 0.0
    %1963 = vmatprep.subr.mxu0 0.0
    %1964 = vmatpush1.xpose.msra.mxu0 0.0
    %1965 = vmatprep.subr.mxu0 0.0
    %1966 = vmatpush1.xpose.msra.mxu0 0.0
    %1967 = vmatprep.subr.mxu0 0.0
    %1968 = vmatpush1.xpose.msra.mxu0 0.0
    %1969 = vmatprep.subr.mxu0 0.0
    %1970 = vmatpush1.xpose.msra.mxu0 %v1939
    %1971 = vmatprep.subr.mxu0 0.0
    %1972 = vmatpush1.xpose.msra.mxu0 %v1937
    %1973 = vmatprep.subr.mxu0 0.0
    %1974 = vmatpush2.xpose.msra.mxu0 0.0
    %1975 = vmatprep.subr.mxu0 0.0
    %1976 = vmatpush2.xpose.msra.mxu0 0.0
    %1977 = vmatprep.subr.mxu0 0.0
    %1978 = vmatpush2.xpose.msra.mxu0 0.0
    %1979 = vmatprep.subr.mxu0 0.0
    %1980 = vmatpush2.xpose.msra.mxu0 0.0
    %1981 = vmatprep.subr.mxu0 0.0
    %1982 = vmatpush2.xpose.msra.mxu0 0.0
    %1983 = vmatprep.subr.mxu0 0.0
    %1984 = vmatpush2.xpose.msra.mxu0 0.0
    %1985 = vmatprep.subr.mxu0 0.0
    %1986 = vmatpush2.xpose.msra.mxu0 0.0
    %1987 = vmatprep.subr.mxu0 0.0
    %1988 = vmatpush2.xpose.msra.mxu0 0.0
    %1989 = vmatprep.subr.mxu0 0.0
    %1990 = vmatpush2.xpose.msra.mxu0 0.0
    %1991 = vmatprep.subr.mxu0 0.0
    %1992 = vmatpush2.xpose.msra.mxu0 0.0
    %1993 = vmatprep.subr.mxu0 0.0
    %1994 = vmatpush2.xpose.msra.mxu0 0.0
    %1995 = vmatprep.subr.mxu0 0.0
    %1996 = vmatpush2.xpose.msra.mxu0 0.0
    %1997 = vmatprep.subr.mxu0 0.0
    %1998 = vmatpush2.xpose.msra.mxu0 0.0
    %1999 = vmatprep.subr.mxu0 0.0
    %2000 = vmatpush2.xpose.msra.mxu0 0.0
    %2001 = vmatprep.subr.mxu0 0.0
    %2002 = vmatpush2.xpose.msra.mxu0 0.0
    %2003 = vmatprep.subr.mxu0 0.0
    %2004 = vmatpush2.xpose.msra.mxu0 0.0
    %2005 = vmatprep.mubr.f32.mxu0 0.0
    %2006 = vmatmul.mubr.f32.gmra.mxu0 %v1933
    %v2007 = vpop.f32.mrf.mxu0
    %v2008 = vadd.f32 %v150, %v2007
    %v2009 = vpop.f32.mrf.mxu0
    %2010 = vmatprep.mubr.f32.mxu0 0.0
    %2011 = vmatmul.mubr.f32.gmra.mxu0 %v1935
    %v2012 = vpop.f32.mrf.mxu0
    %v2013 = vadd.f32 %v151, %v2012
    %v2014 = vpop.f32.mrf.mxu0
    %2015 = vdwg.mxu0
    %v2016 = vsel %vm68, %v2008, -inf
    %2017 = vmax.xlane.f32.xlu0 %v2016
    %v2018 = vpop.xlane.xlu0 %2017
    %v2019 = vsel %vm68, %v2013, -inf
    %2020 = vmax.xlane.f32.xlu0 %v2019
    %v2021 = vpop.xlane.xlu0 %2020
    %v2022 = vsub.f32 %v2008, %v2018
    %v2023 = vsub.f32 %v2013, %v2021
    %v2024 = vmul.f32 %v2022, 1.442695
    %v2025 = vpow.pop %v2024
    %v2026 = vmul.f32 %v2023, 1.442695
    %v2027 = vpow.pop %v2026
    %v2028 = vsel %vm68, %v2025, 0.0
    %2029 = vadd.xlane.f32.xlu0 %v2028
    %v2030 = vpop.xlane.xlu0 %2029
    %v2031 = vsel %vm68, %v2027, 0.0
    %2032 = vadd.xlane.f32.xlu0 %v2031
    %v2033 = vpop.xlane.xlu0 %2032
    %v2034 = vrcp.pop %v2030
    %v2035 = vrcp.pop %v2033
    %v2036 = vmul.f32 %v2025, %v2034
    %v2037 = vmul.f32 %v2027, %v2035
    %2038 = vrot.lane.b32.xlu0 %v1519, 48
    %v2039 = vpop.permute.xlu0 %2038
    %2040 = vrot.lane.b32.xlu0 %v1524, 48
    %v2041 = vpop.permute.xlu0 %2040
    %v2045 = vsel %vm68, %v2036, 0
    %v2048 = vsel %vm68, %v2037, 0
    %2050 = vmatprep.subr.mxu0 0.0
    %2051 = vmatpush1.msra.mxu0 0.0
    %2052 = vmatprep.subr.mxu0 0.0
    %2053 = vmatpush1.msra.mxu0 0.0
    %2054 = vmatprep.subr.mxu0 0.0
    %2055 = vmatpush1.msra.mxu0 0.0
    %2056 = vmatprep.subr.mxu0 0.0
    %2057 = vmatpush1.msra.mxu0 0.0
    %2058 = vmatprep.subr.mxu0 0.0
    %2059 = vmatpush1.msra.mxu0 0.0
    %2060 = vmatprep.subr.mxu0 0.0
    %2061 = vmatpush1.msra.mxu0 0.0
    %2062 = vmatprep.subr.mxu0 0.0
    %2063 = vmatpush1.msra.mxu0 0.0
    %2064 = vmatprep.subr.mxu0 0.0
    %2065 = vmatpush1.msra.mxu0 0.0
    %2066 = vmatprep.subr.mxu0 0.0
    %2067 = vmatpush1.msra.mxu0 0.0
    %2068 = vmatprep.subr.mxu0 0.0
    %2069 = vmatpush1.msra.mxu0 0.0
    %2070 = vmatprep.subr.mxu0 0.0
    %2071 = vmatpush1.msra.mxu0 0.0
    %2072 = vmatprep.subr.mxu0 0.0
    %2073 = vmatpush1.msra.mxu0 0.0
    %2074 = vmatprep.subr.mxu0 0.0
    %2075 = vmatpush1.msra.mxu0 0.0
    %2076 = vmatprep.subr.mxu0 0.0
    %2077 = vmatpush1.msra.mxu0 0.0
    %2078 = vmatprep.subr.mxu0 0.0
    %2079 = vmatpush1.msra.mxu0 %v2041
    %2080 = vmatprep.subr.mxu0 0.0
    %2081 = vmatpush1.msra.mxu0 %v2039
    %2082 = vmatprep.subr.mxu0 0.0
    %2083 = vmatpush2.msra.mxu0 0.0
    %2084 = vmatprep.subr.mxu0 0.0
    %2085 = vmatpush2.msra.mxu0 0.0
    %2086 = vmatprep.subr.mxu0 0.0
    %2087 = vmatpush2.msra.mxu0 0.0
    %2088 = vmatprep.subr.mxu0 0.0
    %2089 = vmatpush2.msra.mxu0 0.0
    %2090 = vmatprep.subr.mxu0 0.0
    %2091 = vmatpush2.msra.mxu0 0.0
    %2092 = vmatprep.subr.mxu0 0.0
    %2093 = vmatpush2.msra.mxu0 0.0
    %2094 = vmatprep.subr.mxu0 0.0
    %2095 = vmatpush2.msra.mxu0 0.0
    %2096 = vmatprep.subr.mxu0 0.0
    %2097 = vmatpush2.msra.mxu0 0.0
    %2098 = vmatprep.subr.mxu0 0.0
    %2099 = vmatpush2.msra.mxu0 0.0
    %2100 = vmatprep.subr.mxu0 0.0
    %2101 = vmatpush2.msra.mxu0 0.0
    %2102 = vmatprep.subr.mxu0 0.0
    %2103 = vmatpush2.msra.mxu0 0.0
    %2104 = vmatprep.subr.mxu0 0.0
    %2105 = vmatpush2.msra.mxu0 0.0
    %2106 = vmatprep.subr.mxu0 0.0
    %2107 = vmatpush2.msra.mxu0 0.0
    %2108 = vmatprep.subr.mxu0 0.0
    %2109 = vmatpush2.msra.mxu0 0.0
    %2110 = vmatprep.subr.mxu0 0.0
    %2111 = vmatpush2.msra.mxu0 0.0
    %2112 = vmatprep.subr.mxu0 0.0
    %2113 = vmatpush2.msra.mxu0 0.0
    %2114 = vmatprep.mubr.f32.mxu0 0.0
    %2115 = vmatmul.mubr.f32.gmra.mxu0 %v2045
    %v2116 = vpop.f32.mrf.mxu0
    %v2117 = vadd.f32 0.0, %v2116
    %v2118 = vpop.f32.mrf.mxu0
    %2119 = vmatprep.mubr.f32.mxu0 0.0
    %2120 = vmatmul.mubr.f32.gmra.mxu0 %v2048
    %v2121 = vpop.f32.mrf.mxu0
    %v2122 = vadd.f32 0.0, %v2121
    %v2123 = vpop.f32.mrf.mxu0
    %2124 = vdwg.mxu0
    %2125 = vrot.lane.b32.xlu0 %v1519, 104
    %v2126 = vpop.permute.xlu0 %2125
    %2127 = vrot.lane.b32.xlu0 %v1524, 104
    %v2128 = vpop.permute.xlu0 %2127
    %2129 = vrot.lane.b32.xlu0 %v1519, 72
    %v2130 = vpop.permute.xlu0 %2129
    %2131 = vrot.lane.b32.xlu0 %v1524, 72
    %v2132 = vpop.permute.xlu0 %2131
    %v2133 = vsel %vm249, %v2126, 0
    %v2135 = vsel %vm249, %v2128, 0
    %v2137 = vsel %vm249, %v2130, 0
    %v2139 = vsel %vm249, %v2132, 0
    %2141 = vmatprep.subr.mxu0 0.0
    %2142 = vmatpush1.xpose.msra.mxu0 0.0
    %2143 = vmatprep.subr.mxu0 0.0
    %2144 = vmatpush1.xpose.msra.mxu0 0.0
    %2145 = vmatprep.subr.mxu0 0.0
    %2146 = vmatpush1.xpose.msra.mxu0 0.0
    %2147 = vmatprep.subr.mxu0 0.0
    %2148 = vmatpush1.xpose.msra.mxu0 0.0
    %2149 = vmatprep.subr.mxu0 0.0
    %2150 = vmatpush1.xpose.msra.mxu0 0.0
    %2151 = vmatprep.subr.mxu0 0.0
    %2152 = vmatpush1.xpose.msra.mxu0 0.0
    %2153 = vmatprep.subr.mxu0 0.0
    %2154 = vmatpush1.xpose.msra.mxu0 0.0
    %2155 = vmatprep.subr.mxu0 0.0
    %2156 = vmatpush1.xpose.msra.mxu0 0.0
    %2157 = vmatprep.subr.mxu0 0.0
    %2158 = vmatpush1.xpose.msra.mxu0 0.0
    %2159 = vmatprep.subr.mxu0 0.0
    %2160 = vmatpush1.xpose.msra.mxu0 0.0
    %2161 = vmatprep.subr.mxu0 0.0
    %2162 = vmatpush1.xpose.msra.mxu0 0.0
    %2163 = vmatprep.subr.mxu0 0.0
    %2164 = vmatpush1.xpose.msra.mxu0 0.0
    %2165 = vmatprep.subr.mxu0 0.0
    %2166 = vmatpush1.xpose.msra.mxu0 0.0
    %2167 = vmatprep.subr.mxu0 0.0
    %2168 = vmatpush1.xpose.msra.mxu0 0.0
    %2169 = vmatprep.subr.mxu0 0.0
    %2170 = vmatpush1.xpose.msra.mxu0 %v2139
    %2171 = vmatprep.subr.mxu0 0.0
    %2172 = vmatpush1.xpose.msra.mxu0 %v2137
    %2173 = vmatprep.subr.mxu0 0.0
    %2174 = vmatpush2.xpose.msra.mxu0 0.0
    %2175 = vmatprep.subr.mxu0 0.0
    %2176 = vmatpush2.xpose.msra.mxu0 0.0
    %2177 = vmatprep.subr.mxu0 0.0
    %2178 = vmatpush2.xpose.msra.mxu0 0.0
    %2179 = vmatprep.subr.mxu0 0.0
    %2180 = vmatpush2.xpose.msra.mxu0 0.0
    %2181 = vmatprep.subr.mxu0 0.0
    %2182 = vmatpush2.xpose.msra.mxu0 0.0
    %2183 = vmatprep.subr.mxu0 0.0
    %2184 = vmatpush2.xpose.msra.mxu0 0.0
    %2185 = vmatprep.subr.mxu0 0.0
    %2186 = vmatpush2.xpose.msra.mxu0 0.0
    %2187 = vmatprep.subr.mxu0 0.0
    %2188 = vmatpush2.xpose.msra.mxu0 0.0
    %2189 = vmatprep.subr.mxu0 0.0
    %2190 = vmatpush2.xpose.msra.mxu0 0.0
    %2191 = vmatprep.subr.mxu0 0.0
    %2192 = vmatpush2.xpose.msra.mxu0 0.0
    %2193 = vmatprep.subr.mxu0 0.0
    %2194 = vmatpush2.xpose.msra.mxu0 0.0
    %2195 = vmatprep.subr.mxu0 0.0
    %2196 = vmatpush2.xpose.msra.mxu0 0.0
    %2197 = vmatprep.subr.mxu0 0.0
    %2198 = vmatpush2.xpose.msra.mxu0 0.0
    %2199 = vmatprep.subr.mxu0 0.0
    %2200 = vmatpush2.xpose.msra.mxu0 0.0
    %2201 = vmatprep.subr.mxu0 0.0
    %2202 = vmatpush2.xpose.msra.mxu0 0.0
    %2203 = vmatprep.subr.mxu0 0.0
    %2204 = vmatpush2.xpose.msra.mxu0 0.0
    %2205 = vmatprep.mubr.f32.mxu0 0.0
    %2206 = vmatmul.mubr.f32.gmra.mxu0 %v2133
    %v2207 = vpop.f32.mrf.mxu0
    %v2208 = vadd.f32 %v150, %v2207
    %v2209 = vpop.f32.mrf.mxu0
    %2210 = vmatprep.mubr.f32.mxu0 0.0
    %2211 = vmatmul.mubr.f32.gmra.mxu0 %v2135
    %v2212 = vpop.f32.mrf.mxu0
    %v2213 = vadd.f32 %v151, %v2212
    %v2214 = vpop.f32.mrf.mxu0
    %2215 = vdwg.mxu0
    %v2216 = vsel %vm68, %v2208, -inf
    %2217 = vmax.xlane.f32.xlu0 %v2216
    %v2218 = vpop.xlane.xlu0 %2217
    %v2219 = vsel %vm68, %v2213, -inf
    %2220 = vmax.xlane.f32.xlu0 %v2219
    %v2221 = vpop.xlane.xlu0 %2220
    %v2222 = vsub.f32 %v2208, %v2218
    %v2223 = vsub.f32 %v2213, %v2221
    %v2224 = vmul.f32 %v2222, 1.442695
    %v2225 = vpow.pop %v2224
    %v2226 = vmul.f32 %v2223, 1.442695
    %v2227 = vpow.pop %v2226
    %v2228 = vsel %vm68, %v2225, 0.0
    %2229 = vadd.xlane.f32.xlu0 %v2228
    %v2230 = vpop.xlane.xlu0 %2229
    %v2231 = vsel %vm68, %v2227, 0.0
    %2232 = vadd.xlane.f32.xlu0 %v2231
    %v2233 = vpop.xlane.xlu0 %2232
    %v2234 = vrcp.pop %v2230
    %v2235 = vrcp.pop %v2233
    %v2236 = vmul.f32 %v2225, %v2234
    %v2237 = vmul.f32 %v2227, %v2235
    %2238 = vrot.lane.b32.xlu0 %v1519, 40
    %v2239 = vpop.permute.xlu0 %2238
    %2240 = vrot.lane.b32.xlu0 %v1524, 40
    %v2241 = vpop.permute.xlu0 %2240
    %v2245 = vsel %vm68, %v2236, 0
    %v2248 = vsel %vm68, %v2237, 0
    %2250 = vmatprep.subr.mxu0 0.0
    %2251 = vmatpush1.msra.mxu0 0.0
    %2252 = vmatprep.subr.mxu0 0.0
    %2253 = vmatpush1.msra.mxu0 0.0
    %2254 = vmatprep.subr.mxu0 0.0
    %2255 = vmatpush1.msra.mxu0 0.0
    %2256 = vmatprep.subr.mxu0 0.0
    %2257 = vmatpush1.msra.mxu0 0.0
    %2258 = vmatprep.subr.mxu0 0.0
    %2259 = vmatpush1.msra.mxu0 0.0
    %2260 = vmatprep.subr.mxu0 0.0
    %2261 = vmatpush1.msra.mxu0 0.0
    %2262 = vmatprep.subr.mxu0 0.0
    %2263 = vmatpush1.msra.mxu0 0.0
    %2264 = vmatprep.subr.mxu0 0.0
    %2265 = vmatpush1.msra.mxu0 0.0
    %2266 = vmatprep.subr.mxu0 0.0
    %2267 = vmatpush1.msra.mxu0 0.0
    %2268 = vmatprep.subr.mxu0 0.0
    %2269 = vmatpush1.msra.mxu0 0.0
    %2270 = vmatprep.subr.mxu0 0.0
    %2271 = vmatpush1.msra.mxu0 0.0
    %2272 = vmatprep.subr.mxu0 0.0
    %2273 = vmatpush1.msra.mxu0 0.0
    %2274 = vmatprep.subr.mxu0 0.0
    %2275 = vmatpush1.msra.mxu0 0.0
    %2276 = vmatprep.subr.mxu0 0.0
    %2277 = vmatpush1.msra.mxu0 0.0
    %2278 = vmatprep.subr.mxu0 0.0
    %2279 = vmatpush1.msra.mxu0 %v2241
    %2280 = vmatprep.subr.mxu0 0.0
    %2281 = vmatpush1.msra.mxu0 %v2239
    %2282 = vmatprep.subr.mxu0 0.0
    %2283 = vmatpush2.msra.mxu0 0.0
    %2284 = vmatprep.subr.mxu0 0.0
    %2285 = vmatpush2.msra.mxu0 0.0
    %2286 = vmatprep.subr.mxu0 0.0
    %2287 = vmatpush2.msra.mxu0 0.0
    %2288 = vmatprep.subr.mxu0 0.0
    %2289 = vmatpush2.msra.mxu0 0.0
    %2290 = vmatprep.subr.mxu0 0.0
    %2291 = vmatpush2.msra.mxu0 0.0
    %2292 = vmatprep.subr.mxu0 0.0
    %2293 = vmatpush2.msra.mxu0 0.0
    %2294 = vmatprep.subr.mxu0 0.0
    %2295 = vmatpush2.msra.mxu0 0.0
    %2296 = vmatprep.subr.mxu0 0.0
    %2297 = vmatpush2.msra.mxu0 0.0
    %2298 = vmatprep.subr.mxu0 0.0
    %2299 = vmatpush2.msra.mxu0 0.0
    %2300 = vmatprep.subr.mxu0 0.0
    %2301 = vmatpush2.msra.mxu0 0.0
    %2302 = vmatprep.subr.mxu0 0.0
    %2303 = vmatpush2.msra.mxu0 0.0
    %2304 = vmatprep.subr.mxu0 0.0
    %2305 = vmatpush2.msra.mxu0 0.0
    %2306 = vmatprep.subr.mxu0 0.0
    %2307 = vmatpush2.msra.mxu0 0.0
    %2308 = vmatprep.subr.mxu0 0.0
    %2309 = vmatpush2.msra.mxu0 0.0
    %2310 = vmatprep.subr.mxu0 0.0
    %2311 = vmatpush2.msra.mxu0 0.0
    %2312 = vmatprep.subr.mxu0 0.0
    %2313 = vmatpush2.msra.mxu0 0.0
    %2314 = vmatprep.mubr.f32.mxu0 0.0
    %2315 = vmatmul.mubr.f32.gmra.mxu0 %v2245
    %v2316 = vpop.f32.mrf.mxu0
    %v2317 = vadd.f32 0.0, %v2316
    %v2318 = vpop.f32.mrf.mxu0
    %2319 = vmatprep.mubr.f32.mxu0 0.0
    %2320 = vmatmul.mubr.f32.gmra.mxu0 %v2248
    %v2321 = vpop.f32.mrf.mxu0
    %v2322 = vadd.f32 0.0, %v2321
    %v2323 = vpop.f32.mrf.mxu0
    %2324 = vdwg.mxu0
    %2327 = vrot.lane.b32.xlu0 %v1917, 8
    %v2328 = vpop.permute.xlu0 %2327
    %2329 = vrot.lane.b32.xlu0 %v1922, 8
    %v2330 = vpop.permute.xlu0 %2329
    %2335 = vrot.lane.b32.xlu0 %v2117, 16
    %v2336 = vpop.permute.xlu0 %2335
    %2337 = vrot.lane.b32.xlu0 %v2122, 16
    %v2338 = vpop.permute.xlu0 %2337
    %2343 = vrot.lane.b32.xlu0 %v2317, 24
    %v2344 = vpop.permute.xlu0 %2343
    %2345 = vrot.lane.b32.xlu0 %v2322, 24
    %v2346 = vpop.permute.xlu0 %2345
    %v2349 = vsel %vm249, %v1717, %v2328
    %v2350 = vsel %vm249, %v1722, %v2330
    %v2351 = vsel %vm68, %v2349, %v2336
    %v2352 = vsel %vm68, %v2350, %v2338
    %v2353 = vsel %vm1070, %v2351, %v2344
    %v2354 = vsel %vm1070, %v2352, %v2346
    %s2355 = scalar_lea.vmem %s6, 32
    %v2356 = vld [vmem:[%s2355] sm:$0xff]
    %v2357 = vld [vmem:[%s2355 + $0x8] sm:$0xff]
    %v2358 = vld [vmem:[%s2355 + $0x10] sm:$0xff]
    %v2359 = vld [vmem:[%s2355 + $0x18] sm:$0xff]
    %v2360 = vld [vmem:[%s7 + $0x1] sm:$0x1]
    %v2361 = vlaneseq
    %v2362 = vshrl.u32 %v2361, 7
    %v2363 = vsub.s32 0, %v2362
    %v2364 = vrot.slane %v2360, %v2363
    %v2366 = vsel %vm161, %v2353, 0
    %v2369 = vsel %vm161, %v2354, 0
    %2371 = vmatprep.subr.mxu0 0.0
    %2372 = vmatpush1.msra.mxu0 0.0
    %2373 = vmatprep.subr.mxu0 0.0
    %2374 = vmatpush1.msra.mxu0 0.0
    %2375 = vmatprep.subr.mxu0 0.0
    %2376 = vmatpush1.msra.mxu0 0.0
    %2377 = vmatprep.subr.mxu0 0.0
    %2378 = vmatpush1.msra.mxu0 0.0
    %2379 = vmatprep.subr.mxu0 0.0
    %2380 = vmatpush1.msra.mxu0 0.0
    %2381 = vmatprep.subr.mxu0 0.0
    %2382 = vmatpush1.msra.mxu0 0.0
    %2383 = vmatprep.subr.mxu0 0.0
    %2384 = vmatpush1.msra.mxu0 0.0
    %2385 = vmatprep.subr.mxu0 0.0
    %2386 = vmatpush1.msra.mxu0 0.0
    %2387 = vmatprep.subr.mxu0 0.0
    %2388 = vmatpush1.msra.mxu0 0.0
    %2389 = vmatprep.subr.mxu0 0.0
    %2390 = vmatpush1.msra.mxu0 0.0
    %2391 = vmatprep.subr.mxu0 0.0
    %2392 = vmatpush1.msra.mxu0 0.0
    %2393 = vmatprep.subr.mxu0 0.0
    %2394 = vmatpush1.msra.mxu0 0.0
    %2395 = vmatprep.subr.mxu0 0.0
    %2396 = vmatpush1.msra.mxu0 %v2359
    %2397 = vmatprep.subr.mxu0 0.0
    %2398 = vmatpush1.msra.mxu0 %v2358
    %2399 = vmatprep.subr.mxu0 0.0
    %2400 = vmatpush1.msra.mxu0 %v2357
    %2401 = vmatprep.subr.mxu0 0.0
    %2402 = vmatpush1.msra.mxu0 %v2356
    %2403 = vmatprep.subr.mxu0 0.0
    %2404 = vmatpush2.msra.mxu0 0.0
    %2405 = vmatprep.subr.mxu0 0.0
    %2406 = vmatpush2.msra.mxu0 0.0
    %2407 = vmatprep.subr.mxu0 0.0
    %2408 = vmatpush2.msra.mxu0 0.0
    %2409 = vmatprep.subr.mxu0 0.0
    %2410 = vmatpush2.msra.mxu0 0.0
    %2411 = vmatprep.subr.mxu0 0.0
    %2412 = vmatpush2.msra.mxu0 0.0
    %2413 = vmatprep.subr.mxu0 0.0
    %2414 = vmatpush2.msra.mxu0 0.0
    %2415 = vmatprep.subr.mxu0 0.0
    %2416 = vmatpush2.msra.mxu0 0.0
    %2417 = vmatprep.subr.mxu0 0.0
    %2418 = vmatpush2.msra.mxu0 0.0
    %2419 = vmatprep.subr.mxu0 0.0
    %2420 = vmatpush2.msra.mxu0 0.0
    %2421 = vmatprep.subr.mxu0 0.0
    %2422 = vmatpush2.msra.mxu0 0.0
    %2423 = vmatprep.subr.mxu0 0.0
    %2424 = vmatpush2.msra.mxu0 0.0
    %2425 = vmatprep.subr.mxu0 0.0
    %2426 = vmatpush2.msra.mxu0 0.0
    %2427 = vmatprep.subr.mxu0 0.0
    %2428 = vmatpush2.msra.mxu0 0.0
    %2429 = vmatprep.subr.mxu0 0.0
    %2430 = vmatpush2.msra.mxu0 0.0
    %2431 = vmatprep.subr.mxu0 0.0
    %2432 = vmatpush2.msra.mxu0 0.0
    %2433 = vmatprep.subr.mxu0 0.0
    %2434 = vmatpush2.msra.mxu0 0.0
    %2435 = vmatprep.mubr.f32.mxu0 0.0
    %2436 = vmatmul.mubr.f32.gmra.mxu0 %v2366
    %v2437 = vpop.f32.mrf.mxu0
    %v2438 = vadd.f32 %v2364, %v2437
    %v2439 = vpop.f32.mrf.mxu0
    %2440 = vmatprep.mubr.f32.mxu0 0.0
    %2441 = vmatmul.mubr.f32.gmra.mxu0 %v2369
    %v2442 = vpop.f32.mrf.mxu0
    %v2443 = vadd.f32 %v2364, %v2442
    %v2444 = vpop.f32.mrf.mxu0
    %2445 = vdwg.mxu0
    %v2446 = vadd.f32 %v1434, %v2438
    %v2447 = vadd.f32 %v1435, %v2443
    %v2448 = vld [vmem:[%s8 + $0x1] sm:$0x1]
    %v2449 = vld [vmem:[%s9 + $0x1] sm:$0x1]
    %v2450 = vsel %vm161, %v2446, 0.0
    %2451 = vadd.xlane.f32.xlu0 %v2450
    %v2452 = vpop.xlane.xlu0 %2451
    %v2453 = vsel %vm161, %v2447, 0.0
    %2454 = vadd.xlane.f32.xlu0 %v2453
    %v2455 = vpop.xlane.xlu0 %2454
    %v2456 = vmul.f32 %v2452, %v1173
    %v2457 = vmul.f32 %v2455, %v1173
    %v2458 = vsub.f32 %v2446, %v2456
    %v2459 = vsub.f32 %v2447, %v2457
    %v2460 = vmul.f32 %v2458, %v2458
    %v2461 = vmul.f32 %v2459, %v2459
    %v2462 = vsel %vm161, %v2460, 0.0
    %2463 = vadd.xlane.f32.xlu0 %v2462
    %v2464 = vpop.xlane.xlu0 %2463
    %v2465 = vsel %vm161, %v2461, 0.0
    %2466 = vadd.xlane.f32.xlu0 %v2465
    %v2467 = vpop.xlane.xlu0 %2466
    %v2468 = vmul.f32 %v2464, %v1173
    %v2469 = vmul.f32 %v2467, %v1173
    %v2470 = vadd.f32 %v2468, 1e-05
    %v2471 = vadd.f32 %v2469, 1e-05
    %v2472 = vrsqrt.pop %v2470
    %v2473 = vrsqrt.pop %v2471
    %v2474 = vmul.f32 %v2458, %v2472
    %v2475 = vmul.f32 %v2459, %v2473
    %v2476 = vlaneseq
    %v2477 = vshrl.u32 %v2476, 7
    %v2478 = vsub.s32 0, %v2477
    %v2479 = vrot.slane %v2448, %v2478
    %v2480 = vmul.f32 %v2474, %v2479
    %v2481 = vmul.f32 %v2475, %v2479
    %v2482 = vlaneseq
    %v2483 = vshrl.u32 %v2482, 7
    %v2484 = vsub.s32 0, %v2483
    %v2485 = vrot.slane %v2449, %v2484
    %v2486 = vadd.f32 %v2480, %v2485
    %v2487 = vadd.f32 %v2481, %v2485
    %s2488 = scalar_lea.vmem %s10, 32
    %v2489 = vld [vmem:[%s2488] sm:$0xff]
    %v2490 = vld [vmem:[%s2488 + $0x8] sm:$0xff]
    %v2491 = vld [vmem:[%s2488 + $0x10] sm:$0xff]
    %v2492 = vld [vmem:[%s2488 + $0x18] sm:$0xff]
    %v2493 = vld [vmem:[%s11 + $0x1] sm:$0x1]
    %v2494 = vlaneseq
    %v2495 = vshrl.u32 %v2494, 7
    %v2496 = vsub.s32 0, %v2495
    %v2497 = vrot.slane %v2493, %v2496
    %v2499 = vsel %vm161, %v2486, 0
    %v2502 = vsel %vm161, %v2487, 0
    %2504 = vmatprep.subr.mxu0 0.0
    %2505 = vmatpush1.msra.mxu0 0.0
    %2506 = vmatprep.subr.mxu0 0.0
    %2507 = vmatpush1.msra.mxu0 0.0
    %2508 = vmatprep.subr.mxu0 0.0
    %2509 = vmatpush1.msra.mxu0 0.0
    %2510 = vmatprep.subr.mxu0 0.0
    %2511 = vmatpush1.msra.mxu0 0.0
    %2512 = vmatprep.subr.mxu0 0.0
    %2513 = vmatpush1.msra.mxu0 0.0
    %2514 = vmatprep.subr.mxu0 0.0
    %2515 = vmatpush1.msra.mxu0 0.0
    %2516 = vmatprep.subr.mxu0 0.0
    %2517 = vmatpush1.msra.mxu0 0.0
    %2518 = vmatprep.subr.mxu0 0.0
    %2519 = vmatpush1.msra.mxu0 0.0
    %2520 = vmatprep.subr.mxu0 0.0
    %2521 = vmatpush1.msra.mxu0 0.0
    %2522 = vmatprep.subr.mxu0 0.0
    %2523 = vmatpush1.msra.mxu0 0.0
    %2524 = vmatprep.subr.mxu0 0.0
    %2525 = vmatpush1.msra.mxu0 0.0
    %2526 = vmatprep.subr.mxu0 0.0
    %2527 = vmatpush1.msra.mxu0 0.0
    %2528 = vmatprep.subr.mxu0 0.0
    %2529 = vmatpush1.msra.mxu0 %v2492
    %2530 = vmatprep.subr.mxu0 0.0
    %2531 = vmatpush1.msra.mxu0 %v2491
    %2532 = vmatprep.subr.mxu0 0.0
    %2533 = vmatpush1.msra.mxu0 %v2490
    %2534 = vmatprep.subr.mxu0 0.0
    %2535 = vmatpush1.msra.mxu0 %v2489
    %2536 = vmatprep.subr.mxu0 0.0
    %2537 = vmatpush2.msra.mxu0 0.0
    %2538 = vmatprep.subr.mxu0 0.0
    %2539 = vmatpush2.msra.mxu0 0.0
    %2540 = vmatprep.subr.mxu0 0.0
    %2541 = vmatpush2.msra.mxu0 0.0
    %2542 = vmatprep.subr.mxu0 0.0
    %2543 = vmatpush2.msra.mxu0 0.0
    %2544 = vmatprep.subr.mxu0 0.0
    %2545 = vmatpush2.msra.mxu0 0.0
    %2546 = vmatprep.subr.mxu0 0.0
    %2547 = vmatpush2.msra.mxu0 0.0
    %2548 = vmatprep.subr.mxu0 0.0
    %2549 = vmatpush2.msra.mxu0 0.0
    %2550 = vmatprep.subr.mxu0 0.0
    %2551 = vmatpush2.msra.mxu0 0.0
    %2552 = vmatprep.subr.mxu0 0.0
    %2553 = vmatpush2.msra.mxu0 0.0
    %2554 = vmatprep.subr.mxu0 0.0
    %2555 = vmatpush2.msra.mxu0 0.0
    %2556 = vmatprep.subr.mxu0 0.0
    %2557 = vmatpush2.msra.mxu0 0.0
    %2558 = vmatprep.subr.mxu0 0.0
    %2559 = vmatpush2.msra.mxu0 0.0
    %2560 = vmatprep.subr.mxu0 0.0
    %2561 = vmatpush2.msra.mxu0 0.0
    %2562 = vmatprep.subr.mxu0 0.0
    %2563 = vmatpush2.msra.mxu0 0.0
    %2564 = vmatprep.subr.mxu0 0.0
    %2565 = vmatpush2.msra.mxu0 0.0
    %2566 = vmatprep.subr.mxu0 0.0
    %2567 = vmatpush2.msra.mxu0 0.0
    %2568 = vmatprep.mubr.f32.mxu0 0.0
    %2569 = vmatmul.mubr.f32.gmra.mxu0 %v2499
    %v2570 = vpop.f32.mrf.mxu0
    %v2571 = vadd.f32 %v2497, %v2570
    %v2572 = vpop.f32.mrf.mxu0
    %2573 = vmatprep.mubr.f32.mxu0 0.0
    %2574 = vmatmul.mubr.f32.gmra.mxu0 %v2502
    %v2575 = vpop.f32.mrf.mxu0
    %v2576 = vadd.f32 %v2497, %v2575
    %v2577 = vpop.f32.mrf.mxu0
    %2578 = vdwg.mxu0
    %v2579 = vmax.f32 %v2571, 0.0
    %v2580 = vmax.f32 %v2576, 0.0
    %s2581 = scalar_lea.vmem %s12, 128
    %v2582 = vld [vmem:[%s2581] sm:$0xff]
    %v2583 = vld [vmem:[%s2581 + $0x8] sm:$0xff]
    %v2584 = vld [vmem:[%s2581 + $0x10] sm:$0xff]
    %v2585 = vld [vmem:[%s2581 + $0x18] sm:$0xff]
    %v2586 = vld [vmem:[%s2581 + $0x20] sm:$0xff]
    %v2587 = vld [vmem:[%s2581 + $0x28] sm:$0xff]
    %v2588 = vld [vmem:[%s2581 + $0x30] sm:$0xff]
    %v2589 = vld [vmem:[%s2581 + $0x38] sm:$0xff]
    %v2590 = vld [vmem:[%s2581 + $0x40] sm:$0xff]
    %v2591 = vld [vmem:[%s2581 + $0x48] sm:$0xff]
    %v2592 = vld [vmem:[%s2581 + $0x50] sm:$0xff]
    %v2593 = vld [vmem:[%s2581 + $0x58] sm:$0xff]
    %v2594 = vld [vmem:[%s2581 + $0x60] sm:$0xff]
    %v2595 = vld [vmem:[%s2581 + $0x68] sm:$0xff]
    %v2596 = vld [vmem:[%s2581 + $0x70] sm:$0xff]
    %v2597 = vld [vmem:[%s2581 + $0x78] sm:$0xff]
    %v2598 = vld [vmem:[%s13 + $0x1] sm:$0x1]
    %v2599 = vlaneseq
    %v2600 = vshrl.u32 %v2599, 7
    %v2601 = vsub.s32 0, %v2600
    %v2602 = vrot.slane %v2598, %v2601
    %2603 = vmatprep.subr.mxu0 0.0
    %2604 = vmatpush1.msra.mxu0 %v2597
    %2605 = vmatprep.subr.mxu0 0.0
    %2606 = vmatpush1.msra.mxu0 %v2596
    %2607 = vmatprep.subr.mxu0 0.0
    %2608 = vmatpush1.msra.mxu0 %v2595
    %2609 = vmatprep.subr.mxu0 0.0
    %2610 = vmatpush1.msra.mxu0 %v2594
    %2611 = vmatprep.subr.mxu0 0.0
    %2612 = vmatpush1.msra.mxu0 %v2593
    %2613 = vmatprep.subr.mxu0 0.0
    %2614 = vmatpush1.msra.mxu0 %v2592
    %2615 = vmatprep.subr.mxu0 0.0
    %2616 = vmatpush1.msra.mxu0 %v2591
    %2617 = vmatprep.subr.mxu0 0.0
    %2618 = vmatpush1.msra.mxu0 %v2590
    %2619 = vmatprep.subr.mxu0 0.0
    %2620 = vmatpush1.msra.mxu0 %v2589
    %2621 = vmatprep.subr.mxu0 0.0
    %2622 = vmatpush1.msra.mxu0 %v2588
    %2623 = vmatprep.subr.mxu0 0.0
    %2624 = vmatpush1.msra.mxu0 %v2587
    %2625 = vmatprep.subr.mxu0 0.0
    %2626 = vmatpush1.msra.mxu0 %v2586
    %2627 = vmatprep.subr.mxu0 0.0
    %2628 = vmatpush1.msra.mxu0 %v2585
    %2629 = vmatprep.subr.mxu0 0.0
    %2630 = vmatpush1.msra.mxu0 %v2584
    %2631 = vmatprep.subr.mxu0 0.0
    %2632 = vmatpush1.msra.mxu0 %v2583
    %2633 = vmatprep.subr.mxu0 0.0
    %2634 = vmatpush1.msra.mxu0 %v2582
    %2635 = vmatprep.subr.mxu0 0.0
    %2636 = vmatpush2.msra.mxu0 0.0
    %2637 = vmatprep.subr.mxu0 0.0
    %2638 = vmatpush2.msra.mxu0 0.0
    %2639 = vmatprep.subr.mxu0 0.0
    %2640 = vmatpush2.msra.mxu0 0.0
    %2641 = vmatprep.subr.mxu0 0.0
    %2642 = vmatpush2.msra.mxu0 0.0
    %2643 = vmatprep.subr.mxu0 0.0
    %2644 = vmatpush2.msra.mxu0 0.0
    %2645 = vmatprep.subr.mxu0 0.0
    %2646 = vmatpush2.msra.mxu0 0.0
    %2647 = vmatprep.subr.mxu0 0.0
    %2648 = vmatpush2.msra.mxu0 0.0
    %2649 = vmatprep.subr.mxu0 0.0
    %2650 = vmatpush2.msra.mxu0 0.0
    %2651 = vmatprep.subr.mxu0 0.0
    %2652 = vmatpush2.msra.mxu0 0.0
    %2653 = vmatprep.subr.mxu0 0.0
    %2654 = vmatpush2.msra.mxu0 0.0
    %2655 = vmatprep.subr.mxu0 0.0
    %2656 = vmatpush2.msra.mxu0 0.0
    %2657 = vmatprep.subr.mxu0 0.0
    %2658 = vmatpush2.msra.mxu0 0.0
    %2659 = vmatprep.subr.mxu0 0.0
    %2660 = vmatpush2.msra.mxu0 0.0
    %2661 = vmatprep.subr.mxu0 0.0
    %2662 = vmatpush2.msra.mxu0 0.0
    %2663 = vmatprep.subr.mxu0 0.0
    %2664 = vmatpush2.msra.mxu0 0.0
    %2665 = vmatprep.subr.mxu0 0.0
    %2666 = vmatpush2.msra.mxu0 0.0
    %2667 = vmatprep.mubr.f32.mxu0 0.0
    %2668 = vmatmul.mubr.f32.gmra.mxu0 %v2579
    %v2669 = vpop.f32.mrf.mxu0
    %v2670 = vadd.f32 %v2602, %v2669
    %v2671 = vpop.f32.mrf.mxu0
    %2672 = vmatprep.mubr.f32.mxu0 0.0
    %2673 = vmatmul.mubr.f32.gmra.mxu0 %v2580
    %v2674 = vpop.f32.mrf.mxu0
    %v2675 = vadd.f32 %v2602, %v2674
    %v2676 = vpop.f32.mrf.mxu0
    %2677 = vdwg.mxu0
    %v2678 = vadd.f32 %v2486, %v2670
    %v2679 = vadd.f32 %v2487, %v2675
    %v2680 = vld [vmem:[%s14 + $0x1] sm:$0x1]
    %v2681 = vld [vmem:[%s15 + $0x1] sm:$0x1]
    %v2682 = vsel %vm161, %v2678, 0.0
    %2683 = vadd.xlane.f32.xlu0 %v2682
    %v2684 = vpop.xlane.xlu0 %2683
    %v2685 = vsel %vm161, %v2679, 0.0
    %2686 = vadd.xlane.f32.xlu0 %v2685
    %v2687 = vpop.xlane.xlu0 %2686
    %v2688 = vmul.f32 %v2684, %v1173
    %v2689 = vmul.f32 %v2687, %v1173
    %v2690 = vsub.f32 %v2678, %v2688
    %v2691 = vsub.f32 %v2679, %v2689
    %v2692 = vmul.f32 %v2690, %v2690
    %v2693 = vmul.f32 %v2691, %v2691
    %v2694 = vsel %vm161, %v2692, 0.0
    %2695 = vadd.xlane.f32.xlu0 %v2694
    %v2696 = vpop.xlane.xlu0 %2695
    %v2697 = vsel %vm161, %v2693, 0.0
    %2698 = vadd.xlane.f32.xlu0 %v2697
    %v2699 = vpop.xlane.xlu0 %2698
    %v2700 = vmul.f32 %v2696, %v1173
    %v2701 = vmul.f32 %v2699, %v1173
    %v2702 = vadd.f32 %v2700, 1e-05
    %v2703 = vadd.f32 %v2701, 1e-05
    %v2704 = vrsqrt.pop %v2702
    %v2705 = vrsqrt.pop %v2703
    %v2706 = vmul.f32 %v2690, %v2704
    %v2707 = vmul.f32 %v2691, %v2705
    %v2708 = vlaneseq
    %v2709 = vshrl.u32 %v2708, 7
    %v2710 = vsub.s32 0, %v2709
    %v2711 = vrot.slane %v2680, %v2710
    %v2712 = vmul.f32 %v2706, %v2711
    %v2713 = vmul.f32 %v2707, %v2711
    %v2714 = vlaneseq
    %v2715 = vshrl.u32 %v2714, 7
    %v2716 = vsub.s32 0, %v2715
    %v2717 = vrot.slane %v2681, %v2716
    %v2718 = vadd.f32 %v2712, %v2717
    %v2719 = vadd.f32 %v2713, %v2717
    %v2720 = vld [vmem:[%s16] sm:$0x1]
    %v2722 = vlaneseq
    %v2723 = vshrl.u32 %v2722, 7
    %v2724 = vsub.s32 0, %v2723
    %v2725 = vrot.slane %v2720, %v2724
    %v2727 = vmul.f32 %v2718, %v2725
    %v2728 = vmul.f32 %v2719, %v2725
    %v2729 = vsel %vm161, %v2727, 0.0
    %2730 = vadd.xlane.f32.xlu0 %v2729
    %v2731 = vpop.xlane.xlu0 %2730
    %v2732 = vsel %vm161, %v2728, 0.0
    %2733 = vadd.xlane.f32.xlu0 %v2732
    %v2734 = vpop.xlane.xlu0 %2733
    %v2735 = vld [vmem:[#allocation2] sm:$0x1]
    %v2737 = vlaneseq
    %v2738 = vshrl.u32 %v2737, 7
    %v2739 = vsub.s32 0, %v2738
    %v2740 = vrot.slane %v2735, %v2739
    %v2742 = vadd.f32 %v2731, %v2740
    %v2743 = vadd.f32 %v2734, %v2740
    %2746 = vset.pattern.permute.xlu0 0
    %2747 = vperm.xlu0 %2746, %v2742
    %v2748 = vpop.permute.xlu0 %2747
    %2749 = vset.pattern.permute.xlu0 0
    %2750 = vperm.xlu0 %2749, %v2743
    %v2751 = vpop.permute.xlu0 %2750
    %v2752 = vlaneseq
    %v2753 = vand.u32 %v2752, 127
    %v2754 = vlaneseq
    %v2755 = vshrl.u32 %v2754, 7
    %v2756 = vsub.s32 %v2753, %v2755
    %v2757 = vrot.slane %v2748, %v2756
    %v2758 = vlaneseq
    %v2759 = vshrl.u32 %v2758, 7
    %v2760 = vsub.s32 %v2753, %v2759
    %v2761 = vrot.slane %v2751, %v2760
    %vm2762 = vcmask 1041409
    %v2763 = vsel %vm2762, %v2761, %v2757
    %vm2765 = vcmask 58368
    %2766 = vst.msk [vmem:[#allocation3] sm:$0x3] %vm2765, %v2763
    // Predicated region
    $region74: #{tpu_custom_call.1} parent=1 // pred_check
      _
    $region75: #{tpu_custom_call.1} parent=1 // pred_check_branch
      %2768 = sbr.rel (0) target = $region77
    $region76: #{tpu_custom_call.1} parent=1 // pred_region
      %s2770 = ssub.s32 32, 32
      %2771 = vsyncadd [#allocation4], %s2770
      %s2773 = sshll.u32 [#allocation3], 4
      %s2774 = int_to_ptr.vmem [resolvable:$true] %s2773
      %2776 = dma.vmem_to_hbm [thread:$0]  %s2774, 32, %s18, [#allocation4]
    $region77: #{tpu_custom_call.1} parent=1 // pred_fallthru
      _
    // Predicated region
    $region78: #{tpu_custom_call.1} parent=1 // pred_check
      _
    $region79: #{tpu_custom_call.1} parent=1 // pred_check_branch
      %2778 = sbr.rel (0) target = $region81
    $region80: #{tpu_custom_call.1} parent=1 // pred_region
      %2779 = dma.done [#allocation4], 32
    $region81: #{tpu_custom_call.1} parent=1 // pred_fallthru
      _
    %2780 = vsyncpa [#allocation4], 1

</llo_original>
